<compile_context>
chip_gen: v5e
topology: v5e:2x2
jax: 0.10.0
libtpu: 0.0.40
codegen_flags: <defaults>
</compile_context>

<pallas_src>
import functools

import jax
import jax.numpy as jnp
from jax import lax
from jax.experimental import pallas as pl
from jax.experimental.pallas import tpu as pltpu

NEG_SLOPE = 0.01            # PyTorch LeakyReLU default
BN_EPS = 1e-5               # PyTorch BatchNorm2d default
CP = 128                    # lane-padded channel width (one vreg of lanes)
# TODO(synk): for Down blocks with out_ch > 128, raise CP to 256 (fills the
# full 256-wide MXU on v6e/v7x) instead of asserting.


# ------------------------------- helpers ----------------------------------- #

@functools.lru_cache(maxsize=None)
def _vmem_limit_bytes():
    """Generation-aware VMEM limit: 75% of physical (48 MiB on v7x, 96 MiB on v5e/v6e)."""
    cap = 64 * 1024 * 1024
    try:
        info = pltpu.get_tpu_info()
        cap = int(getattr(info, "vmem_capacity_bytes", cap) or cap)
    except Exception:
        pass
    return min((cap * 3) // 4, 100 * 1024 * 1024)


def _cparams(sem):
    return pltpu.CompilerParams(dimension_semantics=sem,
                                vmem_limit_bytes=_vmem_limit_bytes())


def _divisor_tile(n, cap):
    """Largest divisor of n that is <= cap; take the whole axis if only tiny ones exist."""
    cap = max(1, min(n, cap))
    best = 1
    for t in range(1, cap + 1):
        if n % t == 0:
            best = t
    if n > cap and best * 4 < cap:          # pathological (e.g. prime) axis
        return n
    return best


# ------------------------------- kernels ----------------------------------- #

def _scale_shift(ps, gamma, beta, count):
    """Finish BN from per-(image,row-tile) partials.  ps: (N, NT, 2, CP)."""
    # TODO(synk): E[x^2]-E[x]^2 is cancellation-prone for large means; fine at 2e-2 tol.
    tot = jnp.sum(ps, axis=(0, 1))                       # (2, CP)
    inv = 1.0 / count
    mean = tot[0:1] * inv
    var = jnp.maximum(tot[1:2] * inv - mean * mean, 0.0)
    scale = gamma * lax.rsqrt(var + BN_EPS)
    shift = beta - mean * scale
    return scale, shift                                  # (1, CP) each


def _conv3x3_from_slab(slab_ref, w_ref, th, wo, cp):
    """9 accumulated (TH*Wo, CP) x (CP, CP) MXU matmuls -- no big im2col buffer."""
    acc = jnp.zeros((th * wo, cp), jnp.float32)
    for t in range(9):
        dy, dx = t // 3, t % 3
        xt = slab_ref[dy:dy + th, dx:dx + wo, :].reshape(th * wo, cp)
        acc = acc + jnp.dot(xt, w_ref[t], preferred_element_type=jnp.float32)
    return acc


def _emit_conv_outputs(y, y_ref, ps_ref, th, wo, cp):
    y_ref[...] = y.reshape(1, th, wo, cp)
    s = jnp.sum(y, axis=0, keepdims=True)
    ss = jnp.sum(y * y, axis=0, keepdims=True)
    ps_ref[...] = jnp.concatenate([s, ss], axis=0).reshape(1, 1, 2, cp)


def _zero_slab_boundaries(slab_ref, j, nt, th, wo, cp):
    """Zero the W border always, and the H halo row(s) when at the image boundary."""
    zc = jnp.zeros((th + 2, 1, cp), jnp.bfloat16)
    slab_ref[:, 0:1, :] = zc
    slab_ref[:, wo + 1:wo + 2, :] = zc

    @pl.when(j == 0)
    def _():
        slab_ref[0:1, :, :] = jnp.zeros((1, wo + 2, cp), jnp.bfloat16)

    @pl.when(j == nt - 1)
    def _():
        slab_ref[th + 1:th + 2, :, :] = jnp.zeros((1, wo + 2, cp), jnp.bfloat16)


def _pool_pad_kernel(x_ref, o_ref):
    # x_ref: (1, TH, 2, Wo, 2*cin) f32 (NHWC view); o_ref: (1, TH, Wo, CP) bf16.
    th, wo, cp = o_ref.shape[1], o_ref.shape[2], o_ref.shape[3]
    v = x_ref[0]
    cin = v.shape[3] // 2
    rows = jnp.maximum(v[:, 0], v[:, 1])                 # max over the 2 H taps
    p = jnp.maximum(rows[..., :cin], rows[..., cin:])    # max over the 2 W taps
    o_ref[...] = jnp.zeros(o_ref.shape, o_ref.dtype)     # zero channel padding
    o_ref[:, :, :, 0:cin] = p.astype(o_ref.dtype).reshape(1, th, wo, cin)


def _conv_stats_kernel(top_ref, mid_ref, bot_ref, w_ref, y_ref, ps_ref, slab_ref):
    """conv3x3 (pad=1, no bias) + per-(image,row-tile) BN partial (sum, sum_sq)."""
    th, wo, cp = mid_ref.shape[1], mid_ref.shape[2], mid_ref.shape[3]
    j = pl.program_id(1)
    nt = pl.num_programs(1)
    slab_ref[0:1, 1:wo + 1, :] = top_ref[0]              # halo row (bf16 already)
    slab_ref[1:th + 1, 1:wo + 1, :] = mid_ref[0]
    slab_ref[th + 1:th + 2, 1:wo + 1, :] = bot_ref[0]
    _zero_slab_boundaries(slab_ref, j, nt, th, wo, cp)
    y = _conv3x3_from_slab(slab_ref, w_ref, th, wo, cp)
    _emit_conv_outputs(y, y_ref, ps_ref, th, wo, cp)


def _bn_lrelu_conv_stats_kernel(top_ref, mid_ref, bot_ref, ps_ref, g_ref, be_ref,
                                w_ref, y_ref, pso_ref, slab_ref, *, count):
    """Fused: BN(prev conv stats) + LeakyReLU on the input rows, then conv3x3 + stats."""
    th, wo, cp = mid_ref.shape[1], mid_ref.shape[2], mid_ref.shape[3]
    j = pl.program_id(1)
    nt = pl.num_programs(1)
    scale, shift = _scale_shift(ps_ref[...], g_ref[...], be_ref[...], count)
    sc = scale.reshape(1, 1, cp)
    sh = shift.reshape(1, 1, cp)

    def act(v):                          # BN + LeakyReLU in f32, bf16 for the MXU
        a = v * sc + sh
        return jnp.where(a >= 0, a, NEG_SLOPE * a).astype(jnp.bfloat16)

    slab_ref[0:1, 1:wo + 1, :] = act(top_ref[0])
    slab_ref[1:th + 1, 1:wo + 1, :] = act(mid_ref[0])
    slab_ref[th + 1:th + 2, 1:wo + 1, :] = act(bot_ref[0])
    _zero_slab_boundaries(slab_ref, j, nt, th, wo, cp)   # conv padding = 0 in a1 space
    y = _conv3x3_from_slab(slab_ref, w_ref, th, wo, cp)
    _emit_conv_outputs(y, y_ref, pso_ref, th, wo, cp)


def _bn_lrelu_kernel(y_ref, ps_ref, g_ref, be_ref, o_ref, *, count):
    scale, shift = _scale_shift(ps_ref[...], g_ref[...], be_ref[...], count)
    a = y_ref[...] * scale + shift
    o_ref[...] = jnp.where(a >= 0, a, NEG_SLOPE * a)


# --------------------------- pallas_call wrappers --------------------------- #

def maxpool_to_nhwc(x_nchw, *, row_cap=64):
    """MaxPool2d(2,2) fused with channel zero-padding to CP lanes; bf16 output."""
    n, cin, h, w = x_nchw.shape
    ho, wo = h // 2, w // 2
    x = jnp.transpose(x_nchw, (0, 2, 3, 1))              # small unpadded transpose
    xr = x.reshape(n, ho, 2, wo, 2 * cin)                # free row-major view
    th = _divisor_tile(ho, row_cap)
    nt = ho // th
    return pl.pallas_call(
        _pool_pad_kernel,
        out_shape=jax.ShapeDtypeStruct((n, ho, wo, CP), jnp.bfloat16),
        grid=(n, nt),
        in_specs=[pl.BlockSpec((1, th, 2, wo, 2 * cin),
                               lambda i, j: (i, j, 0, 0, 0))],
        out_specs=pl.BlockSpec((1, th, wo, CP), lambda i, j: (i, j, 0, 0)),
        compiler_params=_cparams(("parallel", "parallel")),
    )(xr)


def conv3x3_stats(x, w_taps, *, row_cap=32):
    """Row-tiled 3x3 conv (pad=1, bias folded into BN) + per-tile BN partials."""
    n, h, w, cp = x.shape
    th = _divisor_tile(h, row_cap)
    nt = h // th
    # TODO(synk): extremely wide images would additionally need W tiling (halo DMA).

    def top_map(i, j):
        return (i, jnp.maximum(j * th - 1, 0), 0, 0)     # clamped; zeroed in-kernel at j==0

    def bot_map(i, j):
        return (i, jnp.minimum(j * th + th, h - 1), 0, 0)

    return pl.pallas_call(
        _conv_stats_kernel,
        out_shape=(jax.ShapeDtypeStruct((n, h, w, cp), jnp.float32),
                   jax.ShapeDtypeStruct((n, nt, 2, cp), jnp.float32)),
        grid=(n, nt),
        in_specs=[pl.BlockSpec((1, 1, w, cp), top_map),
                  pl.BlockSpec((1, th, w, cp), lambda i, j: (i, j, 0, 0)),
                  pl.BlockSpec((1, 1, w, cp), bot_map),
                  pl.BlockSpec((9, cp, cp), lambda i, j: (0, 0, 0))],
        out_specs=(pl.BlockSpec((1, th, w, cp), lambda i, j: (i, j, 0, 0)),
                   pl.BlockSpec((1, 1, 2, cp), lambda i, j: (i, j, 0, 0))),
        scratch_shapes=[pltpu.VMEM((th + 2, w + 2, cp), jnp.bfloat16)],
        compiler_params=_cparams(("parallel", "parallel")),
    )(x, x, x, w_taps)


def bn_lrelu_conv3x3_stats(y_prev, ps_prev, gamma, beta, w_taps, count, *, row_cap=32):
    """Fused BN+LeakyReLU of y_prev followed by the next row-tiled conv3x3 (+stats)."""
    n, h, w, cp = y_prev.shape
    npi, nti = ps_prev.shape[0], ps_prev.shape[1]
    th = _divisor_tile(h, row_cap)
    nt = h // th
    kernel = functools.partial(_bn_lrelu_conv_stats_kernel, count=float(count))

    def top_map(i, j):
        return (i, jnp.maximum(j * th - 1, 0), 0, 0)

    def bot_map(i, j):
        return (i, jnp.minimum(j * th + th, h - 1), 0, 0)

    return pl.pallas_call(
        kernel,
        out_shape=(jax.ShapeDtypeStruct((n, h, w, cp), jnp.float32),
                   jax.ShapeDtypeStruct((n, nt, 2, cp), jnp.float32)),
        grid=(n, nt),
        in_specs=[pl.BlockSpec((1, 1, w, cp), top_map),
                  pl.BlockSpec((1, th, w, cp), lambda i, j: (i, j, 0, 0)),
                  pl.BlockSpec((1, 1, w, cp), bot_map),
                  pl.BlockSpec((npi, nti, 2, cp), lambda i, j: (0, 0, 0, 0)),
                  pl.BlockSpec((1, cp), lambda i, j: (0, 0)),
                  pl.BlockSpec((1, cp), lambda i, j: (0, 0)),
                  pl.BlockSpec((9, cp, cp), lambda i, j: (0, 0, 0))],
        out_specs=(pl.BlockSpec((1, th, w, cp), lambda i, j: (i, j, 0, 0)),
                   pl.BlockSpec((1, 1, 2, cp), lambda i, j: (i, j, 0, 0))),
        scratch_shapes=[pltpu.VMEM((th + 2, w + 2, cp), jnp.bfloat16)],
        compiler_params=_cparams(("parallel", "parallel")),
    )(y_prev, y_prev, y_prev, ps_prev, gamma, beta, w_taps)


def bn_lrelu_apply(y, ps, gamma, beta, count, *, row_cap=512):
    """Final BN + LeakyReLU, tiled over the flattened N*H*W row axis."""
    n, h, w, cp = y.shape
    m = n * h * w
    tm = m if m <= row_cap else row_cap                  # row_cap is a multiple of 8
    yf = y.reshape(m, cp)
    kernel = functools.partial(_bn_lrelu_kernel, count=float(count))
    out = pl.pallas_call(
        kernel,
        out_shape=jax.ShapeDtypeStruct((m, cp), jnp.float32),
        grid=(pl.cdiv(m, tm),),
        in_specs=[pl.BlockSpec((tm, cp), lambda i: (i, 0)),
                  pl.BlockSpec(ps.shape, lambda i: (0, 0, 0, 0)),
                  pl.BlockSpec((1, cp), lambda i: (0, 0)),
                  pl.BlockSpec((1, cp), lambda i: (0, 0))],
        out_specs=pl.BlockSpec((tm, cp), lambda i: (i, 0)),
        compiler_params=_cparams(("parallel",)),
    )(yf, ps, gamma, beta)
    return out.reshape(n, h, w, cp)


# ------------------------------ Down forward -------------------------------- #

def down_forward(params, x_nchw, *, out_ch):
    n, cin, h, w = x_nchw.shape
    assert cin <= CP and out_ch <= CP
    assert h % 2 == 0 and w % 2 == 0, "MaxPool2d(2,2) needs even spatial dims"
    xp = maxpool_to_nhwc(x_nchw)                          # (N, H/2, W/2, CP) bf16
    ho, wo = h // 2, w // 2
    count = n * ho * wo                                   # BN sample count
    p1, p2 = params["conv1"], params["conv2"]
    y1, ps1 = conv3x3_stats(xp, p1["W"])
    y2, ps2 = bn_lrelu_conv3x3_stats(y1, ps1, p1["gamma"], p1["beta"],
                                     p2["W"], count)
    a2 = bn_lrelu_apply(y2, ps2, p2["gamma"], p2["beta"], count)
    a2 = a2[..., :out_ch]                                 # drop channel padding
    return jnp.transpose(a2, (0, 3, 1, 2))                # NHWC -> NCHW


# ------------------------------ parameter init ------------------------------ #

def init_down_params(key, in_ch, out_ch):
    kw1, kb1, kw2, kb2 = jax.random.split(key, 4)

    def conv_init(kw, kb, cin, cout):
        s = 1.0 / float((9 * cin) ** 0.5)
        wt = jax.random.uniform(kw, (cout, cin, 3, 3), jnp.float32, -s, s)
        bt = jax.random.uniform(kb, (cout,), jnp.float32, -s, s)
        return wt, bt

    wt1, bt1 = conv_init(kw1, kb1, in_ch, out_ch)
    wt2, bt2 = conv_init(kw2, kb2, out_ch, out_ch)

    def pack(wt):
        # (cout, cin, 3, 3) -> (9 taps, CP, CP), zero-padded channels, bf16 for the MXU.
        cout, cin = wt.shape[0], wt.shape[1]
        wr = jnp.transpose(wt, (2, 3, 1, 0)).reshape(9, cin, cout)   # (tap, cin, cout)
        wm = jnp.zeros((9, CP, CP), jnp.float32).at[:, :cin, :cout].set(wr)
        gamma = jnp.zeros((1, CP), jnp.float32).at[0, :cout].set(1.0)
        beta = jnp.zeros((1, CP), jnp.float32)
        # Conv bias is intentionally dropped on the kernel path: bias followed by
        # training-mode BatchNorm is exactly cancelled by the mean subtraction.
        return dict(W=wm.astype(jnp.bfloat16), gamma=gamma, beta=beta)

    params = dict(conv1=pack(wt1), conv2=pack(wt2))
    ref = dict(conv1=dict(W=wt1, b=bt1), conv2=dict(W=wt2, b=bt2))
    return params, ref


# ------------------------- pure-JAX reference (check) ----------------------- #

def down_reference(ref, x_nchw):
    def conv(x, wt, b):
        xb = x.astype(jnp.bfloat16).astype(jnp.float32)
        wb = wt.astype(jnp.bfloat16).astype(jnp.float32)
        y = lax.conv_general_dilated(xb, wb, (1, 1), ((1, 1), (1, 1)),
                                     dimension_numbers=("NCHW", "OIHW", "NCHW"))
        return y + b.reshape(1, -1, 1, 1)

    def bn_lrelu(y):                       # gamma=1, beta=0 (fresh BN module)
        mean = jnp.mean(y, axis=(0, 2, 3), keepdims=True)
        var = jnp.mean(jnp.square(y - mean), axis=(0, 2, 3), keepdims=True)
        a = (y - mean) * lax.rsqrt(var + BN_EPS)
        return jnp.where(a >= 0, a, NEG_SLOPE * a)

    n, c, h, w = x_nchw.shape
    xp = x_nchw.reshape(n, c, h // 2, 2, w // 2, 2).max(axis=(3, 5))
    a1 = bn_lrelu(conv(xp, ref["conv1"]["W"], ref["conv1"]["b"]))
    a2 = bn_lrelu(conv(a1, ref["conv2"]["W"], ref["conv2"]["b"]))
    return a2


# ----------------------------------- main ----------------------------------- #

if __name__ == "__main__":
    IN_CH, OUT_CH = 4, 8
    key = jax.random.PRNGKey(0)
    kp, kx = jax.random.split(key)
    params, ref = init_down_params(kp, IN_CH, OUT_CH)
    x = jax.random.normal(kx, (2, IN_CH, 16, 16), dtype=jnp.float32)

    fwd = jax.jit(functools.partial(down_forward, out_ch=OUT_CH))
    y = jax.block_until_ready(fwd(params, x))

    assert y.shape == (2, OUT_CH, 8, 8), y.shape
    assert bool(jnp.all(jnp.isfinite(y)))

    y_ref = down_reference(ref, x)
    err = float(jnp.max(jnp.abs(y - y_ref)))
    assert err < 2e-2, f"mismatch vs reference: max abs err = {err}"

    print("KERNEL_OK")
</pallas_src>

<mosaic_0001>
module attributes {stable_mosaic.version = 11 : i64} {
  func.func @_pool_pad_kernel(%arg0: i32, %arg1: i32, %arg2: memref<1x8x2x8x8xf32, #tpu.memory_space<vmem>>, %arg3: memref<1x8x8x128xbf16, #tpu.memory_space<vmem>>) attributes {dimension_semantics = [#tpu.dimension_semantics<parallel>, #tpu.dimension_semantics<parallel>], iteration_bounds = array<i64: 2, 1>, scalar_prefetch = 0 : i64, scratch_operands = 0 : i64, tpu.core_type = #tpu.core_type<tc>, window_params = [{transform_indices = @transform_0, window_bounds = array<i64: 1, 8, 2, 8, 8>}, {transform_indices = @transform_1, window_bounds = array<i64: 1, 8, 8, 128>}]} {
    %c0 = arith.constant 0 : index
    %c0_0 = arith.constant 0 : index
    %c0_1 = arith.constant 0 : index
    %c0_2 = arith.constant 0 : index
    %c0_3 = arith.constant 0 : index
    %0 = vector.load %arg2[%c0, %c0_0, %c0_1, %c0_2, %c0_3] : memref<1x8x2x8x8xf32, #tpu.memory_space<vmem>>, vector<1x8x2x8x8xf32>
    %1 = vector.shape_cast %0 : vector<1x8x2x8x8xf32> to vector<8x2x8x8xf32>
    %2 = vector.extract_strided_slice %1 {offsets = [0, 0, 0, 0], sizes = [8, 1, 8, 8], strides = [1, 1, 1, 1]} : vector<8x2x8x8xf32> to vector<8x1x8x8xf32>
    %3 = vector.shape_cast %2 : vector<8x1x8x8xf32> to vector<8x8x8xf32>
    %4 = vector.extract_strided_slice %1 {offsets = [0, 1, 0, 0], sizes = [8, 1, 8, 8], strides = [1, 1, 1, 1]} : vector<8x2x8x8xf32> to vector<8x1x8x8xf32>
    %5 = vector.shape_cast %4 : vector<8x1x8x8xf32> to vector<8x8x8xf32>
    %6 = arith.maximumf %3, %5 : vector<8x8x8xf32>
    %7 = vector.extract_strided_slice %6 {offsets = [0, 0, 0], sizes = [8, 8, 4], strides = [1, 1, 1]} : vector<8x8x8xf32> to vector<8x8x4xf32>
    %8 = vector.extract_strided_slice %6 {offsets = [0, 0, 4], sizes = [8, 8, 4], strides = [1, 1, 1]} : vector<8x8x8xf32> to vector<8x8x4xf32>
    %9 = arith.maximumf %7, %8 : vector<8x8x4xf32>
    %cst = arith.constant 0.000000e+00 : bf16
    %10 = vector.broadcast %cst : bf16 to vector<1x8x8x128xbf16>
    %c0_4 = arith.constant 0 : index
    %c0_5 = arith.constant 0 : index
    %c0_6 = arith.constant 0 : index
    %c0_7 = arith.constant 0 : index
    %11 = vector.load %arg3[%c0_4, %c0_5, %c0_6, %c0_7] : memref<1x8x8x128xbf16, #tpu.memory_space<vmem>>, vector<1x8x8x128xbf16>
    tpu.vector_store %arg3[%c0_4, %c0_5, %c0_6, %c0_7], %10 {strides = array<i32>} : memref<1x8x8x128xbf16, #tpu.memory_space<vmem>>, vector<1x8x8x128xbf16>,
    %12 = arith.truncf %9 : vector<8x8x4xf32> to vector<8x8x4xbf16>
    %13 = vector.shape_cast %12 : vector<8x8x4xbf16> to vector<1x8x8x4xbf16>
    %c0_8 = arith.constant 0 : index
    %c0_9 = arith.constant 0 : index
    %c0_10 = arith.constant 0 : index
    %c0_11 = arith.constant 0 : index
    %14 = vector.load %arg3[%c0_8, %c0_9, %c0_10, %c0_11] : memref<1x8x8x128xbf16, #tpu.memory_space<vmem>>, vector<1x8x8x4xbf16>
    tpu.vector_store %arg3[%c0_8, %c0_9, %c0_10, %c0_11], %13 {strides = array<i32>} : memref<1x8x8x128xbf16, #tpu.memory_space<vmem>>, vector<1x8x8x4xbf16>,
    return
  }
  func.func @transform_0(%arg0: i32, %arg1: i32) -> (i32, i32, i32, i32, i32) {
    %c0_i32 = arith.constant 0 : i32
    %c0_i32_0 = arith.constant 0 : i32
    %c0_i32_1 = arith.constant 0 : i32
    %c0_i32_2 = arith.constant 0 : i32
    return %arg0, %arg1, %c0_i32, %c0_i32_0, %c0_i32_1 : i32, i32, i32, i32, i32
  }
  func.func @transform_1(%arg0: i32, %arg1: i32) -> (i32, i32, i32, i32) {
    %c0_i32 = arith.constant 0 : i32
    %c0_i32_0 = arith.constant 0 : i32
    %c0_i32_1 = arith.constant 0 : i32
    return %arg0, %arg1, %c0_i32, %c0_i32_0 : i32, i32, i32, i32
  }
}

module attributes {stable_mosaic.version = 11 : i64} {
  func.func @_conv_stats_kernel(%arg0: i32, %arg1: i32, %arg2: memref<1x1x8x128xbf16, #tpu.memory_space<vmem>>, %arg3: memref<1x8x8x128xbf16, #tpu.memory_space<vmem>>, %arg4: memref<1x1x8x128xbf16, #tpu.memory_space<vmem>>, %arg5: memref<9x128x128xbf16, #tpu.memory_space<vmem>>, %arg6: memref<1x8x8x128xf32, #tpu.memory_space<vmem>>, %arg7: memref<1x1x2x128xf32, #tpu.memory_space<vmem>>, %arg8: memref<10x10x128xbf16, #tpu.memory_space<vmem>>) attributes {dimension_semantics = [#tpu.dimension_semantics<parallel>, #tpu.dimension_semantics<parallel>], iteration_bounds = array<i64: 2, 1>, scalar_prefetch = 0 : i64, scratch_operands = 1 : i64, tpu.core_type = #tpu.core_type<tc>, window_params = [{transform_indices = @transform_0, window_bounds = array<i64: 1, 1, 8, 128>}, {transform_indices = @transform_1, window_bounds = array<i64: 1, 8, 8, 128>}, {transform_indices = @transform_2, window_bounds = array<i64: 1, 1, 8, 128>}, {pipeline_mode = #tpu.pipeline_mode<synchronous>, transform_indices = @transform_3, window_bounds = array<i64: 9, 128, 128>}, {transform_indices = @transform_4, window_bounds = array<i64: 1, 8, 8, 128>}, {transform_indices = @transform_5, window_bounds = array<i64: 1, 1, 2, 128>}]} {
    %c0 = arith.constant 0 : index
    %c0_0 = arith.constant 0 : index
    %c0_1 = arith.constant 0 : index
    %c0_2 = arith.constant 0 : index
    %0 = vector.load %arg2[%c0, %c0_0, %c0_1, %c0_2] : memref<1x1x8x128xbf16, #tpu.memory_space<vmem>>, vector<1x1x8x128xbf16>
    %1 = vector.shape_cast %0 : vector<1x1x8x128xbf16> to vector<1x8x128xbf16>
    %c0_3 = arith.constant 0 : index
    %c1 = arith.constant 1 : index
    %c0_4 = arith.constant 0 : index
    %2 = vector.load %arg8[%c0_3, %c1, %c0_4] : memref<10x10x128xbf16, #tpu.memory_space<vmem>>, vector<1x8x128xbf16>
    tpu.vector_store %arg8[%c0_3, %c1, %c0_4], %1 {strides = array<i32>} : memref<10x10x128xbf16, #tpu.memory_space<vmem>>, vector<1x8x128xbf16>,
    %c0_5 = arith.constant 0 : index
    %c0_6 = arith.constant 0 : index
    %c0_7 = arith.constant 0 : index
    %c0_8 = arith.constant 0 : index
    %3 = vector.load %arg3[%c0_5, %c0_6, %c0_7, %c0_8] : memref<1x8x8x128xbf16, #tpu.memory_space<vmem>>, vector<1x8x8x128xbf16>
    %4 = vector.shape_cast %3 : vector<1x8x8x128xbf16> to vector<8x8x128xbf16>
    %c1_9 = arith.constant 1 : index
    %c1_10 = arith.constant 1 : index
    %c0_11 = arith.constant 0 : index
    %5 = vector.load %arg8[%c1_9, %c1_10, %c0_11] : memref<10x10x128xbf16, #tpu.memory_space<vmem>>, vector<8x8x128xbf16>
    tpu.vector_store %arg8[%c1_9, %c1_10, %c0_11], %4 {strides = array<i32>} : memref<10x10x128xbf16, #tpu.memory_space<vmem>>, vector<8x8x128xbf16>,
    %c0_12 = arith.constant 0 : index
    %c0_13 = arith.constant 0 : index
    %c0_14 = arith.constant 0 : index
    %c0_15 = arith.constant 0 : index
    %6 = vector.load %arg4[%c0_12, %c0_13, %c0_14, %c0_15] : memref<1x1x8x128xbf16, #tpu.memory_space<vmem>>, vector<1x1x8x128xbf16>
    %7 = vector.shape_cast %6 : vector<1x1x8x128xbf16> to vector<1x8x128xbf16>
    %c9 = arith.constant 9 : index
    %c1_16 = arith.constant 1 : index
    %c0_17 = arith.constant 0 : index
    %8 = vector.load %arg8[%c9, %c1_16, %c0_17] : memref<10x10x128xbf16, #tpu.memory_space<vmem>>, vector<1x8x128xbf16>
    tpu.vector_store %arg8[%c9, %c1_16, %c0_17], %7 {strides = array<i32>} : memref<10x10x128xbf16, #tpu.memory_space<vmem>>, vector<1x8x128xbf16>,
    %cst = arith.constant 0.000000e+00 : bf16
    %9 = vector.broadcast %cst : bf16 to vector<10x1x128xbf16>
    %c0_18 = arith.constant 0 : index
    %c0_19 = arith.constant 0 : index
    %c0_20 = arith.constant 0 : index
    %10 = vector.load %arg8[%c0_18, %c0_19, %c0_20] : memref<10x10x128xbf16, #tpu.memory_space<vmem>>, vector<10x1x128xbf16>
    tpu.vector_store %arg8[%c0_18, %c0_19, %c0_20], %9 {strides = array<i32>} : memref<10x10x128xbf16, #tpu.memory_space<vmem>>, vector<10x1x128xbf16>,
    %c0_21 = arith.constant 0 : index
    %c9_22 = arith.constant 9 : index
    %c0_23 = arith.constant 0 : index
    %11 = vector.load %arg8[%c0_21, %c9_22, %c0_23] : memref<10x10x128xbf16, #tpu.memory_space<vmem>>, vector<10x1x128xbf16>
    tpu.vector_store %arg8[%c0_21, %c9_22, %c0_23], %9 {strides = array<i32>} : memref<10x10x128xbf16, #tpu.memory_space<vmem>>, vector<10x1x128xbf16>,
    %c0_i32 = arith.constant 0 : i32
    %12 = arith.cmpi eq, %arg1, %c0_i32 : i32
    %13 = arith.extui %12 : i1 to i32
    %c0_i32_24 = arith.constant 0 : i32
    %14 = arith.cmpi ne, %13, %c0_i32_24 : i32
    scf.if %14 {
      %cst_94 = arith.constant 0.000000e+00 : bf16
      %83 = vector.broadcast %cst_94 : bf16 to vector<1x10x128xbf16>
      %c0_95 = arith.constant 0 : index
      %c0_96 = arith.constant 0 : index
      %c0_97 = arith.constant 0 : index
      %84 = vector.load %arg8[%c0_95, %c0_96, %c0_97] : memref<10x10x128xbf16, #tpu.memory_space<vmem>>, vector<1x10x128xbf16>
      tpu.vector_store %arg8[%c0_95, %c0_96, %c0_97], %83 {strides = array<i32>} : memref<10x10x128xbf16, #tpu.memory_space<vmem>>, vector<1x10x128xbf16>,
    } else {
    }
    %c0_i32_25 = arith.constant 0 : i32
    %15 = arith.cmpi eq, %arg1, %c0_i32_25 : i32
    %16 = arith.extui %15 : i1 to i32
    %c0_i32_26 = arith.constant 0 : i32
    %17 = arith.cmpi ne, %16, %c0_i32_26 : i32
    scf.if %17 {
      %cst_94 = arith.constant 0.000000e+00 : bf16
      %83 = vector.broadcast %cst_94 : bf16 to vector<1x10x128xbf16>
      %c9_95 = arith.constant 9 : index
      %c0_96 = arith.constant 0 : index
      %c0_97 = arith.constant 0 : index
      %84 = vector.load %arg8[%c9_95, %c0_96, %c0_97] : memref<10x10x128xbf16, #tpu.memory_space<vmem>>, vector<1x10x128xbf16>
      tpu.vector_store %arg8[%c9_95, %c0_96, %c0_97], %83 {strides = array<i32>} : memref<10x10x128xbf16, #tpu.memory_space<vmem>>, vector<1x10x128xbf16>,
    } else {
    }
    %cst_27 = arith.constant 0.000000e+00 : f32
    %18 = vector.broadcast %cst_27 : f32 to vector<64x128xf32>
    %c0_28 = arith.constant 0 : index
    %c0_29 = arith.constant 0 : index
    %c0_30 = arith.constant 0 : index
    %19 = vector.load %arg8[%c0_28, %c0_29, %c0_30] : memref<10x10x128xbf16, #tpu.memory_space<vmem>>, vector<8x8x128xbf16>
    %20 = vector.shape_cast %19 : vector<8x8x128xbf16> to vector<64x128xbf16>
    %c0_31 = arith.constant 0 : index
    %c0_32 = arith.constant 0 : index
    %c0_33 = arith.constant 0 : index
    %21 = vector.load %arg5[%c0_31, %c0_32, %c0_33] : memref<9x128x128xbf16, #tpu.memory_space<vmem>>, vector<1x128x128xbf16>
    %22 = vector.shape_cast %21 : vector<1x128x128xbf16> to vector<128x128xbf16>
    %cst_34 = arith.constant dense<0.000000e+00> : vector<64x128xf32>
    %23 = tpu.matmul %20, %22, %cst_34 {dimension_numbers = #tpu.dot_dimension_numbers<[1], [0], [0], [1], [0, 0, 1, 1], [], []>} : vector<64x128xbf16>, vector<128x128xbf16>, vector<64x128xf32> -> vector<64x128xf32>
    %24 = arith.addf %18, %23 : vector<64x128xf32>
    %c0_35 = arith.constant 0 : index
    %c1_36 = arith.constant 1 : index
    %c0_37 = arith.constant 0 : index
    %25 = vector.load %arg8[%c0_35, %c1_36, %c0_37] : memref<10x10x128xbf16, #tpu.memory_space<vmem>>, vector<8x8x128xbf16>
    %26 = vector.shape_cast %25 : vector<8x8x128xbf16> to vector<64x128xbf16>
    %c1_38 = arith.constant 1 : index
    %c0_39 = arith.constant 0 : index
    %c0_40 = arith.constant 0 : index
    %27 = vector.load %arg5[%c1_38, %c0_39, %c0_40] : memref<9x128x128xbf16, #tpu.memory_space<vmem>>, vector<1x128x128xbf16>
    %28 = vector.shape_cast %27 : vector<1x128x128xbf16> to vector<128x128xbf16>
    %cst_41 = arith.constant dense<0.000000e+00> : vector<64x128xf32>
    %29 = tpu.matmul %26, %28, %cst_41 {dimension_numbers = #tpu.dot_dimension_numbers<[1], [0], [0], [1], [0, 0, 1, 1], [], []>} : vector<64x128xbf16>, vector<128x128xbf16>, vector<64x128xf32> -> vector<64x128xf32>
    %30 = arith.addf %24, %29 : vector<64x128xf32>
    %c0_42 = arith.constant 0 : index
    %c2 = arith.constant 2 : index
    %c0_43 = arith.constant 0 : index
    %31 = vector.load %arg8[%c0_42, %c2, %c0_43] : memref<10x10x128xbf16, #tpu.memory_space<vmem>>, vector<8x8x128xbf16>
    %32 = vector.shape_cast %31 : vector<8x8x128xbf16> to vector<64x128xbf16>
    %c2_44 = arith.constant 2 : index
    %c0_45 = arith.constant 0 : index
    %c0_46 = arith.constant 0 : index
    %33 = vector.load %arg5[%c2_44, %c0_45, %c0_46] : memref<9x128x128xbf16, #tpu.memory_space<vmem>>, vector<1x128x128xbf16>
    %34 = vector.shape_cast %33 : vector<1x128x128xbf16> to vector<128x128xbf16>
    %cst_47 = arith.constant dense<0.000000e+00> : vector<64x128xf32>
    %35 = tpu.matmul %32, %34, %cst_47 {dimension_numbers = #tpu.dot_dimension_numbers<[1], [0], [0], [1], [0, 0, 1, 1], [], []>} : vector<64x128xbf16>, vector<128x128xbf16>, vector<64x128xf32> -> vector<64x128xf32>
    %36 = arith.addf %30, %35 : vector<64x128xf32>
    %c1_48 = arith.constant 1 : index
    %c0_49 = arith.constant 0 : index
    %c0_50 = arith.constant 0 : index
    %37 = vector.load %arg8[%c1_48, %c0_49, %c0_50] : memref<10x10x128xbf16, #tpu.memory_space<vmem>>, vector<8x8x128xbf16>
    %38 = vector.shape_cast %37 : vector<8x8x128xbf16> to vector<64x128xbf16>
    %c3 = arith.constant 3 : index
    %c0_51 = arith.constant 0 : index
    %c0_52 = arith.constant 0 : index
    %39 = vector.load %arg5[%c3, %c0_51, %c0_52] : memref<9x128x128xbf16, #tpu.memory_space<vmem>>, vector<1x128x128xbf16>
    %40 = vector.shape_cast %39 : vector<1x128x128xbf16> to vector<128x128xbf16>
    %cst_53 = arith.constant dense<0.000000e+00> : vector<64x128xf32>
    %41 = tpu.matmul %38, %40, %cst_53 {dimension_numbers = #tpu.dot_dimension_numbers<[1], [0], [0], [1], [0, 0, 1, 1], [], []>} : vector<64x128xbf16>, vector<128x128xbf16>, vector<64x128xf32> -> vector<64x128xf32>
    %42 = arith.addf %36, %41 : vector<64x128xf32>
    %c1_54 = arith.constant 1 : index
    %c1_55 = arith.constant 1 : index
    %c0_56 = arith.constant 0 : index
    %43 = vector.load %arg8[%c1_54, %c1_55, %c0_56] : memref<10x10x128xbf16, #tpu.memory_space<vmem>>, vector<8x8x128xbf16>
    %44 = vector.shape_cast %43 : vector<8x8x128xbf16> to vector<64x128xbf16>
    %c4 = arith.constant 4 : index
    %c0_57 = arith.constant 0 : index
    %c0_58 = arith.constant 0 : index
    %45 = vector.load %arg5[%c4, %c0_57, %c0_58] : memref<9x128x128xbf16, #tpu.memory_space<vmem>>, vector<1x128x128xbf16>
    %46 = vector.shape_cast %45 : vector<1x128x128xbf16> to vector<128x128xbf16>
    %cst_59 = arith.constant dense<0.000000e+00> : vector<64x128xf32>
    %47 = tpu.matmul %44, %46, %cst_59 {dimension_numbers = #tpu.dot_dimension_numbers<[1], [0], [0], [1], [0, 0, 1, 1], [], []>} : vector<64x128xbf16>, vector<128x128xbf16>, vector<64x128xf32> -> vector<64x128xf32>
    %48 = arith.addf %42, %47 : vector<64x128xf32>
    %c1_60 = arith.constant 1 : index
    %c2_61 = arith.constant 2 : index
    %c0_62 = arith.constant 0 : index
    %49 = vector.load %arg8[%c1_60, %c2_61, %c0_62] : memref<10x10x128xbf16, #tpu.memory_space<vmem>>, vector<8x8x128xbf16>
    %50 = vector.shape_cast %49 : vector<8x8x128xbf16> to vector<64x128xbf16>
    %c5 = arith.constant 5 : index
    %c0_63 = arith.constant 0 : index
    %c0_64 = arith.constant 0 : index
    %51 = vector.load %arg5[%c5, %c0_63, %c0_64] : memref<9x128x128xbf16, #tpu.memory_space<vmem>>, vector<1x128x128xbf16>
    %52 = vector.shape_cast %51 : vector<1x128x128xbf16> to vector<128x128xbf16>
    %cst_65 = arith.constant dense<0.000000e+00> : vector<64x128xf32>
    %53 = tpu.matmul %50, %52, %cst_65 {dimension_numbers = #tpu.dot_dimension_numbers<[1], [0], [0], [1], [0, 0, 1, 1], [], []>} : vector<64x128xbf16>, vector<128x128xbf16>, vector<64x128xf32> -> vector<64x128xf32>
    %54 = arith.addf %48, %53 : vector<64x128xf32>
    %c2_66 = arith.constant 2 : index
    %c0_67 = arith.constant 0 : index
    %c0_68 = arith.constant 0 : index
    %55 = vector.load %arg8[%c2_66, %c0_67, %c0_68] : memref<10x10x128xbf16, #tpu.memory_space<vmem>>, vector<8x8x128xbf16>
    %56 = vector.shape_cast %55 : vector<8x8x128xbf16> to vector<64x128xbf16>
    %c6 = arith.constant 6 : index
    %c0_69 = arith.constant 0 : index
    %c0_70 = arith.constant 0 : index
    %57 = vector.load %arg5[%c6, %c0_69, %c0_70] : memref<9x128x128xbf16, #tpu.memory_space<vmem>>, vector<1x128x128xbf16>
    %58 = vector.shape_cast %57 : vector<1x128x128xbf16> to vector<128x128xbf16>
    %cst_71 = arith.constant dense<0.000000e+00> : vector<64x128xf32>
    %59 = tpu.matmul %56, %58, %cst_71 {dimension_numbers = #tpu.dot_dimension_numbers<[1], [0], [0], [1], [0, 0, 1, 1], [], []>} : vector<64x128xbf16>, vector<128x128xbf16>, vector<64x128xf32> -> vector<64x128xf32>
    %60 = arith.addf %54, %59 : vector<64x128xf32>
    %c2_72 = arith.constant 2 : index
    %c1_73 = arith.constant 1 : index
    %c0_74 = arith.constant 0 : index
    %61 = vector.load %arg8[%c2_72, %c1_73, %c0_74] : memref<10x10x128xbf16, #tpu.memory_space<vmem>>, vector<8x8x128xbf16>
    %62 = vector.shape_cast %61 : vector<8x8x128xbf16> to vector<64x128xbf16>
    %c7 = arith.constant 7 : index
    %c0_75 = arith.constant 0 : index
    %c0_76 = arith.constant 0 : index
    %63 = vector.load %arg5[%c7, %c0_75, %c0_76] : memref<9x128x128xbf16, #tpu.memory_space<vmem>>, vector<1x128x128xbf16>
    %64 = vector.shape_cast %63 : vector<1x128x128xbf16> to vector<128x128xbf16>
    %cst_77 = arith.constant dense<0.000000e+00> : vector<64x128xf32>
    %65 = tpu.matmul %62, %64, %cst_77 {dimension_numbers = #tpu.dot_dimension_numbers<[1], [0], [0], [1], [0, 0, 1, 1], [], []>} : vector<64x128xbf16>, vector<128x128xbf16>, vector<64x128xf32> -> vector<64x128xf32>
    %66 = arith.addf %60, %65 : vector<64x128xf32>
    %c2_78 = arith.constant 2 : index
    %c2_79 = arith.constant 2 : index
    %c0_80 = arith.constant 0 : index
    %67 = vector.load %arg8[%c2_78, %c2_79, %c0_80] : memref<10x10x128xbf16, #tpu.memory_space<vmem>>, vector<8x8x128xbf16>
    %68 = vector.shape_cast %67 : vector<8x8x128xbf16> to vector<64x128xbf16>
    %c8 = arith.constant 8 : index
    %c0_81 = arith.constant 0 : index
    %c0_82 = arith.constant 0 : index
    %69 = vector.load %arg5[%c8, %c0_81, %c0_82] : memref<9x128x128xbf16, #tpu.memory_space<vmem>>, vector<1x128x128xbf16>
    %70 = vector.shape_cast %69 : vector<1x128x128xbf16> to vector<128x128xbf16>
    %cst_83 = arith.constant dense<0.000000e+00> : vector<64x128xf32>
    %71 = tpu.matmul %68, %70, %cst_83 {dimension_numbers = #tpu.dot_dimension_numbers<[1], [0], [0], [1], [0, 0, 1, 1], [], []>} : vector<64x128xbf16>, vector<128x128xbf16>, vector<64x128xf32> -> vector<64x128xf32>
    %72 = arith.addf %66, %71 : vector<64x128xf32>
    %73 = vector.shape_cast %72 : vector<64x128xf32> to vector<1x8x8x128xf32>
    %c0_84 = arith.constant 0 : index
    %c0_85 = arith.constant 0 : index
    %c0_86 = arith.constant 0 : index
    %c0_87 = arith.constant 0 : index
    %74 = vector.load %arg6[%c0_84, %c0_85, %c0_86, %c0_87] : memref<1x8x8x128xf32, #tpu.memory_space<vmem>>, vector<1x8x8x128xf32>
    tpu.vector_store %arg6[%c0_84, %c0_85, %c0_86, %c0_87], %73 {strides = array<i32>} : memref<1x8x8x128xf32, #tpu.memory_space<vmem>>, vector<1x8x8x128xf32>,
    %cst_88 = arith.constant dense<0.000000e+00> : vector<128xf32>
    %75 = vector.multi_reduction <add>, %72, %cst_88 [0] : vector<64x128xf32> to vector<128xf32>
    %76 = vector.shape_cast %75 : vector<128xf32> to vector<1x128xf32>
    %77 = arith.mulf %72, %72 : vector<64x128xf32>
    %cst_89 = arith.constant dense<0.000000e+00> : vector<128xf32>
    %78 = vector.multi_reduction <add>, %77, %cst_89 [0] : vector<64x128xf32> to vector<128xf32>
    %79 = vector.shape_cast %78 : vector<128xf32> to vector<1x128xf32>
    %80 = tpu.concatenate %76, %79 in 0 : vector<1x128xf32>, vector<1x128xf32> -> vector<2x128xf32>
    %81 = vector.shape_cast %80 : vector<2x128xf32> to vector<1x1x2x128xf32>
    %c0_90 = arith.constant 0 : index
    %c0_91 = arith.constant 0 : index
    %c0_92 = arith.constant 0 : index
    %c0_93 = arith.constant 0 : index
    %82 = vector.load %arg7[%c0_90, %c0_91, %c0_92, %c0_93] : memref<1x1x2x128xf32, #tpu.memory_space<vmem>>, vector<1x1x2x128xf32>
    tpu.vector_store %arg7[%c0_90, %c0_91, %c0_92, %c0_93], %81 {strides = array<i32>} : memref<1x1x2x128xf32, #tpu.memory_space<vmem>>, vector<1x1x2x128xf32>,
    return
  }
  func.func @transform_0(%arg0: i32, %arg1: i32) -> (i32, i32, i32, i32) {
    %c8_i32 = arith.constant 8 : i32
    %0 = arith.muli %arg1, %c8_i32 : i32
    %c1_i32 = arith.constant 1 : i32
    %1 = arith.subi %0, %c1_i32 : i32
    %c0_i32 = arith.constant 0 : i32
    %2 = arith.maxsi %1, %c0_i32 : i32
    %c0_i32_0 = arith.constant 0 : i32
    %c0_i32_1 = arith.constant 0 : i32
    %c0_i32_2 = arith.constant 0 : i32
    return %arg0, %2, %c0_i32_0, %c0_i32_1 : i32, i32, i32, i32
  }
  func.func @transform_1(%arg0: i32, %arg1: i32) -> (i32, i32, i32, i32) {
    %c0_i32 = arith.constant 0 : i32
    %c0_i32_0 = arith.constant 0 : i32
    %c0_i32_1 = arith.constant 0 : i32
    return %arg0, %arg1, %c0_i32, %c0_i32_0 : i32, i32, i32, i32
  }
  func.func @transform_2(%arg0: i32, %arg1: i32) -> (i32, i32, i32, i32) {
    %c8_i32 = arith.constant 8 : i32
    %0 = arith.muli %arg1, %c8_i32 : i32
    %c8_i32_0 = arith.constant 8 : i32
    %1 = arith.addi %0, %c8_i32_0 : i32
    %c7_i32 = arith.constant 7 : i32
    %2 = arith.minsi %1, %c7_i32 : i32
    %c0_i32 = arith.constant 0 : i32
    %c0_i32_1 = arith.constant 0 : i32
    %c0_i32_2 = arith.constant 0 : i32
    return %arg0, %2, %c0_i32, %c0_i32_1 : i32, i32, i32, i32
  }
  func.func @transform_3(%arg0: i32, %arg1: i32) -> (i32, i32, i32) {
    %c0_i32 = arith.constant 0 : i32
    %c0_i32_0 = arith.constant 0 : i32
    %c0_i32_1 = arith.constant 0 : i32
    %c0_i32_2 = arith.constant 0 : i32
    return %c0_i32, %c0_i32_0, %c0_i32_1 : i32, i32, i32
  }
  func.func @transform_4(%arg0: i32, %arg1: i32) -> (i32, i32, i32, i32) {
    %c0_i32 = arith.constant 0 : i32
    %c0_i32_0 = arith.constant 0 : i32
    %c0_i32_1 = arith.constant 0 : i32
    return %arg0, %arg1, %c0_i32, %c0_i32_0 : i32, i32, i32, i32
  }
  func.func @transform_5(%arg0: i32, %arg1: i32) -> (i32, i32, i32, i32) {
    %c0_i32 = arith.constant 0 : i32
    %c0_i32_0 = arith.constant 0 : i32
    %c0_i32_1 = arith.constant 0 : i32
    return %arg0, %arg1, %c0_i32, %c0_i32_0 : i32, i32, i32, i32
  }
}

module attributes {stable_mosaic.version = 11 : i64} {
  func.func @_bn_lrelu_kernel(%arg0: i32, %arg1: memref<128x128xf32, #tpu.memory_space<vmem>>, %arg2: memref<2x1x2x128xf32, #tpu.memory_space<vmem>>, %arg3: memref<1x128xf32, #tpu.memory_space<vmem>>, %arg4: memref<1x128xf32, #tpu.memory_space<vmem>>, %arg5: memref<128x128xf32, #tpu.memory_space<vmem>>) attributes {dimension_semantics = [#tpu.dimension_semantics<parallel>], iteration_bounds = array<i64: 1>, scalar_prefetch = 0 : i64, scratch_operands = 0 : i64, tpu.core_type = #tpu.core_type<tc>, window_params = [{transform_indices = @transform_0, window_bounds = array<i64: 128, 128>}, {pipeline_mode = #tpu.pipeline_mode<synchronous>, transform_indices = @transform_1, window_bounds = array<i64: 2, 1, 2, 128>}, {pipeline_mode = #tpu.pipeline_mode<synchronous>, transform_indices = @transform_2, window_bounds = array<i64: 1, 128>}, {pipeline_mode = #tpu.pipeline_mode<synchronous>, transform_indices = @transform_3, window_bounds = array<i64: 1, 128>}, {transform_indices = @transform_4, window_bounds = array<i64: 128, 128>}]} {
    %c0 = arith.constant 0 : index
    %c0_0 = arith.constant 0 : index
    %c0_1 = arith.constant 0 : index
    %c0_2 = arith.constant 0 : index
    %0 = vector.load %arg2[%c0, %c0_0, %c0_1, %c0_2] : memref<2x1x2x128xf32, #tpu.memory_space<vmem>>, vector<2x1x2x128xf32>
    %c0_3 = arith.constant 0 : index
    %c0_4 = arith.constant 0 : index
    %1 = vector.load %arg3[%c0_3, %c0_4] : memref<1x128xf32, #tpu.memory_space<vmem>>, vector<1x128xf32>
    %c0_5 = arith.constant 0 : index
    %c0_6 = arith.constant 0 : index
    %2 = vector.load %arg4[%c0_5, %c0_6] : memref<1x128xf32, #tpu.memory_space<vmem>>, vector<1x128xf32>
    %cst = arith.constant dense<0.000000e+00> : vector<2x128xf32>
    %3 = vector.multi_reduction <add>, %0, %cst [0, 1] : vector<2x1x2x128xf32> to vector<2x128xf32>
    %4 = vector.extract_strided_slice %3 {offsets = [0, 0], sizes = [1, 128], strides = [1, 1]} : vector<2x128xf32> to vector<1x128xf32>
    %cst_7 = arith.constant 7.812500e-03 : f32
    %5 = vector.broadcast %cst_7 : f32 to vector<1x128xf32>
    %6 = arith.mulf %4, %5 : vector<1x128xf32>
    %7 = vector.extract_strided_slice %3 {offsets = [1, 0], sizes = [1, 128], strides = [1, 1]} : vector<2x128xf32> to vector<1x128xf32>
    %cst_8 = arith.constant 7.812500e-03 : f32
    %8 = vector.broadcast %cst_8 : f32 to vector<1x128xf32>
    %9 = arith.mulf %7, %8 : vector<1x128xf32>
    %10 = arith.mulf %6, %6 : vector<1x128xf32>
    %11 = arith.subf %9, %10 : vector<1x128xf32>
    %cst_9 = arith.constant 0.000000e+00 : f32
    %12 = vector.broadcast %cst_9 : f32 to vector<1x128xf32>
    %13 = arith.maximumf %11, %12 : vector<1x128xf32>
    %cst_10 = arith.constant 9.99999974E-6 : f32
    %14 = vector.broadcast %cst_10 : f32 to vector<1x128xf32>
    %15 = arith.addf %13, %14 : vector<1x128xf32>
    %16 = math.rsqrt %15 : vector<1x128xf32>
    %17 = arith.mulf %1, %16 : vector<1x128xf32>
    %18 = arith.mulf %6, %17 : vector<1x128xf32>
    %19 = arith.subf %2, %18 : vector<1x128xf32>
    %c0_11 = arith.constant 0 : index
    %c0_12 = arith.constant 0 : index
    %20 = vector.load %arg1[%c0_11, %c0_12] : memref<128x128xf32, #tpu.memory_space<vmem>>, vector<128x128xf32>
    %21 = vector.broadcast %17 : vector<1x128xf32> to vector<128x128xf32>
    %22 = arith.mulf %20, %21 : vector<128x128xf32>
    %23 = vector.broadcast %19 : vector<1x128xf32> to vector<128x128xf32>
    %24 = arith.addf %22, %23 : vector<128x128xf32>
    %cst_13 = arith.constant 0.000000e+00 : f32
    %25 = vector.broadcast %cst_13 : f32 to vector<128x128xf32>
    %26 = arith.cmpf oge, %24, %25 : vector<128x128xf32>
    %cst_14 = arith.constant 0.00999999977 : f32
    %27 = vector.broadcast %cst_14 : f32 to vector<128x128xf32>
    %28 = arith.mulf %27, %24 : vector<128x128xf32>
    %29 = arith.select %26, %24, %28 : vector<128x128xi1>, vector<128x128xf32>
    %c0_15 = arith.constant 0 : index
    %c0_16 = arith.constant 0 : index
    %30 = vector.load %arg5[%c0_15, %c0_16] : memref<128x128xf32, #tpu.memory_space<vmem>>, vector<128x128xf32>
    tpu.vector_store %arg5[%c0_15, %c0_16], %29 {strides = array<i32>} : memref<128x128xf32, #tpu.memory_space<vmem>>, vector<128x128xf32>,
    return
  }
  func.func @transform_0(%arg0: i32) -> (i32, i32) {
    %c0_i32 = arith.constant 0 : i32
    %c0_i32_0 = arith.constant 0 : i32
    return %arg0, %c0_i32 : i32, i32
  }
  func.func @transform_1(%arg0: i32) -> (i32, i32, i32, i32) {
    %c0_i32 = arith.constant 0 : i32
    %c0_i32_0 = arith.constant 0 : i32
    %c0_i32_1 = arith.constant 0 : i32
    %c0_i32_2 = arith.constant 0 : i32
    %c0_i32_3 = arith.constant 0 : i32
    return %c0_i32, %c0_i32_0, %c0_i32_1, %c0_i32_2 : i32, i32, i32, i32
  }
  func.func @transform_2(%arg0: i32) -> (i32, i32) {
    %c0_i32 = arith.constant 0 : i32
    %c0_i32_0 = arith.constant 0 : i32
    %c0_i32_1 = arith.constant 0 : i32
    return %c0_i32, %c0_i32_0 : i32, i32
  }
  func.func @transform_3(%arg0: i32) -> (i32, i32) {
    %c0_i32 = arith.constant 0 : i32
    %c0_i32_0 = arith.constant 0 : i32
    %c0_i32_1 = arith.constant 0 : i32
    return %c0_i32, %c0_i32_0 : i32, i32
  }
  func.func @transform_4(%arg0: i32) -> (i32, i32) {
    %c0_i32 = arith.constant 0 : i32
    %c0_i32_0 = arith.constant 0 : i32
    return %arg0, %c0_i32 : i32, i32
  }
}

module attributes {stable_mosaic.version = 11 : i64} {
  func.func @_bn_lrelu_conv_stats_kernel(%arg0: i32, %arg1: i32, %arg2: memref<1x1x8x128xf32, #tpu.memory_space<vmem>>, %arg3: memref<1x8x8x128xf32, #tpu.memory_space<vmem>>, %arg4: memref<1x1x8x128xf32, #tpu.memory_space<vmem>>, %arg5: memref<2x1x2x128xf32, #tpu.memory_space<vmem>>, %arg6: memref<1x128xf32, #tpu.memory_space<vmem>>, %arg7: memref<1x128xf32, #tpu.memory_space<vmem>>, %arg8: memref<9x128x128xbf16, #tpu.memory_space<vmem>>, %arg9: memref<1x8x8x128xf32, #tpu.memory_space<vmem>>, %arg10: memref<1x1x2x128xf32, #tpu.memory_space<vmem>>, %arg11: memref<10x10x128xbf16, #tpu.memory_space<vmem>>) attributes {dimension_semantics = [#tpu.dimension_semantics<parallel>, #tpu.dimension_semantics<parallel>], iteration_bounds = array<i64: 2, 1>, scalar_prefetch = 0 : i64, scratch_operands = 1 : i64, tpu.core_type = #tpu.core_type<tc>, window_params = [{transform_indices = @transform_0, window_bounds = array<i64: 1, 1, 8, 128>}, {transform_indices = @transform_1, window_bounds = array<i64: 1, 8, 8, 128>}, {transform_indices = @transform_2, window_bounds = array<i64: 1, 1, 8, 128>}, {pipeline_mode = #tpu.pipeline_mode<synchronous>, transform_indices = @transform_3, window_bounds = array<i64: 2, 1, 2, 128>}, {pipeline_mode = #tpu.pipeline_mode<synchronous>, transform_indices = @transform_4, window_bounds = array<i64: 1, 128>}, {pipeline_mode = #tpu.pipeline_mode<synchronous>, transform_indices = @transform_5, window_bounds = array<i64: 1, 128>}, {pipeline_mode = #tpu.pipeline_mode<synchronous>, transform_indices = @transform_6, window_bounds = array<i64: 9, 128, 128>}, {transform_indices = @transform_7, window_bounds = array<i64: 1, 8, 8, 128>}, {transform_indices = @transform_8, window_bounds = array<i64: 1, 1, 2, 128>}]} {
    %c0 = arith.constant 0 : index
    %c0_0 = arith.constant 0 : index
    %c0_1 = arith.constant 0 : index
    %c0_2 = arith.constant 0 : index
    %0 = vector.load %arg5[%c0, %c0_0, %c0_1, %c0_2] : memref<2x1x2x128xf32, #tpu.memory_space<vmem>>, vector<2x1x2x128xf32>
    %c0_3 = arith.constant 0 : index
    %c0_4 = arith.constant 0 : index
    %1 = vector.load %arg6[%c0_3, %c0_4] : memref<1x128xf32, #tpu.memory_space<vmem>>, vector<1x128xf32>
    %c0_5 = arith.constant 0 : index
    %c0_6 = arith.constant 0 : index
    %2 = vector.load %arg7[%c0_5, %c0_6] : memref<1x128xf32, #tpu.memory_space<vmem>>, vector<1x128xf32>
    %cst = arith.constant dense<0.000000e+00> : vector<2x128xf32>
    %3 = vector.multi_reduction <add>, %0, %cst [0, 1] : vector<2x1x2x128xf32> to vector<2x128xf32>
    %4 = vector.extract_strided_slice %3 {offsets = [0, 0], sizes = [1, 128], strides = [1, 1]} : vector<2x128xf32> to vector<1x128xf32>
    %cst_7 = arith.constant 7.812500e-03 : f32
    %5 = vector.broadcast %cst_7 : f32 to vector<1x128xf32>
    %6 = arith.mulf %4, %5 : vector<1x128xf32>
    %7 = vector.extract_strided_slice %3 {offsets = [1, 0], sizes = [1, 128], strides = [1, 1]} : vector<2x128xf32> to vector<1x128xf32>
    %cst_8 = arith.constant 7.812500e-03 : f32
    %8 = vector.broadcast %cst_8 : f32 to vector<1x128xf32>
    %9 = arith.mulf %7, %8 : vector<1x128xf32>
    %10 = arith.mulf %6, %6 : vector<1x128xf32>
    %11 = arith.subf %9, %10 : vector<1x128xf32>
    %cst_9 = arith.constant 0.000000e+00 : f32
    %12 = vector.broadcast %cst_9 : f32 to vector<1x128xf32>
    %13 = arith.maximumf %11, %12 : vector<1x128xf32>
    %cst_10 = arith.constant 9.99999974E-6 : f32
    %14 = vector.broadcast %cst_10 : f32 to vector<1x128xf32>
    %15 = arith.addf %13, %14 : vector<1x128xf32>
    %16 = math.rsqrt %15 : vector<1x128xf32>
    %17 = arith.mulf %1, %16 : vector<1x128xf32>
    %18 = arith.mulf %6, %17 : vector<1x128xf32>
    %19 = arith.subf %2, %18 : vector<1x128xf32>
    %20 = vector.shape_cast %17 : vector<1x128xf32> to vector<1x1x128xf32>
    %21 = vector.shape_cast %19 : vector<1x128xf32> to vector<1x1x128xf32>
    %c0_11 = arith.constant 0 : index
    %c0_12 = arith.constant 0 : index
    %c0_13 = arith.constant 0 : index
    %c0_14 = arith.constant 0 : index
    %22 = vector.load %arg2[%c0_11, %c0_12, %c0_13, %c0_14] : memref<1x1x8x128xf32, #tpu.memory_space<vmem>>, vector<1x1x8x128xf32>
    %23 = vector.shape_cast %22 : vector<1x1x8x128xf32> to vector<1x8x128xf32>
    %24 = vector.broadcast %20 : vector<1x1x128xf32> to vector<1x8x128xf32>
    %25 = arith.mulf %23, %24 : vector<1x8x128xf32>
    %26 = vector.broadcast %21 : vector<1x1x128xf32> to vector<1x8x128xf32>
    %27 = arith.addf %25, %26 : vector<1x8x128xf32>
    %cst_15 = arith.constant 0.000000e+00 : f32
    %28 = vector.broadcast %cst_15 : f32 to vector<1x8x128xf32>
    %29 = arith.cmpf oge, %27, %28 : vector<1x8x128xf32>
    %cst_16 = arith.constant 0.00999999977 : f32
    %30 = vector.broadcast %cst_16 : f32 to vector<1x8x128xf32>
    %31 = arith.mulf %30, %27 : vector<1x8x128xf32>
    %32 = arith.select %29, %27, %31 : vector<1x8x128xi1>, vector<1x8x128xf32>
    %33 = arith.truncf %32 : vector<1x8x128xf32> to vector<1x8x128xbf16>
    %c0_17 = arith.constant 0 : index
    %c1 = arith.constant 1 : index
    %c0_18 = arith.constant 0 : index
    %34 = vector.load %arg11[%c0_17, %c1, %c0_18] : memref<10x10x128xbf16, #tpu.memory_space<vmem>>, vector<1x8x128xbf16>
    tpu.vector_store %arg11[%c0_17, %c1, %c0_18], %33 {strides = array<i32>} : memref<10x10x128xbf16, #tpu.memory_space<vmem>>, vector<1x8x128xbf16>,
    %c0_19 = arith.constant 0 : index
    %c0_20 = arith.constant 0 : index
    %c0_21 = arith.constant 0 : index
    %c0_22 = arith.constant 0 : index
    %35 = vector.load %arg3[%c0_19, %c0_20, %c0_21, %c0_22] : memref<1x8x8x128xf32, #tpu.memory_space<vmem>>, vector<1x8x8x128xf32>
    %36 = vector.shape_cast %35 : vector<1x8x8x128xf32> to vector<8x8x128xf32>
    %37 = vector.broadcast %20 : vector<1x1x128xf32> to vector<8x8x128xf32>
    %38 = arith.mulf %36, %37 : vector<8x8x128xf32>
    %39 = vector.broadcast %21 : vector<1x1x128xf32> to vector<8x8x128xf32>
    %40 = arith.addf %38, %39 : vector<8x8x128xf32>
    %cst_23 = arith.constant 0.000000e+00 : f32
    %41 = vector.broadcast %cst_23 : f32 to vector<8x8x128xf32>
    %42 = arith.cmpf oge, %40, %41 : vector<8x8x128xf32>
    %cst_24 = arith.constant 0.00999999977 : f32
    %43 = vector.broadcast %cst_24 : f32 to vector<8x8x128xf32>
    %44 = arith.mulf %43, %40 : vector<8x8x128xf32>
    %45 = arith.select %42, %40, %44 : vector<8x8x128xi1>, vector<8x8x128xf32>
    %46 = arith.truncf %45 : vector<8x8x128xf32> to vector<8x8x128xbf16>
    %c1_25 = arith.constant 1 : index
    %c1_26 = arith.constant 1 : index
    %c0_27 = arith.constant 0 : index
    %47 = vector.load %arg11[%c1_25, %c1_26, %c0_27] : memref<10x10x128xbf16, #tpu.memory_space<vmem>>, vector<8x8x128xbf16>
    tpu.vector_store %arg11[%c1_25, %c1_26, %c0_27], %46 {strides = array<i32>} : memref<10x10x128xbf16, #tpu.memory_space<vmem>>, vector<8x8x128xbf16>,
    %c0_28 = arith.constant 0 : index
    %c0_29 = arith.constant 0 : index
    %c0_30 = arith.constant 0 : index
    %c0_31 = arith.constant 0 : index
    %48 = vector.load %arg4[%c0_28, %c0_29, %c0_30, %c0_31] : memref<1x1x8x128xf32, #tpu.memory_space<vmem>>, vector<1x1x8x128xf32>
    %49 = vector.shape_cast %48 : vector<1x1x8x128xf32> to vector<1x8x128xf32>
    %50 = vector.broadcast %20 : vector<1x1x128xf32> to vector<1x8x128xf32>
    %51 = arith.mulf %49, %50 : vector<1x8x128xf32>
    %52 = vector.broadcast %21 : vector<1x1x128xf32> to vector<1x8x128xf32>
    %53 = arith.addf %51, %52 : vector<1x8x128xf32>
    %cst_32 = arith.constant 0.000000e+00 : f32
    %54 = vector.broadcast %cst_32 : f32 to vector<1x8x128xf32>
    %55 = arith.cmpf oge, %53, %54 : vector<1x8x128xf32>
    %cst_33 = arith.constant 0.00999999977 : f32
    %56 = vector.broadcast %cst_33 : f32 to vector<1x8x128xf32>
    %57 = arith.mulf %56, %53 : vector<1x8x128xf32>
    %58 = arith.select %55, %53, %57 : vector<1x8x128xi1>, vector<1x8x128xf32>
    %59 = arith.truncf %58 : vector<1x8x128xf32> to vector<1x8x128xbf16>
    %c9 = arith.constant 9 : index
    %c1_34 = arith.constant 1 : index
    %c0_35 = arith.constant 0 : index
    %60 = vector.load %arg11[%c9, %c1_34, %c0_35] : memref<10x10x128xbf16, #tpu.memory_space<vmem>>, vector<1x8x128xbf16>
    tpu.vector_store %arg11[%c9, %c1_34, %c0_35], %59 {strides = array<i32>} : memref<10x10x128xbf16, #tpu.memory_space<vmem>>, vector<1x8x128xbf16>,
    %cst_36 = arith.constant 0.000000e+00 : bf16
    %61 = vector.broadcast %cst_36 : bf16 to vector<10x1x128xbf16>
    %c0_37 = arith.constant 0 : index
    %c0_38 = arith.constant 0 : index
    %c0_39 = arith.constant 0 : index
    %62 = vector.load %arg11[%c0_37, %c0_38, %c0_39] : memref<10x10x128xbf16, #tpu.memory_space<vmem>>, vector<10x1x128xbf16>
    tpu.vector_store %arg11[%c0_37, %c0_38, %c0_39], %61 {strides = array<i32>} : memref<10x10x128xbf16, #tpu.memory_space<vmem>>, vector<10x1x128xbf16>,
    %c0_40 = arith.constant 0 : index
    %c9_41 = arith.constant 9 : index
    %c0_42 = arith.constant 0 : index
    %63 = vector.load %arg11[%c0_40, %c9_41, %c0_42] : memref<10x10x128xbf16, #tpu.memory_space<vmem>>, vector<10x1x128xbf16>
    tpu.vector_store %arg11[%c0_40, %c9_41, %c0_42], %61 {strides = array<i32>} : memref<10x10x128xbf16, #tpu.memory_space<vmem>>, vector<10x1x128xbf16>,
    %c0_i32 = arith.constant 0 : i32
    %64 = arith.cmpi eq, %arg1, %c0_i32 : i32
    %65 = arith.extui %64 : i1 to i32
    %c0_i32_43 = arith.constant 0 : i32
    %66 = arith.cmpi ne, %65, %c0_i32_43 : i32
    scf.if %66 {
      %cst_113 = arith.constant 0.000000e+00 : bf16
      %135 = vector.broadcast %cst_113 : bf16 to vector<1x10x128xbf16>
      %c0_114 = arith.constant 0 : index
      %c0_115 = arith.constant 0 : index
      %c0_116 = arith.constant 0 : index
      %136 = vector.load %arg11[%c0_114, %c0_115, %c0_116] : memref<10x10x128xbf16, #tpu.memory_space<vmem>>, vector<1x10x128xbf16>
      tpu.vector_store %arg11[%c0_114, %c0_115, %c0_116], %135 {strides = array<i32>} : memref<10x10x128xbf16, #tpu.memory_space<vmem>>, vector<1x10x128xbf16>,
    } else {
    }
    %c0_i32_44 = arith.constant 0 : i32
    %67 = arith.cmpi eq, %arg1, %c0_i32_44 : i32
    %68 = arith.extui %67 : i1 to i32
    %c0_i32_45 = arith.constant 0 : i32
    %69 = arith.cmpi ne, %68, %c0_i32_45 : i32
    scf.if %69 {
      %cst_113 = arith.constant 0.000000e+00 : bf16
      %135 = vector.broadcast %cst_113 : bf16 to vector<1x10x128xbf16>
      %c9_114 = arith.constant 9 : index
      %c0_115 = arith.constant 0 : index
      %c0_116 = arith.constant 0 : index
      %136 = vector.load %arg11[%c9_114, %c0_115, %c0_116] : memref<10x10x128xbf16, #tpu.memory_space<vmem>>, vector<1x10x128xbf16>
      tpu.vector_store %arg11[%c9_114, %c0_115, %c0_116], %135 {strides = array<i32>} : memref<10x10x128xbf16, #tpu.memory_space<vmem>>, vector<1x10x128xbf16>,
    } else {
    }
    %cst_46 = arith.constant 0.000000e+00 : f32
    %70 = vector.broadcast %cst_46 : f32 to vector<64x128xf32>
    %c0_47 = arith.constant 0 : index
    %c0_48 = arith.constant 0 : index
    %c0_49 = arith.constant 0 : index
    %71 = vector.load %arg11[%c0_47, %c0_48, %c0_49] : memref<10x10x128xbf16, #tpu.memory_space<vmem>>, vector<8x8x128xbf16>
    %72 = vector.shape_cast %71 : vector<8x8x128xbf16> to vector<64x128xbf16>
    %c0_50 = arith.constant 0 : index
    %c0_51 = arith.constant 0 : index
    %c0_52 = arith.constant 0 : index
    %73 = vector.load %arg8[%c0_50, %c0_51, %c0_52] : memref<9x128x128xbf16, #tpu.memory_space<vmem>>, vector<1x128x128xbf16>
    %74 = vector.shape_cast %73 : vector<1x128x128xbf16> to vector<128x128xbf16>
    %cst_53 = arith.constant dense<0.000000e+00> : vector<64x128xf32>
    %75 = tpu.matmul %72, %74, %cst_53 {dimension_numbers = #tpu.dot_dimension_numbers<[1], [0], [0], [1], [0, 0, 1, 1], [], []>} : vector<64x128xbf16>, vector<128x128xbf16>, vector<64x128xf32> -> vector<64x128xf32>
    %76 = arith.addf %70, %75 : vector<64x128xf32>
    %c0_54 = arith.constant 0 : index
    %c1_55 = arith.constant 1 : index
    %c0_56 = arith.constant 0 : index
    %77 = vector.load %arg11[%c0_54, %c1_55, %c0_56] : memref<10x10x128xbf16, #tpu.memory_space<vmem>>, vector<8x8x128xbf16>
    %78 = vector.shape_cast %77 : vector<8x8x128xbf16> to vector<64x128xbf16>
    %c1_57 = arith.constant 1 : index
    %c0_58 = arith.constant 0 : index
    %c0_59 = arith.constant 0 : index
    %79 = vector.load %arg8[%c1_57, %c0_58, %c0_59] : memref<9x128x128xbf16, #tpu.memory_space<vmem>>, vector<1x128x128xbf16>
    %80 = vector.shape_cast %79 : vector<1x128x128xbf16> to vector<128x128xbf16>
    %cst_60 = arith.constant dense<0.000000e+00> : vector<64x128xf32>
    %81 = tpu.matmul %78, %80, %cst_60 {dimension_numbers = #tpu.dot_dimension_numbers<[1], [0], [0], [1], [0, 0, 1, 1], [], []>} : vector<64x128xbf16>, vector<128x128xbf16>, vector<64x128xf32> -> vector<64x128xf32>
    %82 = arith.addf %76, %81 : vector<64x128xf32>
    %c0_61 = arith.constant 0 : index
    %c2 = arith.constant 2 : index
    %c0_62 = arith.constant 0 : index
    %83 = vector.load %arg11[%c0_61, %c2, %c0_62] : memref<10x10x128xbf16, #tpu.memory_space<vmem>>, vector<8x8x128xbf16>
    %84 = vector.shape_cast %83 : vector<8x8x128xbf16> to vector<64x128xbf16>
    %c2_63 = arith.constant 2 : index
    %c0_64 = arith.constant 0 : index
    %c0_65 = arith.constant 0 : index
    %85 = vector.load %arg8[%c2_63, %c0_64, %c0_65] : memref<9x128x128xbf16, #tpu.memory_space<vmem>>, vector<1x128x128xbf16>
    %86 = vector.shape_cast %85 : vector<1x128x128xbf16> to vector<128x128xbf16>
    %cst_66 = arith.constant dense<0.000000e+00> : vector<64x128xf32>
    %87 = tpu.matmul %84, %86, %cst_66 {dimension_numbers = #tpu.dot_dimension_numbers<[1], [0], [0], [1], [0, 0, 1, 1], [], []>} : vector<64x128xbf16>, vector<128x128xbf16>, vector<64x128xf32> -> vector<64x128xf32>
    %88 = arith.addf %82, %87 : vector<64x128xf32>
    %c1_67 = arith.constant 1 : index
    %c0_68 = arith.constant 0 : index
    %c0_69 = arith.constant 0 : index
    %89 = vector.load %arg11[%c1_67, %c0_68, %c0_69] : memref<10x10x128xbf16, #tpu.memory_space<vmem>>, vector<8x8x128xbf16>
    %90 = vector.shape_cast %89 : vector<8x8x128xbf16> to vector<64x128xbf16>
    %c3 = arith.constant 3 : index
    %c0_70 = arith.constant 0 : index
    %c0_71 = arith.constant 0 : index
    %91 = vector.load %arg8[%c3, %c0_70, %c0_71] : memref<9x128x128xbf16, #tpu.memory_space<vmem>>, vector<1x128x128xbf16>
    %92 = vector.shape_cast %91 : vector<1x128x128xbf16> to vector<128x128xbf16>
    %cst_72 = arith.constant dense<0.000000e+00> : vector<64x128xf32>
    %93 = tpu.matmul %90, %92, %cst_72 {dimension_numbers = #tpu.dot_dimension_numbers<[1], [0], [0], [1], [0, 0, 1, 1], [], []>} : vector<64x128xbf16>, vector<128x128xbf16>, vector<64x128xf32> -> vector<64x128xf32>
    %94 = arith.addf %88, %93 : vector<64x128xf32>
    %c1_73 = arith.constant 1 : index
    %c1_74 = arith.constant 1 : index
    %c0_75 = arith.constant 0 : index
    %95 = vector.load %arg11[%c1_73, %c1_74, %c0_75] : memref<10x10x128xbf16, #tpu.memory_space<vmem>>, vector<8x8x128xbf16>
    %96 = vector.shape_cast %95 : vector<8x8x128xbf16> to vector<64x128xbf16>
    %c4 = arith.constant 4 : index
    %c0_76 = arith.constant 0 : index
    %c0_77 = arith.constant 0 : index
    %97 = vector.load %arg8[%c4, %c0_76, %c0_77] : memref<9x128x128xbf16, #tpu.memory_space<vmem>>, vector<1x128x128xbf16>
    %98 = vector.shape_cast %97 : vector<1x128x128xbf16> to vector<128x128xbf16>
    %cst_78 = arith.constant dense<0.000000e+00> : vector<64x128xf32>
    %99 = tpu.matmul %96, %98, %cst_78 {dimension_numbers = #tpu.dot_dimension_numbers<[1], [0], [0], [1], [0, 0, 1, 1], [], []>} : vector<64x128xbf16>, vector<128x128xbf16>, vector<64x128xf32> -> vector<64x128xf32>
    %100 = arith.addf %94, %99 : vector<64x128xf32>
    %c1_79 = arith.constant 1 : index
    %c2_80 = arith.constant 2 : index
    %c0_81 = arith.constant 0 : index
    %101 = vector.load %arg11[%c1_79, %c2_80, %c0_81] : memref<10x10x128xbf16, #tpu.memory_space<vmem>>, vector<8x8x128xbf16>
    %102 = vector.shape_cast %101 : vector<8x8x128xbf16> to vector<64x128xbf16>
    %c5 = arith.constant 5 : index
    %c0_82 = arith.constant 0 : index
    %c0_83 = arith.constant 0 : index
    %103 = vector.load %arg8[%c5, %c0_82, %c0_83] : memref<9x128x128xbf16, #tpu.memory_space<vmem>>, vector<1x128x128xbf16>
    %104 = vector.shape_cast %103 : vector<1x128x128xbf16> to vector<128x128xbf16>
    %cst_84 = arith.constant dense<0.000000e+00> : vector<64x128xf32>
    %105 = tpu.matmul %102, %104, %cst_84 {dimension_numbers = #tpu.dot_dimension_numbers<[1], [0], [0], [1], [0, 0, 1, 1], [], []>} : vector<64x128xbf16>, vector<128x128xbf16>, vector<64x128xf32> -> vector<64x128xf32>
    %106 = arith.addf %100, %105 : vector<64x128xf32>
    %c2_85 = arith.constant 2 : index
    %c0_86 = arith.constant 0 : index
    %c0_87 = arith.constant 0 : index
    %107 = vector.load %arg11[%c2_85, %c0_86, %c0_87] : memref<10x10x128xbf16, #tpu.memory_space<vmem>>, vector<8x8x128xbf16>
    %108 = vector.shape_cast %107 : vector<8x8x128xbf16> to vector<64x128xbf16>
    %c6 = arith.constant 6 : index
    %c0_88 = arith.constant 0 : index
    %c0_89 = arith.constant 0 : index
    %109 = vector.load %arg8[%c6, %c0_88, %c0_89] : memref<9x128x128xbf16, #tpu.memory_space<vmem>>, vector<1x128x128xbf16>
    %110 = vector.shape_cast %109 : vector<1x128x128xbf16> to vector<128x128xbf16>
    %cst_90 = arith.constant dense<0.000000e+00> : vector<64x128xf32>
    %111 = tpu.matmul %108, %110, %cst_90 {dimension_numbers = #tpu.dot_dimension_numbers<[1], [0], [0], [1], [0, 0, 1, 1], [], []>} : vector<64x128xbf16>, vector<128x128xbf16>, vector<64x128xf32> -> vector<64x128xf32>
    %112 = arith.addf %106, %111 : vector<64x128xf32>
    %c2_91 = arith.constant 2 : index
    %c1_92 = arith.constant 1 : index
    %c0_93 = arith.constant 0 : index
    %113 = vector.load %arg11[%c2_91, %c1_92, %c0_93] : memref<10x10x128xbf16, #tpu.memory_space<vmem>>, vector<8x8x128xbf16>
    %114 = vector.shape_cast %113 : vector<8x8x128xbf16> to vector<64x128xbf16>
    %c7 = arith.constant 7 : index
    %c0_94 = arith.constant 0 : index
    %c0_95 = arith.constant 0 : index
    %115 = vector.load %arg8[%c7, %c0_94, %c0_95] : memref<9x128x128xbf16, #tpu.memory_space<vmem>>, vector<1x128x128xbf16>
    %116 = vector.shape_cast %115 : vector<1x128x128xbf16> to vector<128x128xbf16>
    %cst_96 = arith.constant dense<0.000000e+00> : vector<64x128xf32>
    %117 = tpu.matmul %114, %116, %cst_96 {dimension_numbers = #tpu.dot_dimension_numbers<[1], [0], [0], [1], [0, 0, 1, 1], [], []>} : vector<64x128xbf16>, vector<128x128xbf16>, vector<64x128xf32> -> vector<64x128xf32>
    %118 = arith.addf %112, %117 : vector<64x128xf32>
    %c2_97 = arith.constant 2 : index
    %c2_98 = arith.constant 2 : index
    %c0_99 = arith.constant 0 : index
    %119 = vector.load %arg11[%c2_97, %c2_98, %c0_99] : memref<10x10x128xbf16, #tpu.memory_space<vmem>>, vector<8x8x128xbf16>
    %120 = vector.shape_cast %119 : vector<8x8x128xbf16> to vector<64x128xbf16>
    %c8 = arith.constant 8 : index
    %c0_100 = arith.constant 0 : index
    %c0_101 = arith.constant 0 : index
    %121 = vector.load %arg8[%c8, %c0_100, %c0_101] : memref<9x128x128xbf16, #tpu.memory_space<vmem>>, vector<1x128x128xbf16>
    %122 = vector.shape_cast %121 : vector<1x128x128xbf16> to vector<128x128xbf16>
    %cst_102 = arith.constant dense<0.000000e+00> : vector<64x128xf32>
    %123 = tpu.matmul %120, %122, %cst_102 {dimension_numbers = #tpu.dot_dimension_numbers<[1], [0], [0], [1], [0, 0, 1, 1], [], []>} : vector<64x128xbf16>, vector<128x128xbf16>, vector<64x128xf32> -> vector<64x128xf32>
    %124 = arith.addf %118, %123 : vector<64x128xf32>
    %125 = vector.shape_cast %124 : vector<64x128xf32> to vector<1x8x8x128xf32>
    %c0_103 = arith.constant 0 : index
    %c0_104 = arith.constant 0 : index
    %c0_105 = arith.constant 0 : index
    %c0_106 = arith.constant 0 : index
    %126 = vector.load %arg9[%c0_103, %c0_104, %c0_105, %c0_106] : memref<1x8x8x128xf32, #tpu.memory_space<vmem>>, vector<1x8x8x128xf32>
    tpu.vector_store %arg9[%c0_103, %c0_104, %c0_105, %c0_106], %125 {strides = array<i32>} : memref<1x8x8x128xf32, #tpu.memory_space<vmem>>, vector<1x8x8x128xf32>,
    %cst_107 = arith.constant dense<0.000000e+00> : vector<128xf32>
    %127 = vector.multi_reduction <add>, %124, %cst_107 [0] : vector<64x128xf32> to vector<128xf32>
    %128 = vector.shape_cast %127 : vector<128xf32> to vector<1x128xf32>
    %129 = arith.mulf %124, %124 : vector<64x128xf32>
    %cst_108 = arith.constant dense<0.000000e+00> : vector<128xf32>
    %130 = vector.multi_reduction <add>, %129, %cst_108 [0] : vector<64x128xf32> to vector<128xf32>
    %131 = vector.shape_cast %130 : vector<128xf32> to vector<1x128xf32>
    %132 = tpu.concatenate %128, %131 in 0 : vector<1x128xf32>, vector<1x128xf32> -> vector<2x128xf32>
    %133 = vector.shape_cast %132 : vector<2x128xf32> to vector<1x1x2x128xf32>
    %c0_109 = arith.constant 0 : index
    %c0_110 = arith.constant 0 : index
    %c0_111 = arith.constant 0 : index
    %c0_112 = arith.constant 0 : index
    %134 = vector.load %arg10[%c0_109, %c0_110, %c0_111, %c0_112] : memref<1x1x2x128xf32, #tpu.memory_space<vmem>>, vector<1x1x2x128xf32>
    tpu.vector_store %arg10[%c0_109, %c0_110, %c0_111, %c0_112], %133 {strides = array<i32>} : memref<1x1x2x128xf32, #tpu.memory_space<vmem>>, vector<1x1x2x128xf32>,
    return
  }
  func.func @transform_0(%arg0: i32, %arg1: i32) -> (i32, i32, i32, i32) {
    %c8_i32 = arith.constant 8 : i32
    %0 = arith.muli %arg1, %c8_i32 : i32
    %c1_i32 = arith.constant 1 : i32
    %1 = arith.subi %0, %c1_i32 : i32
    %c0_i32 = arith.constant 0 : i32
    %2 = arith.maxsi %1, %c0_i32 : i32
    %c0_i32_0 = arith.constant 0 : i32
    %c0_i32_1 = arith.constant 0 : i32
    %c0_i32_2 = arith.constant 0 : i32
    return %arg0, %2, %c0_i32_0, %c0_i32_1 : i32, i32, i32, i32
  }
  func.func @transform_1(%arg0: i32, %arg1: i32) -> (i32, i32, i32, i32) {
    %c0_i32 = arith.constant 0 : i32
    %c0_i32_0 = arith.constant 0 : i32
    %c0_i32_1 = arith.constant 0 : i32
    return %arg0, %arg1, %c0_i32, %c0_i32_0 : i32, i32, i32, i32
  }
  func.func @transform_2(%arg0: i32, %arg1: i32) -> (i32, i32, i32, i32) {
    %c8_i32 = arith.constant 8 : i32
    %0 = arith.muli %arg1, %c8_i32 : i32
    %c8_i32_0 = arith.constant 8 : i32
    %1 = arith.addi %0, %c8_i32_0 : i32
    %c7_i32 = arith.constant 7 : i32
    %2 = arith.minsi %1, %c7_i32 : i32
    %c0_i32 = arith.constant 0 : i32
    %c0_i32_1 = arith.constant 0 : i32
    %c0_i32_2 = arith.constant 0 : i32
    return %arg0, %2, %c0_i32, %c0_i32_1 : i32, i32, i32, i32
  }
  func.func @transform_3(%arg0: i32, %arg1: i32) -> (i32, i32, i32, i32) {
    %c0_i32 = arith.constant 0 : i32
    %c0_i32_0 = arith.constant 0 : i32
    %c0_i32_1 = arith.constant 0 : i32
    %c0_i32_2 = arith.constant 0 : i32
    %c0_i32_3 = arith.constant 0 : i32
    return %c0_i32, %c0_i32_0, %c0_i32_1, %c0_i32_2 : i32, i32, i32, i32
  }
  func.func @transform_4(%arg0: i32, %arg1: i32) -> (i32, i32) {
    %c0_i32 = arith.constant 0 : i32
    %c0_i32_0 = arith.constant 0 : i32
    %c0_i32_1 = arith.constant 0 : i32
    return %c0_i32, %c0_i32_0 : i32, i32
  }
  func.func @transform_5(%arg0: i32, %arg1: i32) -> (i32, i32) {
    %c0_i32 = arith.constant 0 : i32
    %c0_i32_0 = arith.constant 0 : i32
    %c0_i32_1 = arith.constant 0 : i32
    return %c0_i32, %c0_i32_0 : i32, i32
  }
  func.func @transform_6(%arg0: i32, %arg1: i32) -> (i32, i32, i32) {
    %c0_i32 = arith.constant 0 : i32
    %c0_i32_0 = arith.constant 0 : i32
    %c0_i32_1 = arith.constant 0 : i32
    %c0_i32_2 = arith.constant 0 : i32
    return %c0_i32, %c0_i32_0, %c0_i32_1 : i32, i32, i32
  }
  func.func @transform_7(%arg0: i32, %arg1: i32) -> (i32, i32, i32, i32) {
    %c0_i32 = arith.constant 0 : i32
    %c0_i32_0 = arith.constant 0 : i32
    %c0_i32_1 = arith.constant 0 : i32
    return %arg0, %arg1, %c0_i32, %c0_i32_0 : i32, i32, i32, i32
  }
  func.func @transform_8(%arg0: i32, %arg1: i32) -> (i32, i32, i32, i32) {
    %c0_i32 = arith.constant 0 : i32
    %c0_i32_0 = arith.constant 0 : i32
    %c0_i32_1 = arith.constant 0 : i32
    return %arg0, %arg1, %c0_i32, %c0_i32_0 : i32, i32, i32, i32
  }
}

</mosaic_0001>

<llo_original>
// kernel: down_forward.4
$region0: #{down_forward.4}
  #allocation0 [shape = 'u32[]', space=smem, size = 0x4, offset = 0x4, fixed_abs, tag = 'smem constant byte address 0x4 - core index']
  #allocation1 [shape = 'u32[72,128]{1,0:T(1,128)}', space=vmem, size = 0x9000, scoped, tag = 'internal scratch']
  %s0 = inlined_call_operand.vmem [shape: f32[2,8,2,8,8], index: 0, kind: input, shape index: {}]
  %s1 = inlined_call_operand.vmem [shape: bf16[2,8,8,128], index: 1, kind: output, shape index: {}]
  %s2 = sld [smem:[#allocation0]]
  $region37: #{down_forward.4} parent=0
    _
  %s4 = ssub.s32 1, %s2
  %s5 = scalar_select 0, %s4, %s2
  loop: start=0, step=1, limit=4
  $region2: #{down_forward.4} parent=0 // loop_pre_header
    _
  $region3: #{down_forward.4} parent=0 // loop_header
    %s7 = sphi 0, %s11
    %p8 = scmp.ge.s32.totalorder %s7, 4
    %s14 = sphi 0, %s26
    %s15 = sphi 0, %s22
    %s16 = sphi 0, %s14
    %s17 = sphi 0, %s15
    %s18 = sphi 0, %s16
    %s19 = sphi 0, %s17
    %s31 = sphi 0, %s33
    %s34 = sphi 0, %s31
    %s35 = sphi 0, %s34
    %s51 = sphi 0, %s35
    %s59 = sphi 0, %s61
    %s62 = sphi 0, %s59
    %s63 = sphi 0, %s62
    %s79 = sphi 0, %s63
  $region4: #{down_forward.4} parent=0 // loop_header_branch
    %10 = sbr.rel (%p8) target = $region8
  $region5: #{down_forward.4} parent=0 // loop_body
    %s12 = ssub.s32 %s7, 1
    %s13 = ssub.s32 %s7, 2
    %s20 = sadd.s32 1, %s15
    %p21 = scmp.ge.s32.totalorder %s20, 1
    %s22 = scalar_select %p21, 0, %s20
    %s23 = sadd.s32 1, %s14
    %s24 = scalar_select %p21, %s23, %s14
    %p25 = scmp.ge.s32.totalorder %s24, 2
    %s26 = scalar_select %p25, 0, %s24
    %s27 = ssub.s32 %s14, %s26
    %s28 = ssub.s32 %s15, %s22
    %s29 = sor.u32 %s27, %s28
    %p30 = scmp.eq.s32.totalorder %s29, 0
    %s32 = sadd.s32 %s31, 1
    %s33 = scalar_select %p30, %s31, %s32
    %p36 = pneg %p30
    %p37 = scmp.eq.s32.totalorder %s7, 1
    %p38 = por %p36, %p37
    %p39 = scmp.ne.s32.totalorder %s31, %s34
    %p40 = scmp.eq.s32.totalorder %s7, 0
    %p41 = por %p39, %p40
    %p42 = scmp.ne.s32.totalorder %s31, %s34
    %p43 = scmp.eq.s32.totalorder %s12, 1
    %p44 = por %p42, %p43
    %p45 = scmp.ne.s32.totalorder %s34, %s35
    %p46 = scmp.eq.s32.totalorder %s12, 0
    %p47 = por %p45, %p46
    %p48 = scmp.ne.s32.totalorder %s34, %s35
    %p49 = scmp.eq.s32.totalorder %s13, 1
    %p50 = por %p48, %p49
    %p52 = scmp.ne.s32.totalorder %s35, %s51
    %p53 = scmp.eq.s32.totalorder %s13, 0
    %p54 = por %p52, %p53
    %s55 = ssub.s32 %s14, %s26
    %s56 = ssub.s32 %s15, %s22
    %s57 = sor.u32 %s55, %s56
    %p58 = scmp.eq.s32.totalorder %s57, 0
    %s60 = sadd.s32 %s59, 1
    %s61 = scalar_select %p58, %s59, %s60
    %p64 = pneg %p58
    %p65 = scmp.eq.s32.totalorder %s7, 1
    %p66 = por %p64, %p65
    %p67 = scmp.ne.s32.totalorder %s59, %s62
    %p68 = scmp.eq.s32.totalorder %s7, 0
    %p69 = por %p67, %p68
    %p70 = scmp.ne.s32.totalorder %s59, %s62
    %p71 = scmp.eq.s32.totalorder %s12, 1
    %p72 = por %p70, %p71
    %p73 = scmp.ne.s32.totalorder %s62, %s63
    %p74 = scmp.eq.s32.totalorder %s12, 0
    %p75 = por %p73, %p74
    %p76 = scmp.ne.s32.totalorder %s62, %s63
    %p77 = scmp.eq.s32.totalorder %s13, 1
    %p78 = por %p76, %p77
    %p80 = scmp.ne.s32.totalorder %s63, %s79
    %p81 = scmp.eq.s32.totalorder %s13, 0
    %p82 = por %p80, %p81
    %p83 = scmp.le.s32.totalorder 1, %s7
    %p84 = scmp.lt.s32.totalorder %s7, 3
    %p85 = pnand %p83, %p84
    %p86 = pneg %p85
    // Predicated region
    $region9: #{down_forward.4} parent=5 // pred_check
      _
    $region10: #{down_forward.4} parent=5 // pred_check_branch
      %88 = sbr.rel (%p85) target = $region12
    $region11: #{down_forward.4} parent=5 // pred_region
      %s89 = ssub.s32 %s7, 1
    $region12: #{down_forward.4} parent=5 // pred_fallthru
      _
    %p90 = scmp.lt.s32.totalorder %s7, 2
    // Predicated region
    $region13: #{down_forward.4} parent=5 // pred_check
      %p91 = pneg %p90
    $region14: #{down_forward.4} parent=5 // pred_check_branch
      %93 = sbr.rel (%p91) target = $region16
    $region15: #{down_forward.4} parent=5 // pred_region
      // Predicated region
      $region17: #{down_forward.4} parent=15 // pred_check
        %p94 = pneg %p41
      $region18: #{down_forward.4} parent=15 // pred_check_branch
        %96 = sbr.rel (%p94) target = $region20
      $region19: #{down_forward.4} parent=15 // pred_region
        %s97 = smul.u32 8, %s15
        %p98 = scmp.lt.s32.totalorder %s14, 1
        %s99 = scalar_select %p98, %s14, 1
        %p100 = scmp.lt.s32.totalorder %s97, 7
        %s101 = scalar_select %p100, %s97, 7
        %s102 = smul.addr %s101, 2
        %s103 = smul.addr %s99, 16
        %s104 = sadd.s32 %s102, %s103
        %s105 = smul.addr %s104, 8
        %s106 = scalar_lea.vmem %s0, %s105
        %s107 = smul.u32 8, %s15
      $region20: #{down_forward.4} parent=15 // pred_fallthru
        _
    $region16: #{down_forward.4} parent=5 // pred_fallthru
      _
    %p108 = scmp.le.s32.totalorder 1, %s7
    %p109 = scmp.lt.s32.totalorder %s7, 3
    %p110 = pnand %p108, %p109
    %p111 = pneg %p110
    // Predicated region
    $region21: #{down_forward.4} parent=5 // pred_check
      _
    $region22: #{down_forward.4} parent=5 // pred_check_branch
      %113 = sbr.rel (%p110) target = $region24
    $region23: #{down_forward.4} parent=5 // pred_region
      %s114 = ssub.s32 %s7, 1
      %s115 = smul.u32 8, %s17
      %p116 = scmp.lt.s32.totalorder %s16, 1
      %s117 = scalar_select %p116, %s16, 1
      %p118 = scmp.lt.s32.totalorder %s115, 7
      %s119 = scalar_select %p118, %s115, 7
      %s120 = smul.addr %s119, 2
      %s121 = smul.addr %s117, 16
      %s122 = sadd.s32 %s120, %s121
      %s123 = smul.addr %s122, 8
      %s124 = scalar_lea.vmem %s0, %s123
      %p125 = pneg %p47
      %p126 = pneg %p44
      %p127 = pneg %p75
      %p128 = pneg %p72
      %s129 = smul.u32 8, %s17
      %p130 = scmp.lt.s32.totalorder %s16, 1
      %s131 = scalar_select %p130, %s16, 1
      %p132 = scmp.lt.s32.totalorder %s129, 7
      %s133 = scalar_select %p132, %s129, 7
      %s134 = smul.addr %s131, 8
      %s135 = sadd.s32 %s133, %s134
      %s136 = smul.addr %s135, 4
      %s137 = scalar_lea.vmem %s1, %s136
      %s138 = smul.u32 8, %s17
      %p139 = scmp.lt.s32.totalorder %s16, 1
      %s140 = scalar_select %p139, %s16, 1
      %p141 = scmp.lt.s32.totalorder %s138, 7
      %s142 = scalar_select %p141, %s138, 7
      %s143 = smul.addr %s142, 2
      %s144 = smul.addr %s140, 16
      %s145 = sadd.s32 %s143, %s144
      %s146 = smul.addr %s145, 8
      %s147 = scalar_lea.vmem %s0, %s146
      %s148 = smul.u32 8, %s17
      %s149 = smul.u32 8, %s17
      %p150 = scmp.lt.s32.totalorder %s16, 1
      %s151 = scalar_select %p150, %s16, 1
      %p152 = scmp.lt.s32.totalorder %s149, 7
      %s153 = scalar_select %p152, %s149, 7
      %s154 = smul.addr %s151, 8
      %s155 = sadd.s32 %s153, %s154
      %s156 = smul.addr %s155, 4
      %s157 = scalar_lea.vmem %s1, %s156
      %s158 = smul.u32 8, %s17
      %v160 = vld [vmem:[%s147] sm:$0xff]
      %v161 = vld [vmem:[%s147 + $0x8] sm:$0xff]
      %v162 = vld [vmem:[%s147 + $0x10] sm:$0xff]
      %v163 = vld [vmem:[%s147 + $0x18] sm:$0xff]
      %v164 = vld [vmem:[%s147 + $0x20] sm:$0xff]
      %v165 = vld [vmem:[%s147 + $0x28] sm:$0xff]
      %v166 = vld [vmem:[%s147 + $0x30] sm:$0xff]
      %v167 = vld [vmem:[%s147 + $0x38] sm:$0xff]
      %v168 = vld [vmem:[%s147 + $0x40] sm:$0xff]
      %v169 = vld [vmem:[%s147 + $0x48] sm:$0xff]
      %v170 = vld [vmem:[%s147 + $0x50] sm:$0xff]
      %v171 = vld [vmem:[%s147 + $0x58] sm:$0xff]
      %v172 = vld [vmem:[%s147 + $0x60] sm:$0xff]
      %v173 = vld [vmem:[%s147 + $0x68] sm:$0xff]
      %v174 = vld [vmem:[%s147 + $0x70] sm:$0xff]
      %v175 = vld [vmem:[%s147 + $0x78] sm:$0xff]
      %v176 = vmax.f32 %v160, %v161
      %v177 = vmax.f32 %v162, %v163
      %v178 = vmax.f32 %v164, %v165
      %v179 = vmax.f32 %v166, %v167
      %v180 = vmax.f32 %v168, %v169
      %v181 = vmax.f32 %v170, %v171
      %v182 = vmax.f32 %v172, %v173
      %v183 = vmax.f32 %v174, %v175
      %192 = vrot.lane.b32.xlu0 %v176, 124
      %v193 = vpop.permute.xlu0 %192
      %194 = vrot.lane.b32.xlu0 %v177, 124
      %v195 = vpop.permute.xlu0 %194
      %196 = vrot.lane.b32.xlu0 %v178, 124
      %v197 = vpop.permute.xlu0 %196
      %198 = vrot.lane.b32.xlu0 %v179, 124
      %v199 = vpop.permute.xlu0 %198
      %200 = vrot.lane.b32.xlu0 %v180, 124
      %v201 = vpop.permute.xlu0 %200
      %202 = vrot.lane.b32.xlu0 %v181, 124
      %v203 = vpop.permute.xlu0 %202
      %204 = vrot.lane.b32.xlu0 %v182, 124
      %v205 = vpop.permute.xlu0 %204
      %206 = vrot.lane.b32.xlu0 %v183, 124
      %v207 = vpop.permute.xlu0 %206
      %v216 = vmax.f32 %v176, %v193
      %v217 = vmax.f32 %v177, %v195
      %v218 = vmax.f32 %v178, %v197
      %v219 = vmax.f32 %v179, %v199
      %v220 = vmax.f32 %v180, %v201
      %v221 = vmax.f32 %v181, %v203
      %v222 = vmax.f32 %v182, %v205
      %v223 = vmax.f32 %v183, %v207
      %224 = vst [vmem:[%s157] sm:$0xf] 0
      %225 = vst [vmem:[%s157 + $0x4] sm:$0xf] 0
      %226 = vst [vmem:[%s157 + $0x8] sm:$0xf] 0
      %227 = vst [vmem:[%s157 + $0xc] sm:$0xf] 0
      %228 = vst [vmem:[%s157 + $0x10] sm:$0xf] 0
      %229 = vst [vmem:[%s157 + $0x14] sm:$0xf] 0
      %230 = vst [vmem:[%s157 + $0x18] sm:$0xf] 0
      %231 = vst [vmem:[%s157 + $0x1c] sm:$0xf] 0
      %v232 = vpack.c.bf16 %v216, %v216
      %v233 = vpack.c.bf16 %v217, %v217
      %v234 = vpack.c.bf16 %v218, %v218
      %v235 = vpack.c.bf16 %v219, %v219
      %v236 = vpack.c.bf16 %v220, %v220
      %v237 = vpack.c.bf16 %v221, %v221
      %v238 = vpack.c.bf16 %v222, %v222
      %v239 = vpack.c.bf16 %v223, %v223
      %vm240 = vcmask 27648
      %241 = vst.msk [vmem:[%s157] sm:$0xf] %vm240, %v232
      %242 = vst.msk [vmem:[%s157 + $0x4] sm:$0xf] %vm240, %v233
      %243 = vst.msk [vmem:[%s157 + $0x8] sm:$0xf] %vm240, %v234
      %244 = vst.msk [vmem:[%s157 + $0xc] sm:$0xf] %vm240, %v235
      %245 = vst.msk [vmem:[%s157 + $0x10] sm:$0xf] %vm240, %v236
      %246 = vst.msk [vmem:[%s157 + $0x14] sm:$0xf] %vm240, %v237
      %247 = vst.msk [vmem:[%s157 + $0x18] sm:$0xf] %vm240, %v238
      %248 = vst.msk [vmem:[%s157 + $0x1c] sm:$0xf] %vm240, %v239
      %s249 = smul.u32 8, %s17
      %p250 = scmp.lt.s32.totalorder %s16, 1
      %s251 = scalar_select %p250, %s16, 1
      %p252 = scmp.lt.s32.totalorder %s249, 7
      %s253 = scalar_select %p252, %s249, 7
      %s254 = smul.addr %s251, 8
      %s255 = sadd.s32 %s253, %s254
      %s256 = smul.addr %s255, 4
      %s257 = scalar_lea.vmem %s1, %s256
      // Predicated region
      $region25: #{down_forward.4} parent=23 // pred_check
        %p258 = pneg %p72
      $region26: #{down_forward.4} parent=23 // pred_check_branch
        %260 = sbr.rel (%p258) target = $region28
      $region27: #{down_forward.4} parent=23 // pred_region
        %s261 = smul.u32 8, %s17
      $region28: #{down_forward.4} parent=23 // pred_fallthru
        _
    $region24: #{down_forward.4} parent=5 // pred_fallthru
      _
    %p262 = scmp.le.s32.totalorder 2, %s7
    // Predicated region
    $region29: #{down_forward.4} parent=5 // pred_check
      %p263 = pneg %p262
    $region30: #{down_forward.4} parent=5 // pred_check_branch
      %265 = sbr.rel (%p263) target = $region32
    $region31: #{down_forward.4} parent=5 // pred_region
      %s266 = ssub.s32 %s7, 2
      // Predicated region
      $region33: #{down_forward.4} parent=31 // pred_check
        %p267 = pneg %p78
      $region34: #{down_forward.4} parent=31 // pred_check_branch
        %269 = sbr.rel (%p267) target = $region36
      $region35: #{down_forward.4} parent=31 // pred_region
        %s270 = smul.u32 8, %s19
        %p271 = scmp.lt.s32.totalorder %s18, 1
        %s272 = scalar_select %p271, %s18, 1
        %p273 = scmp.lt.s32.totalorder %s270, 7
        %s274 = scalar_select %p273, %s270, 7
        %s275 = smul.addr %s272, 8
        %s276 = sadd.s32 %s274, %s275
        %s277 = smul.addr %s276, 4
        %s278 = scalar_lea.vmem %s1, %s277
      $region36: #{down_forward.4} parent=31 // pred_fallthru
        _
    $region32: #{down_forward.4} parent=5 // pred_fallthru
      _
  $region6: #{down_forward.4} parent=0 // loop_footer
    %s11 = sadd.s32 1, %s7
  $region7: #{down_forward.4} parent=0 // loop_footer_branch
    %6 = sbr.rel target = $region3
  $region8: #{down_forward.4} parent=0 // loop_exit
    _

// kernel: down_forward.7
$region0: #{down_forward.7}
  #allocation0 [shape = 'u32[]', space=smem, size = 0x4, offset = 0x4, fixed_abs, tag = 'smem constant byte address 0x4 - core index']
  #allocation1 [shape = 'u32[72,128]{1,0:T(1,128)}', space=vmem, size = 0x9000, scoped, tag = 'internal scratch']
  %s0 = inlined_call_operand.vmem [shape: f32[128,128], index: 0, kind: input, shape index: {}]
  %s1 = inlined_call_operand.vmem [shape: f32[2,1,2,128], index: 1, kind: input, shape index: {}]
  %s2 = inlined_call_operand.vmem [shape: f32[1,128], index: 2, kind: input, shape index: {}]
  %s3 = inlined_call_operand.vmem [shape: f32[1,128], index: 3, kind: input, shape index: {}]
  %s4 = inlined_call_operand.vmem [shape: f32[128,128], index: 4, kind: output, shape index: {}]
  %s5 = sld [smem:[#allocation0]]
  $region26: #{down_forward.7} parent=0
    _
  %s7 = ssub.s32 1, %s5
  %s8 = scalar_select 0, %s7, %s5
  // Predicated region
  $region2: #{down_forward.7} parent=0 // pred_check
    _
  $region3: #{down_forward.7} parent=0 // pred_check_branch
    %10 = sbr.rel (0) target = $region5
  $region4: #{down_forward.7} parent=0 // pred_region
    _
  $region5: #{down_forward.7} parent=0 // pred_fallthru
    _
  // Predicated region
  $region6: #{down_forward.7} parent=0 // pred_check
    _
  $region7: #{down_forward.7} parent=0 // pred_check_branch
    %12 = sbr.rel (0) target = $region9
  $region8: #{down_forward.7} parent=0 // pred_region
    _
  $region9: #{down_forward.7} parent=0 // pred_fallthru
    _
  // Predicated region
  $region10: #{down_forward.7} parent=0 // pred_check
    _
  $region11: #{down_forward.7} parent=0 // pred_check_branch
    %14 = sbr.rel (0) target = $region13
  $region12: #{down_forward.7} parent=0 // pred_region
    _
  $region13: #{down_forward.7} parent=0 // pred_fallthru
    _
  // Predicated region
  $region14: #{down_forward.7} parent=0 // pred_check
    _
  $region15: #{down_forward.7} parent=0 // pred_check_branch
    %16 = sbr.rel (0) target = $region17
  $region16: #{down_forward.7} parent=0 // pred_region
    _
  $region17: #{down_forward.7} parent=0 // pred_fallthru
    _
  %v17 = vld [vmem:[%s1] sm:$0x3]
  %v18 = vld [vmem:[%s1 + $0x2] sm:$0x3]
  %v19 = vld [vmem:[%s2] sm:$0x1]
  %v20 = vld [vmem:[%s3] sm:$0x1]
  %vm21 = vcmask 1041408
  %v22 = vsel %vm21, %v17, 0.0
  %v23 = vsel %vm21, %v18, 0.0
  %v24 = vadd.f32 %v22, %v23
  %v25 = vmul.f32 %v24, 0.0078125
  %v26 = vmul.f32 %v25, %v25
  %v28 = vrot.slane %v26, 7
  %v30 = vsub.f32 %v25, %v28
  %v31 = vmax.f32 %v30, 0.0
  %v32 = vadd.f32 %v31, 1e-05
  %v33 = vrsqrt.pop %v32
  %v34 = vmul.f32 %v33, %v32
  %v35 = vmul.f32 %v34, %v33
  %v36 = vmul.f32 0.5, %v35
  %v37 = vsub.f32 1.5, %v36
  %v38 = vmul.f32 %v33, %v37
  %vm39 = vweird.f32 %v32
  %vm40 = vweird.f32 %v33
  %vm41 = vmor %vm39, %vm40
  %v42 = vsel %vm41, %v33, %v38
  %44 = vst [vmem:[#allocation1] sm:$0xff] %v42
  %s45 = scalar_lea.vmem [#allocation1], 1
  %v46 = vld [vmem:[%s45] ss:$9 sm:$0xff]
  %v48 = vmul.f32 %v19, %v46
  %v49 = vmul.f32 %v25, %v48
  %v50 = vsub.f32 %v20, %v49
  %v51 = vld [vmem:[%s0] sm:$0xff]
  %v52 = vld [vmem:[%s0 + $0x8] sm:$0xff]
  %v53 = vld [vmem:[%s0 + $0x10] sm:$0xff]
  %v54 = vld [vmem:[%s0 + $0x18] sm:$0xff]
  %v55 = vld [vmem:[%s0 + $0x20] sm:$0xff]
  %v56 = vld [vmem:[%s0 + $0x28] sm:$0xff]
  %v57 = vld [vmem:[%s0 + $0x30] sm:$0xff]
  %v58 = vld [vmem:[%s0 + $0x38] sm:$0xff]
  %v59 = vld [vmem:[%s0 + $0x40] sm:$0xff]
  %v60 = vld [vmem:[%s0 + $0x48] sm:$0xff]
  %v61 = vld [vmem:[%s0 + $0x50] sm:$0xff]
  %v62 = vld [vmem:[%s0 + $0x58] sm:$0xff]
  %v63 = vld [vmem:[%s0 + $0x60] sm:$0xff]
  %v64 = vld [vmem:[%s0 + $0x68] sm:$0xff]
  %v65 = vld [vmem:[%s0 + $0x70] sm:$0xff]
  %v66 = vld [vmem:[%s0 + $0x78] sm:$0xff]
  %v68 = vperm.slane %v48, 0
  %v70 = vmul.f32 %v51, %v68
  %v71 = vmul.f32 %v52, %v68
  %v72 = vmul.f32 %v53, %v68
  %v73 = vmul.f32 %v54, %v68
  %v74 = vmul.f32 %v55, %v68
  %v75 = vmul.f32 %v56, %v68
  %v76 = vmul.f32 %v57, %v68
  %v77 = vmul.f32 %v58, %v68
  %v78 = vmul.f32 %v59, %v68
  %v79 = vmul.f32 %v60, %v68
  %v80 = vmul.f32 %v61, %v68
  %v81 = vmul.f32 %v62, %v68
  %v82 = vmul.f32 %v63, %v68
  %v83 = vmul.f32 %v64, %v68
  %v84 = vmul.f32 %v65, %v68
  %v85 = vmul.f32 %v66, %v68
  %v87 = vperm.slane %v50, 0
  %v89 = vadd.f32 %v70, %v87
  %v90 = vadd.f32 %v71, %v87
  %v91 = vadd.f32 %v72, %v87
  %v92 = vadd.f32 %v73, %v87
  %v93 = vadd.f32 %v74, %v87
  %v94 = vadd.f32 %v75, %v87
  %v95 = vadd.f32 %v76, %v87
  %v96 = vadd.f32 %v77, %v87
  %v97 = vadd.f32 %v78, %v87
  %v98 = vadd.f32 %v79, %v87
  %v99 = vadd.f32 %v80, %v87
  %v100 = vadd.f32 %v81, %v87
  %v101 = vadd.f32 %v82, %v87
  %v102 = vadd.f32 %v83, %v87
  %v103 = vadd.f32 %v84, %v87
  %v104 = vadd.f32 %v85, %v87
  %vm105 = vcmp.ge.f32.partialorder %v89, 0.0
  %vm106 = vcmp.ge.f32.partialorder %v90, 0.0
  %vm107 = vcmp.ge.f32.partialorder %v91, 0.0
  %vm108 = vcmp.ge.f32.partialorder %v92, 0.0
  %vm109 = vcmp.ge.f32.partialorder %v93, 0.0
  %vm110 = vcmp.ge.f32.partialorder %v94, 0.0
  %vm111 = vcmp.ge.f32.partialorder %v95, 0.0
  %vm112 = vcmp.ge.f32.partialorder %v96, 0.0
  %vm113 = vcmp.ge.f32.partialorder %v97, 0.0
  %vm114 = vcmp.ge.f32.partialorder %v98, 0.0
  %vm115 = vcmp.ge.f32.partialorder %v99, 0.0
  %vm116 = vcmp.ge.f32.partialorder %v100, 0.0
  %vm117 = vcmp.ge.f32.partialorder %v101, 0.0
  %vm118 = vcmp.ge.f32.partialorder %v102, 0.0
  %vm119 = vcmp.ge.f32.partialorder %v103, 0.0
  %vm120 = vcmp.ge.f32.partialorder %v104, 0.0
  %v121 = vmul.f32 %v89, 0.01
  %v122 = vmul.f32 %v90, 0.01
  %v123 = vmul.f32 %v91, 0.01
  %v124 = vmul.f32 %v92, 0.01
  %v125 = vmul.f32 %v93, 0.01
  %v126 = vmul.f32 %v94, 0.01
  %v127 = vmul.f32 %v95, 0.01
  %v128 = vmul.f32 %v96, 0.01
  %v129 = vmul.f32 %v97, 0.01
  %v130 = vmul.f32 %v98, 0.01
  %v131 = vmul.f32 %v99, 0.01
  %v132 = vmul.f32 %v100, 0.01
  %v133 = vmul.f32 %v101, 0.01
  %v134 = vmul.f32 %v102, 0.01
  %v135 = vmul.f32 %v103, 0.01
  %v136 = vmul.f32 %v104, 0.01
  %v137 = vsel %vm105, %v89, %v121
  %v138 = vsel %vm106, %v90, %v122
  %v139 = vsel %vm107, %v91, %v123
  %v140 = vsel %vm108, %v92, %v124
  %v141 = vsel %vm109, %v93, %v125
  %v142 = vsel %vm110, %v94, %v126
  %v143 = vsel %vm111, %v95, %v127
  %v144 = vsel %vm112, %v96, %v128
  %v145 = vsel %vm113, %v97, %v129
  %v146 = vsel %vm114, %v98, %v130
  %v147 = vsel %vm115, %v99, %v131
  %v148 = vsel %vm116, %v100, %v132
  %v149 = vsel %vm117, %v101, %v133
  %v150 = vsel %vm118, %v102, %v134
  %v151 = vsel %vm119, %v103, %v135
  %v152 = vsel %vm120, %v104, %v136
  %153 = vst [vmem:[%s4] sm:$0xff] %v137
  %154 = vst [vmem:[%s4 + $0x8] sm:$0xff] %v138
  %155 = vst [vmem:[%s4 + $0x10] sm:$0xff] %v139
  %156 = vst [vmem:[%s4 + $0x18] sm:$0xff] %v140
  %157 = vst [vmem:[%s4 + $0x20] sm:$0xff] %v141
  %158 = vst [vmem:[%s4 + $0x28] sm:$0xff] %v142
  %159 = vst [vmem:[%s4 + $0x30] sm:$0xff] %v143
  %160 = vst [vmem:[%s4 + $0x38] sm:$0xff] %v144
  %161 = vst [vmem:[%s4 + $0x40] sm:$0xff] %v145
  %162 = vst [vmem:[%s4 + $0x48] sm:$0xff] %v146
  %163 = vst [vmem:[%s4 + $0x50] sm:$0xff] %v147
  %164 = vst [vmem:[%s4 + $0x58] sm:$0xff] %v148
  %165 = vst [vmem:[%s4 + $0x60] sm:$0xff] %v149
  %166 = vst [vmem:[%s4 + $0x68] sm:$0xff] %v150
  %167 = vst [vmem:[%s4 + $0x70] sm:$0xff] %v151
  %168 = vst [vmem:[%s4 + $0x78] sm:$0xff] %v152
  // Predicated region
  $region18: #{down_forward.7} parent=0 // pred_check
    _
  $region19: #{down_forward.7} parent=0 // pred_check_branch
    %170 = sbr.rel (0) target = $region21
  $region20: #{down_forward.7} parent=0 // pred_region
    _
  $region21: #{down_forward.7} parent=0 // pred_fallthru
    _
  // Predicated region
  $region22: #{down_forward.7} parent=0 // pred_check
    _
  $region23: #{down_forward.7} parent=0 // pred_check_branch
    %172 = sbr.rel (0) target = $region25
  $region24: #{down_forward.7} parent=0 // pred_region
    _
  $region25: #{down_forward.7} parent=0 // pred_fallthru
    _

// kernel: down_forward.5
$region0: #{down_forward.5}
  #allocation0 [shape = 'u32[]', space=smem, size = 0x4, offset = 0x4, fixed_abs, tag = 'smem constant byte address 0x4 - core index']
  #allocation1 [shape = 'u32[72,128]{1,0:T(1,128)}', space=vmem, size = 0x9000, scoped, tag = 'internal scratch']
  #allocation2 [shape = 'bf16[10,10,128]{2,1,0:T(8,128)(2,1)}', space=vmem, size = 0xa000, scoped, tag = 'scratch operand']
  %s0 = inlined_call_operand.vmem [shape: bf16[2,8,8,128], index: 0, kind: input, shape index: {}, may-alias: {0,1,2}]
  %s1 = inlined_call_operand.vmem [shape: bf16[2,8,8,128], index: 1, kind: input, shape index: {}, may-alias: {0,1,2}]
  %s2 = inlined_call_operand.vmem [shape: bf16[2,8,8,128], index: 2, kind: input, shape index: {}, may-alias: {0,1,2}]
  %s3 = inlined_call_operand.vmem [shape: bf16[9,128,128], index: 3, kind: input, shape index: {}]
  %s4 = inlined_call_operand.vmem [shape: f32[2,8,8,128], index: 4, kind: output, shape index: {0}]
  %s5 = inlined_call_operand.vmem [shape: f32[2,1,2,128], index: 5, kind: output, shape index: {1}]
  %6 = xla_tuple %s4, %s5
  %s7 = sld [smem:[#allocation0]]
  $region61: #{down_forward.5} parent=0
    _
  %s9 = ssub.s32 1, %s7
  %s10 = scalar_select 0, %s9, %s7
  loop: start=0, step=1, limit=4
  $region2: #{down_forward.5} parent=0 // loop_pre_header
    _
  $region3: #{down_forward.5} parent=0 // loop_header
    %s12 = sphi 0, %s16
    %p13 = scmp.ge.s32.totalorder %s12, 4
    %s19 = sphi 0, %s31
    %s20 = sphi 0, %s27
    %s21 = sphi 0, %s19
    %s22 = sphi 0, %s20
    %s23 = sphi 0, %s21
    %s24 = sphi 0, %s22
    %s44 = sphi 0, %s46
    %s47 = sphi 0, %s44
    %s48 = sphi 0, %s47
    %s64 = sphi 0, %s48
    %s72 = sphi 0, %s74
    %s75 = sphi 0, %s72
    %s76 = sphi 0, %s75
    %s92 = sphi 0, %s76
    %s108 = sphi 0, %s110
    %s111 = sphi 0, %s108
    %s112 = sphi 0, %s111
    %s128 = sphi 0, %s112
    %s132 = sphi 0, %s132
    %s134 = sphi 0, %s132
    %s135 = sphi 0, %s134
    %s149 = sphi 0, %s135
    %s157 = sphi 0, %s159
    %s160 = sphi 0, %s157
    %s161 = sphi 0, %s160
    %s177 = sphi 0, %s161
    %s185 = sphi 0, %s187
    %s188 = sphi 0, %s185
    %s189 = sphi 0, %s188
    %s205 = sphi 0, %s189
  $region4: #{down_forward.5} parent=0 // loop_header_branch
    %15 = sbr.rel (%p13) target = $region8
  $region5: #{down_forward.5} parent=0 // loop_body
    %s17 = ssub.s32 %s12, 1
    %s18 = ssub.s32 %s12, 2
    %s25 = sadd.s32 1, %s20
    %p26 = scmp.ge.s32.totalorder %s25, 1
    %s27 = scalar_select %p26, 0, %s25
    %s28 = sadd.s32 1, %s19
    %s29 = scalar_select %p26, %s28, %s19
    %p30 = scmp.ge.s32.totalorder %s29, 2
    %s31 = scalar_select %p30, 0, %s29
    %s32 = smul.u32 %s20, 8
    %s33 = ssub.s32 %s32, 1
    %p34 = scmp.gt.s32.totalorder %s33, 0
    %s35 = scalar_select %p34, %s33, 0
    %s36 = smul.u32 %s27, 8
    %s37 = ssub.s32 %s36, 1
    %p38 = scmp.gt.s32.totalorder %s37, 0
    %s39 = scalar_select %p38, %s37, 0
    %s40 = ssub.s32 %s19, %s31
    %s41 = ssub.s32 %s35, %s39
    %s42 = sor.u32 %s40, %s41
    %p43 = scmp.eq.s32.totalorder %s42, 0
    %s45 = sadd.s32 %s44, 1
    %s46 = scalar_select %p43, %s44, %s45
    %p49 = pneg %p43
    %p50 = scmp.eq.s32.totalorder %s12, 1
    %p51 = por %p49, %p50
    %p52 = scmp.ne.s32.totalorder %s44, %s47
    %p53 = scmp.eq.s32.totalorder %s12, 0
    %p54 = por %p52, %p53
    %p55 = scmp.ne.s32.totalorder %s44, %s47
    %p56 = scmp.eq.s32.totalorder %s17, 1
    %p57 = por %p55, %p56
    %p58 = scmp.ne.s32.totalorder %s47, %s48
    %p59 = scmp.eq.s32.totalorder %s17, 0
    %p60 = por %p58, %p59
    %p61 = scmp.ne.s32.totalorder %s47, %s48
    %p62 = scmp.eq.s32.totalorder %s18, 1
    %p63 = por %p61, %p62
    %p65 = scmp.ne.s32.totalorder %s48, %s64
    %p66 = scmp.eq.s32.totalorder %s18, 0
    %p67 = por %p65, %p66
    %s68 = ssub.s32 %s19, %s31
    %s69 = ssub.s32 %s20, %s27
    %s70 = sor.u32 %s68, %s69
    %p71 = scmp.eq.s32.totalorder %s70, 0
    %s73 = sadd.s32 %s72, 1
    %s74 = scalar_select %p71, %s72, %s73
    %p77 = pneg %p71
    %p78 = scmp.eq.s32.totalorder %s12, 1
    %p79 = por %p77, %p78
    %p80 = scmp.ne.s32.totalorder %s72, %s75
    %p81 = scmp.eq.s32.totalorder %s12, 0
    %p82 = por %p80, %p81
    %p83 = scmp.ne.s32.totalorder %s72, %s75
    %p84 = scmp.eq.s32.totalorder %s17, 1
    %p85 = por %p83, %p84
    %p86 = scmp.ne.s32.totalorder %s75, %s76
    %p87 = scmp.eq.s32.totalorder %s17, 0
    %p88 = por %p86, %p87
    %p89 = scmp.ne.s32.totalorder %s75, %s76
    %p90 = scmp.eq.s32.totalorder %s18, 1
    %p91 = por %p89, %p90
    %p93 = scmp.ne.s32.totalorder %s76, %s92
    %p94 = scmp.eq.s32.totalorder %s18, 0
    %p95 = por %p93, %p94
    %s96 = smul.u32 %s20, 8
    %s97 = sadd.s32 %s96, 8
    %p98 = scmp.lt.s32.totalorder %s97, 7
    %s99 = scalar_select %p98, %s97, 7
    %s100 = smul.u32 %s27, 8
    %s101 = sadd.s32 %s100, 8
    %p102 = scmp.lt.s32.totalorder %s101, 7
    %s103 = scalar_select %p102, %s101, 7
    %s104 = ssub.s32 %s19, %s31
    %s105 = ssub.s32 %s99, %s103
    %s106 = sor.u32 %s104, %s105
    %p107 = scmp.eq.s32.totalorder %s106, 0
    %s109 = sadd.s32 %s108, 1
    %s110 = scalar_select %p107, %s108, %s109
    %p113 = pneg %p107
    %p114 = scmp.eq.s32.totalorder %s12, 1
    %p115 = por %p113, %p114
    %p116 = scmp.ne.s32.totalorder %s108, %s111
    %p117 = scmp.eq.s32.totalorder %s12, 0
    %p118 = por %p116, %p117
    %p119 = scmp.ne.s32.totalorder %s108, %s111
    %p120 = scmp.eq.s32.totalorder %s17, 1
    %p121 = por %p119, %p120
    %p122 = scmp.ne.s32.totalorder %s111, %s112
    %p123 = scmp.eq.s32.totalorder %s17, 0
    %p124 = por %p122, %p123
    %p125 = scmp.ne.s32.totalorder %s111, %s112
    %p126 = scmp.eq.s32.totalorder %s18, 1
    %p127 = por %p125, %p126
    %p129 = scmp.ne.s32.totalorder %s112, %s128
    %p130 = scmp.eq.s32.totalorder %s18, 0
    %p131 = por %p129, %p130
    %s133 = sadd.s32 %s132, 1
    %p136 = scmp.eq.s32.totalorder %s12, 1
    %p137 = scmp.ne.s32.totalorder %s132, %s134
    %p138 = scmp.eq.s32.totalorder %s12, 0
    %p139 = por %p137, %p138
    %p140 = scmp.ne.s32.totalorder %s132, %s134
    %p141 = scmp.eq.s32.totalorder %s17, 1
    %p142 = por %p140, %p141
    %p143 = scmp.ne.s32.totalorder %s134, %s135
    %p144 = scmp.eq.s32.totalorder %s17, 0
    %p145 = por %p143, %p144
    %p146 = scmp.ne.s32.totalorder %s134, %s135
    %p147 = scmp.eq.s32.totalorder %s18, 1
    %p148 = por %p146, %p147
    %p150 = scmp.ne.s32.totalorder %s135, %s149
    %p151 = scmp.eq.s32.totalorder %s18, 0
    %p152 = por %p150, %p151
    %s153 = ssub.s32 %s19, %s31
    %s154 = ssub.s32 %s20, %s27
    %s155 = sor.u32 %s153, %s154
    %p156 = scmp.eq.s32.totalorder %s155, 0
    %s158 = sadd.s32 %s157, 1
    %s159 = scalar_select %p156, %s157, %s158
    %p162 = pneg %p156
    %p163 = scmp.eq.s32.totalorder %s12, 1
    %p164 = por %p162, %p163
    %p165 = scmp.ne.s32.totalorder %s157, %s160
    %p166 = scmp.eq.s32.totalorder %s12, 0
    %p167 = por %p165, %p166
    %p168 = scmp.ne.s32.totalorder %s157, %s160
    %p169 = scmp.eq.s32.totalorder %s17, 1
    %p170 = por %p168, %p169
    %p171 = scmp.ne.s32.totalorder %s160, %s161
    %p172 = scmp.eq.s32.totalorder %s17, 0
    %p173 = por %p171, %p172
    %p174 = scmp.ne.s32.totalorder %s160, %s161
    %p175 = scmp.eq.s32.totalorder %s18, 1
    %p176 = por %p174, %p175
    %p178 = scmp.ne.s32.totalorder %s161, %s177
    %p179 = scmp.eq.s32.totalorder %s18, 0
    %p180 = por %p178, %p179
    %s181 = ssub.s32 %s19, %s31
    %s182 = ssub.s32 %s20, %s27
    %s183 = sor.u32 %s181, %s182
    %p184 = scmp.eq.s32.totalorder %s183, 0
    %s186 = sadd.s32 %s185, 1
    %s187 = scalar_select %p184, %s185, %s186
    %p190 = pneg %p184
    %p191 = scmp.eq.s32.totalorder %s12, 1
    %p192 = por %p190, %p191
    %p193 = scmp.ne.s32.totalorder %s185, %s188
    %p194 = scmp.eq.s32.totalorder %s12, 0
    %p195 = por %p193, %p194
    %p196 = scmp.ne.s32.totalorder %s185, %s188
    %p197 = scmp.eq.s32.totalorder %s17, 1
    %p198 = por %p196, %p197
    %p199 = scmp.ne.s32.totalorder %s188, %s189
    %p200 = scmp.eq.s32.totalorder %s17, 0
    %p201 = por %p199, %p200
    %p202 = scmp.ne.s32.totalorder %s188, %s189
    %p203 = scmp.eq.s32.totalorder %s18, 1
    %p204 = por %p202, %p203
    %p206 = scmp.ne.s32.totalorder %s189, %s205
    %p207 = scmp.eq.s32.totalorder %s18, 0
    %p208 = por %p206, %p207
    %p209 = scmp.le.s32.totalorder 1, %s12
    %p210 = scmp.lt.s32.totalorder %s12, 3
    %p211 = pnand %p209, %p210
    %p212 = pneg %p211
    // Predicated region
    $region9: #{down_forward.5} parent=5 // pred_check
      _
    $region10: #{down_forward.5} parent=5 // pred_check_branch
      %214 = sbr.rel (%p211) target = $region12
    $region11: #{down_forward.5} parent=5 // pred_region
      %s215 = ssub.s32 %s12, 1
      // Predicated region
      $region13: #{down_forward.5} parent=11 // pred_check
        %p216 = pneg %p145
      $region14: #{down_forward.5} parent=11 // pred_check_branch
        %218 = sbr.rel (%p216) target = $region16
      $region15: #{down_forward.5} parent=11 // pred_region
        _
      $region16: #{down_forward.5} parent=11 // pred_fallthru
        _
    $region12: #{down_forward.5} parent=5 // pred_fallthru
      _
    %p219 = scmp.lt.s32.totalorder %s12, 2
    // Predicated region
    $region17: #{down_forward.5} parent=5 // pred_check
      %p220 = pneg %p219
    $region18: #{down_forward.5} parent=5 // pred_check_branch
      %222 = sbr.rel (%p220) target = $region20
    $region19: #{down_forward.5} parent=5 // pred_region
      // Predicated region
      $region21: #{down_forward.5} parent=19 // pred_check
        %p223 = pneg %p54
      $region22: #{down_forward.5} parent=19 // pred_check_branch
        %225 = sbr.rel (%p223) target = $region24
      $region23: #{down_forward.5} parent=19 // pred_region
        %s226 = smul.u32 %s20, 8
        %s227 = ssub.s32 %s226, 1
        %p228 = scmp.gt.s32.totalorder %s227, 0
        %s229 = scalar_select %p228, %s227, 0
        %p230 = scmp.lt.s32.totalorder %s19, 1
        %s231 = scalar_select %p230, %s19, 1
        %p232 = scmp.lt.s32.totalorder %s229, 7
        %s233 = scalar_select %p232, %s229, 7
        %s234 = smul.addr %s231, 8
        %s235 = sadd.s32 %s233, %s234
        %s236 = smul.addr %s235, 4
        %s237 = scalar_lea.vmem %s0, %s236
        %s238 = smul.u32 %s20, 8
        %s239 = ssub.s32 %s238, 1
        %p240 = scmp.gt.s32.totalorder %s239, 0
        %s241 = scalar_select %p240, %s239, 0
      $region24: #{down_forward.5} parent=19 // pred_fallthru
        _
      // Predicated region
      $region25: #{down_forward.5} parent=19 // pred_check
        %p242 = pneg %p82
      $region26: #{down_forward.5} parent=19 // pred_check_branch
        %244 = sbr.rel (%p242) target = $region28
      $region27: #{down_forward.5} parent=19 // pred_region
        %s245 = smul.u32 8, %s20
        %p246 = scmp.lt.s32.totalorder %s19, 1
        %s247 = scalar_select %p246, %s19, 1
        %p248 = scmp.lt.s32.totalorder %s245, 7
        %s249 = scalar_select %p248, %s245, 7
        %s250 = smul.addr %s247, 8
        %s251 = sadd.s32 %s249, %s250
        %s252 = smul.addr %s251, 4
        %s253 = scalar_lea.vmem %s1, %s252
        %s254 = smul.u32 8, %s20
      $region28: #{down_forward.5} parent=19 // pred_fallthru
        _
      // Predicated region
      $region29: #{down_forward.5} parent=19 // pred_check
        %p255 = pneg %p118
      $region30: #{down_forward.5} parent=19 // pred_check_branch
        %257 = sbr.rel (%p255) target = $region32
      $region31: #{down_forward.5} parent=19 // pred_region
        %s258 = smul.u32 %s20, 8
        %s259 = sadd.s32 %s258, 8
        %p260 = scmp.lt.s32.totalorder %s259, 7
        %s261 = scalar_select %p260, %s259, 7
        %p262 = scmp.lt.s32.totalorder %s19, 1
        %s263 = scalar_select %p262, %s19, 1
        %p264 = scmp.lt.s32.totalorder %s261, 7
        %s265 = scalar_select %p264, %s261, 7
        %s266 = smul.addr %s263, 8
        %s267 = sadd.s32 %s265, %s266
        %s268 = smul.addr %s267, 4
        %s269 = scalar_lea.vmem %s2, %s268
        %s270 = smul.u32 %s20, 8
        %s271 = sadd.s32 %s270, 8
        %p272 = scmp.lt.s32.totalorder %s271, 7
        %s273 = scalar_select %p272, %s271, 7
      $region32: #{down_forward.5} parent=19 // pred_fallthru
        _
    $region20: #{down_forward.5} parent=5 // pred_fallthru
      _
    %p274 = scmp.le.s32.totalorder 1, %s12
    %p275 = scmp.lt.s32.totalorder %s12, 3
    %p276 = pnand %p274, %p275
    %p277 = pneg %p276
    // Predicated region
    $region33: #{down_forward.5} parent=5 // pred_check
      _
    $region34: #{down_forward.5} parent=5 // pred_check_branch
      %279 = sbr.rel (%p276) target = $region36
    $region35: #{down_forward.5} parent=5 // pred_region
      %s280 = ssub.s32 %s12, 1
      %s281 = smul.u32 %s22, 8
      %s282 = ssub.s32 %s281, 1
      %p283 = scmp.gt.s32.totalorder %s282, 0
      %s284 = scalar_select %p283, %s282, 0
      %p285 = scmp.lt.s32.totalorder %s21, 1
      %s286 = scalar_select %p285, %s21, 1
      %p287 = scmp.lt.s32.totalorder %s284, 7
      %s288 = scalar_select %p287, %s284, 7
      %s289 = smul.addr %s286, 8
      %s290 = sadd.s32 %s288, %s289
      %s291 = smul.addr %s290, 4
      %s292 = scalar_lea.vmem %s0, %s291
      %p293 = pneg %p60
      %p294 = pneg %p57
      %s295 = smul.u32 8, %s22
      %p296 = scmp.lt.s32.totalorder %s21, 1
      %s297 = scalar_select %p296, %s21, 1
      %p298 = scmp.lt.s32.totalorder %s295, 7
      %s299 = scalar_select %p298, %s295, 7
      %s300 = smul.addr %s297, 8
      %s301 = sadd.s32 %s299, %s300
      %s302 = smul.addr %s301, 4
      %s303 = scalar_lea.vmem %s1, %s302
      %p304 = pneg %p88
      %p305 = pneg %p85
      %s306 = smul.u32 %s22, 8
      %s307 = sadd.s32 %s306, 8
      %p308 = scmp.lt.s32.totalorder %s307, 7
      %s309 = scalar_select %p308, %s307, 7
      %p310 = scmp.lt.s32.totalorder %s21, 1
      %s311 = scalar_select %p310, %s21, 1
      %p312 = scmp.lt.s32.totalorder %s309, 7
      %s313 = scalar_select %p312, %s309, 7
      %s314 = smul.addr %s311, 8
      %s315 = sadd.s32 %s313, %s314
      %s316 = smul.addr %s315, 4
      %s317 = scalar_lea.vmem %s2, %s316
      %p318 = pneg %p124
      %p319 = pneg %p121
      %p320 = pneg %p145
      %p321 = pneg %p142
      %p322 = pneg %p173
      %p323 = pneg %p170
      %s324 = smul.u32 8, %s22
      %p325 = scmp.lt.s32.totalorder %s21, 1
      %s326 = scalar_select %p325, %s21, 1
      %p327 = scmp.lt.s32.totalorder %s324, 7
      %s328 = scalar_select %p327, %s324, 7
      %s329 = smul.addr %s326, 8
      %s330 = sadd.s32 %s328, %s329
      %s331 = smul.addr %s330, 8
      %s332 = scalar_lea.vmem %s4, %s331
      %p333 = pneg %p201
      %p334 = pneg %p198
      %p335 = scmp.lt.s32.totalorder %s21, 1
      %s336 = scalar_select %p335, %s21, 1
      %p337 = scmp.lt.s32.totalorder %s22, 0
      %s338 = scalar_select %p337, %s22, 0
      %s339 = sadd.s32 %s338, %s336
      %s340 = smul.addr %s339, 2
      %s341 = scalar_lea.vmem %s5, %s340
      %s342 = smul.u32 %s22, 8
      %s343 = ssub.s32 %s342, 1
      %p344 = scmp.gt.s32.totalorder %s343, 0
      %s345 = scalar_select %p344, %s343, 0
      %p346 = scmp.lt.s32.totalorder %s21, 1
      %s347 = scalar_select %p346, %s21, 1
      %p348 = scmp.lt.s32.totalorder %s345, 7
      %s349 = scalar_select %p348, %s345, 7
      %s350 = smul.addr %s347, 8
      %s351 = sadd.s32 %s349, %s350
      %s352 = smul.addr %s351, 4
      %s353 = scalar_lea.vmem %s0, %s352
      %s354 = smul.u32 %s22, 8
      %s355 = ssub.s32 %s354, 1
      %p356 = scmp.gt.s32.totalorder %s355, 0
      %s357 = scalar_select %p356, %s355, 0
      %s358 = smul.u32 8, %s22
      %p359 = scmp.lt.s32.totalorder %s21, 1
      %s360 = scalar_select %p359, %s21, 1
      %p361 = scmp.lt.s32.totalorder %s358, 7
      %s362 = scalar_select %p361, %s358, 7
      %s363 = smul.addr %s360, 8
      %s364 = sadd.s32 %s362, %s363
      %s365 = smul.addr %s364, 4
      %s366 = scalar_lea.vmem %s1, %s365
      %s367 = smul.u32 8, %s22
      %s368 = smul.u32 %s22, 8
      %s369 = sadd.s32 %s368, 8
      %p370 = scmp.lt.s32.totalorder %s369, 7
      %s371 = scalar_select %p370, %s369, 7
      %p372 = scmp.lt.s32.totalorder %s21, 1
      %s373 = scalar_select %p372, %s21, 1
      %p374 = scmp.lt.s32.totalorder %s371, 7
      %s375 = scalar_select %p374, %s371, 7
      %s376 = smul.addr %s373, 8
      %s377 = sadd.s32 %s375, %s376
      %s378 = smul.addr %s377, 4
      %s379 = scalar_lea.vmem %s2, %s378
      %s380 = smul.u32 %s22, 8
      %s381 = sadd.s32 %s380, 8
      %p382 = scmp.lt.s32.totalorder %s381, 7
      %s383 = scalar_select %p382, %s381, 7
      %s384 = smul.u32 8, %s22
      %p385 = scmp.lt.s32.totalorder %s21, 1
      %s386 = scalar_select %p385, %s21, 1
      %p387 = scmp.lt.s32.totalorder %s384, 7
      %s388 = scalar_select %p387, %s384, 7
      %s389 = smul.addr %s386, 8
      %s390 = sadd.s32 %s388, %s389
      %s391 = smul.addr %s390, 8
      %s392 = scalar_lea.vmem %s4, %s391
      %s393 = smul.u32 8, %s22
      %p394 = scmp.lt.s32.totalorder %s21, 1
      %s395 = scalar_select %p394, %s21, 1
      %p396 = scmp.lt.s32.totalorder %s22, 0
      %s397 = scalar_select %p396, %s22, 0
      %s398 = sadd.s32 %s397, %s395
      %s399 = smul.addr %s398, 2
      %s400 = scalar_lea.vmem %s5, %s399
      %v402 = vld [vmem:[%s353] sm:$0xf]
      %v404 = vshrl.u32 %v402, 16
      %v406 = vrot.slane %v404, 7
      %v407 = vshll.u32 %v402, 16
      %v409 = vor.u32 %v406, %v407
      %v410 = vrot.slane %v406, 4
      %vm413 = vcmask 1043456
      %vm414 = vsmask.f32 7938
      %vm415 = vmand %vm413, %vm414
      %v416 = vld [vmem:[#allocation2] sm:$0xf]
      %v417 = vsel %vm415, %v409, %v416
      %418 = vst [vmem:[#allocation2] sm:$0xf] %v417
      %vm419 = vcmask 1040384
      %vm420 = vsmask.f32 256
      %vm421 = vmand %vm419, %vm420
      %v422 = vld [vmem:[#allocation2 + $0x4] sm:$0x1]
      %v423 = vsel %vm421, %v410, %v422
      %424 = vst [vmem:[#allocation2 + $0x4] sm:$0x1] %v423
      %v425 = vld [vmem:[%s366] sm:$0xf]
      %v426 = vld [vmem:[%s366 + $0x4] sm:$0xf]
      %v427 = vld [vmem:[%s366 + $0x8] sm:$0xf]
      %v428 = vld [vmem:[%s366 + $0xc] sm:$0xf]
      %v429 = vld [vmem:[%s366 + $0x10] sm:$0xf]
      %v430 = vld [vmem:[%s366 + $0x14] sm:$0xf]
      %v431 = vld [vmem:[%s366 + $0x18] sm:$0xf]
      %v432 = vld [vmem:[%s366 + $0x1c] sm:$0xf]
      %v434 = vshrl.u32 %v425, 16
      %v436 = vrot.slane %v434, 7
      %v437 = vshll.u32 %v425, 16
      %v439 = vor.u32 %v436, %v437
      %v440 = vrot.slane %v436, 4
      %v442 = vshrl.u32 %v426, 16
      %v444 = vrot.slane %v442, 7
      %v445 = vshll.u32 %v426, 16
      %v447 = vor.u32 %v444, %v445
      %v448 = vrot.slane %v444, 4
      %v450 = vshrl.u32 %v427, 16
      %v452 = vrot.slane %v450, 7
      %v453 = vshll.u32 %v427, 16
      %v455 = vor.u32 %v452, %v453
      %v456 = vrot.slane %v452, 4
      %v458 = vshrl.u32 %v428, 16
      %v460 = vrot.slane %v458, 7
      %v461 = vshll.u32 %v428, 16
      %v463 = vor.u32 %v460, %v461
      %v464 = vrot.slane %v460, 4
      %v466 = vshrl.u32 %v429, 16
      %v468 = vrot.slane %v466, 7
      %v469 = vshll.u32 %v429, 16
      %v471 = vor.u32 %v468, %v469
      %v472 = vrot.slane %v468, 4
      %v474 = vshrl.u32 %v430, 16
      %v476 = vrot.slane %v474, 7
      %v477 = vshll.u32 %v430, 16
      %v479 = vor.u32 %v476, %v477
      %v480 = vrot.slane %v476, 4
      %v482 = vshrl.u32 %v431, 16
      %v484 = vrot.slane %v482, 7
      %v485 = vshll.u32 %v431, 16
      %v487 = vor.u32 %v484, %v485
      %v488 = vrot.slane %v484, 4
      %v490 = vshrl.u32 %v432, 16
      %v492 = vrot.slane %v490, 7
      %v493 = vshll.u32 %v432, 16
      %v495 = vor.u32 %v492, %v493
      %v496 = vrot.slane %v492, 4
      %s513 = scalar_lea.vmem [#allocation2], 8
      %v514 = vld [vmem:[%s513] sm:$0xf]
      %v515 = vsel %vm415, %v439, %v514
      %516 = vst [vmem:[%s513] sm:$0xf] %v515
      %v517 = vld [vmem:[%s513 + $0x4] sm:$0x1]
      %v518 = vsel %vm421, %v440, %v517
      %519 = vst [vmem:[%s513 + $0x4] sm:$0x1] %v518
      %v520 = vld [vmem:[%s513 + $0x8] sm:$0xf]
      %v521 = vsel %vm415, %v447, %v520
      %522 = vst [vmem:[%s513 + $0x8] sm:$0xf] %v521
      %v523 = vld [vmem:[%s513 + $0xc] sm:$0x1]
      %v524 = vsel %vm421, %v448, %v523
      %525 = vst [vmem:[%s513 + $0xc] sm:$0x1] %v524
      %v526 = vld [vmem:[%s513 + $0x10] sm:$0xf]
      %v527 = vsel %vm415, %v455, %v526
      %528 = vst [vmem:[%s513 + $0x10] sm:$0xf] %v527
      %v529 = vld [vmem:[%s513 + $0x14] sm:$0x1]
      %v530 = vsel %vm421, %v456, %v529
      %531 = vst [vmem:[%s513 + $0x14] sm:$0x1] %v530
      %v532 = vld [vmem:[%s513 + $0x18] sm:$0xf]
      %v533 = vsel %vm415, %v463, %v532
      %534 = vst [vmem:[%s513 + $0x18] sm:$0xf] %v533
      %v535 = vld [vmem:[%s513 + $0x1c] sm:$0x1]
      %v536 = vsel %vm421, %v464, %v535
      %537 = vst [vmem:[%s513 + $0x1c] sm:$0x1] %v536
      %v538 = vld [vmem:[%s513 + $0x20] sm:$0xf]
      %v539 = vsel %vm415, %v471, %v538
      %540 = vst [vmem:[%s513 + $0x20] sm:$0xf] %v539
      %v541 = vld [vmem:[%s513 + $0x24] sm:$0x1]
      %v542 = vsel %vm421, %v472, %v541
      %543 = vst [vmem:[%s513 + $0x24] sm:$0x1] %v542
      %v544 = vld [vmem:[%s513 + $0x28] sm:$0xf]
      %v545 = vsel %vm415, %v479, %v544
      %546 = vst [vmem:[%s513 + $0x28] sm:$0xf] %v545
      %v547 = vld [vmem:[%s513 + $0x2c] sm:$0x1]
      %v548 = vsel %vm421, %v480, %v547
      %549 = vst [vmem:[%s513 + $0x2c] sm:$0x1] %v548
      %v550 = vld [vmem:[%s513 + $0x30] sm:$0xf]
      %v551 = vsel %vm415, %v487, %v550
      %552 = vst [vmem:[%s513 + $0x30] sm:$0xf] %v551
      %v553 = vld [vmem:[%s513 + $0x34] sm:$0x1]
      %v554 = vsel %vm421, %v488, %v553
      %555 = vst [vmem:[%s513 + $0x34] sm:$0x1] %v554
      %v556 = vld [vmem:[%s513 + $0x38] sm:$0xf]
      %v557 = vsel %vm415, %v495, %v556
      %558 = vst [vmem:[%s513 + $0x38] sm:$0xf] %v557
      %v559 = vld [vmem:[%s513 + $0x3c] sm:$0x1]
      %v560 = vsel %vm421, %v496, %v559
      %561 = vst [vmem:[%s513 + $0x3c] sm:$0x1] %v560
      %v562 = vld [vmem:[%s379] sm:$0xf]
      %v564 = vshrl.u32 %v562, 16
      %v566 = vrot.slane %v564, 7
      %v567 = vshll.u32 %v562, 16
      %v569 = vor.u32 %v566, %v567
      %v570 = vrot.slane %v566, 4
      %s573 = scalar_lea.vmem [#allocation2], 72
      %v574 = vld [vmem:[%s573] sm:$0xf]
      %v575 = vsel %vm415, %v569, %v574
      %576 = vst [vmem:[%s573] sm:$0xf] %v575
      %v577 = vld [vmem:[%s573 + $0x4] sm:$0x1]
      %v578 = vsel %vm421, %v570, %v577
      %579 = vst [vmem:[%s573 + $0x4] sm:$0x1] %v578
      %v580 = vld [vmem:[#allocation2] sm:$0x1]
      %v581 = vsel %vm421, 0, %v580
      %582 = vst [vmem:[#allocation2] sm:$0x1] %v581
      %v583 = vld [vmem:[#allocation2 + $0x8] sm:$0x1]
      %v584 = vsel %vm421, 0, %v583
      %585 = vst [vmem:[#allocation2 + $0x8] sm:$0x1] %v584
      %v586 = vld [vmem:[#allocation2 + $0x10] sm:$0x1]
      %v587 = vsel %vm421, 0, %v586
      %588 = vst [vmem:[#allocation2 + $0x10] sm:$0x1] %v587
      %v589 = vld [vmem:[#allocation2 + $0x18] sm:$0x1]
      %v590 = vsel %vm421, 0, %v589
      %591 = vst [vmem:[#allocation2 + $0x18] sm:$0x1] %v590
      %v592 = vld [vmem:[#allocation2 + $0x20] sm:$0x1]
      %v593 = vsel %vm421, 0, %v592
      %594 = vst [vmem:[#allocation2 + $0x20] sm:$0x1] %v593
      %v595 = vld [vmem:[#allocation2 + $0x28] sm:$0x1]
      %v596 = vsel %vm421, 0, %v595
      %597 = vst [vmem:[#allocation2 + $0x28] sm:$0x1] %v596
      %v598 = vld [vmem:[#allocation2 + $0x30] sm:$0x1]
      %v599 = vsel %vm421, 0, %v598
      %600 = vst [vmem:[#allocation2 + $0x30] sm:$0x1] %v599
      %v601 = vld [vmem:[#allocation2 + $0x38] sm:$0x1]
      %v602 = vsel %vm421, 0, %v601
      %603 = vst [vmem:[#allocation2 + $0x38] sm:$0x1] %v602
      %v604 = vld [vmem:[#allocation2 + $0x40] sm:$0x1]
      %v605 = vsel %vm421, 0, %v604
      %606 = vst [vmem:[#allocation2 + $0x40] sm:$0x1] %v605
      %v607 = vld [vmem:[#allocation2 + $0x48] sm:$0x1]
      %v608 = vsel %vm421, 0, %v607
      %609 = vst [vmem:[#allocation2 + $0x48] sm:$0x1] %v608
      %vm610 = vmand %vm419, %vm414
      %v611 = vld [vmem:[#allocation2 + $0x4] sm:$0x1]
      %v612 = vsel %vm610, 0, %v611
      %613 = vst [vmem:[#allocation2 + $0x4] sm:$0x1] %v612
      %v614 = vld [vmem:[#allocation2 + $0xc] sm:$0x1]
      %v615 = vsel %vm610, 0, %v614
      %616 = vst [vmem:[#allocation2 + $0xc] sm:$0x1] %v615
      %v617 = vld [vmem:[#allocation2 + $0x14] sm:$0x1]
      %v618 = vsel %vm610, 0, %v617
      %619 = vst [vmem:[#allocation2 + $0x14] sm:$0x1] %v618
      %v620 = vld [vmem:[#allocation2 + $0x1c] sm:$0x1]
      %v621 = vsel %vm610, 0, %v620
      %622 = vst [vmem:[#allocation2 + $0x1c] sm:$0x1] %v621
      %v623 = vld [vmem:[#allocation2 + $0x24] sm:$0x1]
      %v624 = vsel %vm610, 0, %v623
      %625 = vst [vmem:[#allocation2 + $0x24] sm:$0x1] %v624
      %v626 = vld [vmem:[#allocation2 + $0x2c] sm:$0x1]
      %v627 = vsel %vm610, 0, %v626
      %628 = vst [vmem:[#allocation2 + $0x2c] sm:$0x1] %v627
      %v629 = vld [vmem:[#allocation2 + $0x34] sm:$0x1]
      %v630 = vsel %vm610, 0, %v629
      %631 = vst [vmem:[#allocation2 + $0x34] sm:$0x1] %v630
      %v632 = vld [vmem:[#allocation2 + $0x3c] sm:$0x1]
      %v633 = vsel %vm610, 0, %v632
      %634 = vst [vmem:[#allocation2 + $0x3c] sm:$0x1] %v633
      %v635 = vld [vmem:[#allocation2 + $0x44] sm:$0x1]
      %v636 = vsel %vm610, 0, %v635
      %637 = vst [vmem:[#allocation2 + $0x44] sm:$0x1] %v636
      %v638 = vld [vmem:[#allocation2 + $0x4c] sm:$0x1]
      %v639 = vsel %vm610, 0, %v638
      %640 = vst [vmem:[#allocation2 + $0x4c] sm:$0x1] %v639
      %p641 = scmp.eq.s32.totalorder %s22, 0
      // Predicated region
      $region37: #{down_forward.5} parent=35 // pred_check
        %p642 = pneg %p641
      $region38: #{down_forward.5} parent=35 // pred_check_branch
        %644 = sbr.rel (%p642) target = $region40
      $region39: #{down_forward.5} parent=35 // pred_region
        %645 = vst [vmem:[#allocation2] sm:$0xf] 0
        %646 = vst [vmem:[#allocation2 + $0x4] sm:$0x1] 0
        %647 = vst [vmem:[%s573] sm:$0xf] 0
        %648 = vst [vmem:[%s573 + $0x4] sm:$0x1] 0
      $region40: #{down_forward.5} parent=35 // pred_fallthru
        _
      %v649 = vld [vmem:[#allocation2] sm:$0xf]
      %v650 = vld [vmem:[#allocation2 + $0x8] sm:$0xf]
      %v651 = vld [vmem:[#allocation2 + $0x10] sm:$0xf]
      %v652 = vld [vmem:[#allocation2 + $0x18] sm:$0xf]
      %v653 = vld [vmem:[#allocation2 + $0x20] sm:$0xf]
      %v654 = vld [vmem:[#allocation2 + $0x28] sm:$0xf]
      %v655 = vld [vmem:[#allocation2 + $0x30] sm:$0xf]
      %v656 = vld [vmem:[#allocation2 + $0x38] sm:$0xf]
      %v657 = vld [vmem:[%s3] sm:$0xf]
      %v658 = vld [vmem:[%s3 + $0x4] sm:$0xf]
      %v659 = vld [vmem:[%s3 + $0x8] sm:$0xf]
      %v660 = vld [vmem:[%s3 + $0xc] sm:$0xf]
      %v661 = vld [vmem:[%s3 + $0x10] sm:$0xf]
      %v662 = vld [vmem:[%s3 + $0x14] sm:$0xf]
      %v663 = vld [vmem:[%s3 + $0x18] sm:$0xf]
      %v664 = vld [vmem:[%s3 + $0x1c] sm:$0xf]
      %v665 = vld [vmem:[%s3 + $0x20] sm:$0xf]
      %v666 = vld [vmem:[%s3 + $0x24] sm:$0xf]
      %v667 = vld [vmem:[%s3 + $0x28] sm:$0xf]
      %v668 = vld [vmem:[%s3 + $0x2c] sm:$0xf]
      %v669 = vld [vmem:[%s3 + $0x30] sm:$0xf]
      %v670 = vld [vmem:[%s3 + $0x34] sm:$0xf]
      %v671 = vld [vmem:[%s3 + $0x38] sm:$0xf]
      %v672 = vld [vmem:[%s3 + $0x3c] sm:$0xf]
      %v673 = vld [vmem:[#allocation2 + $0x4] sm:$0x1]
      %v674 = vld [vmem:[#allocation2 + $0xc] sm:$0x1]
      %v675 = vld [vmem:[#allocation2 + $0x14] sm:$0x1]
      %v676 = vld [vmem:[#allocation2 + $0x1c] sm:$0x1]
      %v677 = vld [vmem:[#allocation2 + $0x24] sm:$0x1]
      %v678 = vld [vmem:[#allocation2 + $0x2c] sm:$0x1]
      %v679 = vld [vmem:[#allocation2 + $0x34] sm:$0x1]
      %v680 = vld [vmem:[#allocation2 + $0x3c] sm:$0x1]
      %vm681 = vsmask.f32 3328
      %vm682 = vsmask.f32 7440
      %vm683 = vmor %vm681, %vm682
      %v685 = vshrl.u32 %v649, 16
      %v687 = vrot.slane %v685, 4
      %v688 = vshll.u32 %v649, 16
      %v690 = vrot.slane %v688, 5
      %v691 = vor.u32 %v687, %v690
      %v692 = vrot.slane %v691, 4
      %v694 = vshll.u32 %v673, 16
      %v696 = vrot.slane %v694, 5
      %v697 = vsel %vm683, %v692, %v696
      %v699 = vshrl.u32 %v650, 16
      %v701 = vrot.slane %v699, 4
      %v702 = vshll.u32 %v650, 16
      %v704 = vrot.slane %v702, 5
      %v705 = vor.u32 %v701, %v704
      %v706 = vrot.slane %v705, 4
      %v708 = vshll.u32 %v674, 16
      %v710 = vrot.slane %v708, 5
      %v711 = vsel %vm683, %v706, %v710
      %v713 = vshrl.u32 %v651, 16
      %v715 = vrot.slane %v713, 4
      %v716 = vshll.u32 %v651, 16
      %v718 = vrot.slane %v716, 5
      %v719 = vor.u32 %v715, %v718
      %v720 = vrot.slane %v719, 4
      %v722 = vshll.u32 %v675, 16
      %v724 = vrot.slane %v722, 5
      %v725 = vsel %vm683, %v720, %v724
      %v727 = vshrl.u32 %v652, 16
      %v729 = vrot.slane %v727, 4
      %v730 = vshll.u32 %v652, 16
      %v732 = vrot.slane %v730, 5
      %v733 = vor.u32 %v729, %v732
      %v734 = vrot.slane %v733, 4
      %v736 = vshll.u32 %v676, 16
      %v738 = vrot.slane %v736, 5
      %v739 = vsel %vm683, %v734, %v738
      %v741 = vshrl.u32 %v653, 16
      %v743 = vrot.slane %v741, 4
      %v744 = vshll.u32 %v653, 16
      %v746 = vrot.slane %v744, 5
      %v747 = vor.u32 %v743, %v746
      %v748 = vrot.slane %v747, 4
      %v750 = vshll.u32 %v677, 16
      %v752 = vrot.slane %v750, 5
      %v753 = vsel %vm683, %v748, %v752
      %v755 = vshrl.u32 %v654, 16
      %v757 = vrot.slane %v755, 4
      %v758 = vshll.u32 %v654, 16
      %v760 = vrot.slane %v758, 5
      %v761 = vor.u32 %v757, %v760
      %v762 = vrot.slane %v761, 4
      %v764 = vshll.u32 %v678, 16
      %v766 = vrot.slane %v764, 5
      %v767 = vsel %vm683, %v762, %v766
      %v769 = vshrl.u32 %v655, 16
      %v771 = vrot.slane %v769, 4
      %v772 = vshll.u32 %v655, 16
      %v774 = vrot.slane %v772, 5
      %v775 = vor.u32 %v771, %v774
      %v776 = vrot.slane %v775, 4
      %v778 = vshll.u32 %v679, 16
      %v780 = vrot.slane %v778, 5
      %v781 = vsel %vm683, %v776, %v780
      %v783 = vshrl.u32 %v656, 16
      %v785 = vrot.slane %v783, 4
      %v786 = vshll.u32 %v656, 16
      %v788 = vrot.slane %v786, 5
      %v789 = vor.u32 %v785, %v788
      %v790 = vrot.slane %v789, 4
      %v792 = vshll.u32 %v680, 16
      %v794 = vrot.slane %v792, 5
      %v795 = vsel %vm683, %v790, %v794
      %s796 = scalar_lea.vmem %s3, 64
      %v797 = vld [vmem:[%s796] sm:$0xf]
      %v798 = vld [vmem:[%s796 + $0x4] sm:$0xf]
      %v799 = vld [vmem:[%s796 + $0x8] sm:$0xf]
      %v800 = vld [vmem:[%s796 + $0xc] sm:$0xf]
      %v801 = vld [vmem:[%s796 + $0x10] sm:$0xf]
      %v802 = vld [vmem:[%s796 + $0x14] sm:$0xf]
      %v803 = vld [vmem:[%s796 + $0x18] sm:$0xf]
      %v804 = vld [vmem:[%s796 + $0x1c] sm:$0xf]
      %v805 = vld [vmem:[%s796 + $0x20] sm:$0xf]
      %v806 = vld [vmem:[%s796 + $0x24] sm:$0xf]
      %v807 = vld [vmem:[%s796 + $0x28] sm:$0xf]
      %v808 = vld [vmem:[%s796 + $0x2c] sm:$0xf]
      %v809 = vld [vmem:[%s796 + $0x30] sm:$0xf]
      %v810 = vld [vmem:[%s796 + $0x34] sm:$0xf]
      %v811 = vld [vmem:[%s796 + $0x38] sm:$0xf]
      %v812 = vld [vmem:[%s796 + $0x3c] sm:$0xf]
      %v813 = vunpack.c.l.b16 %v697
      %v814 = vunpack.c.l.b16 %v711
      %v815 = vunpack.c.l.b16 %v725
      %v816 = vunpack.c.l.b16 %v739
      %v817 = vunpack.c.l.b16 %v753
      %v818 = vunpack.c.l.b16 %v767
      %v819 = vunpack.c.l.b16 %v781
      %v820 = vunpack.c.l.b16 %v795
      %v821 = vpack.c.b16 %v814, %v813
      %v822 = vpack.c.b16 %v816, %v815
      %v823 = vpack.c.b16 %v818, %v817
      %v824 = vpack.c.b16 %v820, %v819
      %v845 = vunpack.c.l.b16 %v797
      %v846 = vunpack.c.l.b16 %v798
      %v847 = vunpack.c.l.b16 %v799
      %v848 = vunpack.c.l.b16 %v800
      %v849 = vunpack.c.l.b16 %v801
      %v850 = vunpack.c.l.b16 %v802
      %v851 = vunpack.c.l.b16 %v803
      %v852 = vunpack.c.l.b16 %v804
      %v853 = vunpack.c.l.b16 %v805
      %v854 = vunpack.c.l.b16 %v806
      %v855 = vunpack.c.l.b16 %v807
      %v856 = vunpack.c.l.b16 %v808
      %v857 = vunpack.c.l.b16 %v809
      %v858 = vunpack.c.l.b16 %v810
      %v859 = vunpack.c.l.b16 %v811
      %v860 = vunpack.c.l.b16 %v812
      %v861 = vpack.c.b16 %v846, %v845
      %v862 = vpack.c.b16 %v848, %v847
      %v863 = vpack.c.b16 %v850, %v849
      %v864 = vpack.c.b16 %v852, %v851
      %v865 = vpack.c.b16 %v854, %v853
      %v866 = vpack.c.b16 %v856, %v855
      %v867 = vpack.c.b16 %v858, %v857
      %v868 = vpack.c.b16 %v860, %v859
      %877 = vmatpush.bf16.msra.mxu0 %v868
      %878 = vmatpush.bf16.msra.mxu0 %v867
      %879 = vmatpush.bf16.msra.mxu0 %v866
      %880 = vmatpush.bf16.msra.mxu0 %v865
      %881 = vmatpush.bf16.msra.mxu0 %v864
      %882 = vmatpush.bf16.msra.mxu0 %v863
      %883 = vmatpush.bf16.msra.mxu0 %v862
      %884 = vmatpush.bf16.msra.mxu0 %v861
      %885 = vmatmul.bf16.gmra.mxu0 %v821
      %v886 = vpop.f32.mrf.mxu0
      %v887 = vadd.f32 0.0, %v886
      %v888 = vpop.f32.mrf.mxu0
      %v889 = vadd.f32 0.0, %v888
      %890 = vmatmul.bf16.gmra.mxu0 %v822
      %v891 = vpop.f32.mrf.mxu0
      %v892 = vadd.f32 0.0, %v891
      %v893 = vpop.f32.mrf.mxu0
      %v894 = vadd.f32 0.0, %v893
      %895 = vmatmul.bf16.gmra.mxu0 %v823
      %v896 = vpop.f32.mrf.mxu0
      %v897 = vadd.f32 0.0, %v896
      %v898 = vpop.f32.mrf.mxu0
      %v899 = vadd.f32 0.0, %v898
      %900 = vmatmul.bf16.gmra.mxu0 %v824
      %v901 = vpop.f32.mrf.mxu0
      %v902 = vadd.f32 0.0, %v901
      %v903 = vpop.f32.mrf.mxu0
      %v904 = vadd.f32 0.0, %v903
      %905 = vdwg.mxu0
      %v914 = vunpack.c.l.b16 %v649
      %v915 = vunpack.c.l.b16 %v650
      %v916 = vunpack.c.l.b16 %v651
      %v917 = vunpack.c.l.b16 %v652
      %v918 = vunpack.c.l.b16 %v653
      %v919 = vunpack.c.l.b16 %v654
      %v920 = vunpack.c.l.b16 %v655
      %v921 = vunpack.c.l.b16 %v656
      %v922 = vpack.c.b16 %v915, %v914
      %v923 = vpack.c.b16 %v917, %v916
      %v924 = vpack.c.b16 %v919, %v918
      %v925 = vpack.c.b16 %v921, %v920
      %v946 = vunpack.c.l.b16 %v657
      %v947 = vunpack.c.l.b16 %v658
      %v948 = vunpack.c.l.b16 %v659
      %v949 = vunpack.c.l.b16 %v660
      %v950 = vunpack.c.l.b16 %v661
      %v951 = vunpack.c.l.b16 %v662
      %v952 = vunpack.c.l.b16 %v663
      %v953 = vunpack.c.l.b16 %v664
      %v954 = vunpack.c.l.b16 %v665
      %v955 = vunpack.c.l.b16 %v666
      %v956 = vunpack.c.l.b16 %v667
      %v957 = vunpack.c.l.b16 %v668
      %v958 = vunpack.c.l.b16 %v669
      %v959 = vunpack.c.l.b16 %v670
      %v960 = vunpack.c.l.b16 %v671
      %v961 = vunpack.c.l.b16 %v672
      %v962 = vpack.c.b16 %v947, %v946
      %v963 = vpack.c.b16 %v949, %v948
      %v964 = vpack.c.b16 %v951, %v950
      %v965 = vpack.c.b16 %v953, %v952
      %v966 = vpack.c.b16 %v955, %v954
      %v967 = vpack.c.b16 %v957, %v956
      %v968 = vpack.c.b16 %v959, %v958
      %v969 = vpack.c.b16 %v961, %v960
      %978 = vmatpush.bf16.msra.mxu0 %v969
      %979 = vmatpush.bf16.msra.mxu0 %v968
      %980 = vmatpush.bf16.msra.mxu0 %v967
      %981 = vmatpush.bf16.msra.mxu0 %v966
      %982 = vmatpush.bf16.msra.mxu0 %v965
      %983 = vmatpush.bf16.msra.mxu0 %v964
      %984 = vmatpush.bf16.msra.mxu0 %v963
      %985 = vmatpush.bf16.msra.mxu0 %v962
      %986 = vmatmul.bf16.gmra.mxu0 %v922
      %v987 = vpop.f32.mrf.mxu0
      %v988 = vadd.f32 %v887, %v987
      %v989 = vpop.f32.mrf.mxu0
      %v990 = vadd.f32 %v889, %v989
      %991 = vmatmul.bf16.gmra.mxu0 %v923
      %v992 = vpop.f32.mrf.mxu0
      %v993 = vadd.f32 %v892, %v992
      %v994 = vpop.f32.mrf.mxu0
      %v995 = vadd.f32 %v894, %v994
      %996 = vmatmul.bf16.gmra.mxu0 %v924
      %v997 = vpop.f32.mrf.mxu0
      %v998 = vadd.f32 %v897, %v997
      %v999 = vpop.f32.mrf.mxu0
      %v1000 = vadd.f32 %v899, %v999
      %1001 = vmatmul.bf16.gmra.mxu0 %v925
      %v1002 = vpop.f32.mrf.mxu0
      %v1003 = vadd.f32 %v902, %v1002
      %v1004 = vpop.f32.mrf.mxu0
      %v1005 = vadd.f32 %v904, %v1004
      %1006 = vdwg.mxu0
      %v1007 = vld [vmem:[#allocation2] sm:$0xe]
      %v1008 = vld [vmem:[#allocation2 + $0x8] sm:$0xe]
      %v1009 = vld [vmem:[#allocation2 + $0x10] sm:$0xe]
      %v1010 = vld [vmem:[#allocation2 + $0x18] sm:$0xe]
      %v1011 = vld [vmem:[#allocation2 + $0x20] sm:$0xe]
      %v1012 = vld [vmem:[#allocation2 + $0x28] sm:$0xe]
      %v1013 = vld [vmem:[#allocation2 + $0x30] sm:$0xe]
      %v1014 = vld [vmem:[#allocation2 + $0x38] sm:$0xe]
      %vm1031 = vcmask 1042432
      %vm1032 = vcmask 1046532
      %vm1033 = vmor %vm1031, %vm1032
      %v1034 = vrot.slane %v1007, 5
      %v1035 = vrot.slane %v1034, 4
      %v1036 = vrot.slane %v673, 5
      %v1037 = vsel %vm1033, %v1035, %v1036
      %v1038 = vrot.slane %v1008, 5
      %v1039 = vrot.slane %v1038, 4
      %v1040 = vrot.slane %v674, 5
      %v1041 = vsel %vm1033, %v1039, %v1040
      %v1042 = vrot.slane %v1009, 5
      %v1043 = vrot.slane %v1042, 4
      %v1044 = vrot.slane %v675, 5
      %v1045 = vsel %vm1033, %v1043, %v1044
      %v1046 = vrot.slane %v1010, 5
      %v1047 = vrot.slane %v1046, 4
      %v1048 = vrot.slane %v676, 5
      %v1049 = vsel %vm1033, %v1047, %v1048
      %v1050 = vrot.slane %v1011, 5
      %v1051 = vrot.slane %v1050, 4
      %v1052 = vrot.slane %v677, 5
      %v1053 = vsel %vm1033, %v1051, %v1052
      %v1054 = vrot.slane %v1012, 5
      %v1055 = vrot.slane %v1054, 4
      %v1056 = vrot.slane %v678, 5
      %v1057 = vsel %vm1033, %v1055, %v1056
      %v1058 = vrot.slane %v1013, 5
      %v1059 = vrot.slane %v1058, 4
      %v1060 = vrot.slane %v679, 5
      %v1061 = vsel %vm1033, %v1059, %v1060
      %v1062 = vrot.slane %v1014, 5
      %v1063 = vrot.slane %v1062, 4
      %v1064 = vrot.slane %v680, 5
      %v1065 = vsel %vm1033, %v1063, %v1064
      %s1066 = scalar_lea.vmem %s3, 128
      %v1067 = vld [vmem:[%s1066] sm:$0xf]
      %v1068 = vld [vmem:[%s1066 + $0x4] sm:$0xf]
      %v1069 = vld [vmem:[%s1066 + $0x8] sm:$0xf]
      %v1070 = vld [vmem:[%s1066 + $0xc] sm:$0xf]
      %v1071 = vld [vmem:[%s1066 + $0x10] sm:$0xf]
      %v1072 = vld [vmem:[%s1066 + $0x14] sm:$0xf]
      %v1073 = vld [vmem:[%s1066 + $0x18] sm:$0xf]
      %v1074 = vld [vmem:[%s1066 + $0x1c] sm:$0xf]
      %v1075 = vld [vmem:[%s1066 + $0x20] sm:$0xf]
      %v1076 = vld [vmem:[%s1066 + $0x24] sm:$0xf]
      %v1077 = vld [vmem:[%s1066 + $0x28] sm:$0xf]
      %v1078 = vld [vmem:[%s1066 + $0x2c] sm:$0xf]
      %v1079 = vld [vmem:[%s1066 + $0x30] sm:$0xf]
      %v1080 = vld [vmem:[%s1066 + $0x34] sm:$0xf]
      %v1081 = vld [vmem:[%s1066 + $0x38] sm:$0xf]
      %v1082 = vld [vmem:[%s1066 + $0x3c] sm:$0xf]
      %v1083 = vunpack.c.l.b16 %v1037
      %v1084 = vunpack.c.l.b16 %v1041
      %v1085 = vunpack.c.l.b16 %v1045
      %v1086 = vunpack.c.l.b16 %v1049
      %v1087 = vunpack.c.l.b16 %v1053
      %v1088 = vunpack.c.l.b16 %v1057
      %v1089 = vunpack.c.l.b16 %v1061
      %v1090 = vunpack.c.l.b16 %v1065
      %v1091 = vpack.c.b16 %v1084, %v1083
      %v1092 = vpack.c.b16 %v1086, %v1085
      %v1093 = vpack.c.b16 %v1088, %v1087
      %v1094 = vpack.c.b16 %v1090, %v1089
      %v1115 = vunpack.c.l.b16 %v1067
      %v1116 = vunpack.c.l.b16 %v1068
      %v1117 = vunpack.c.l.b16 %v1069
      %v1118 = vunpack.c.l.b16 %v1070
      %v1119 = vunpack.c.l.b16 %v1071
      %v1120 = vunpack.c.l.b16 %v1072
      %v1121 = vunpack.c.l.b16 %v1073
      %v1122 = vunpack.c.l.b16 %v1074
      %v1123 = vunpack.c.l.b16 %v1075
      %v1124 = vunpack.c.l.b16 %v1076
      %v1125 = vunpack.c.l.b16 %v1077
      %v1126 = vunpack.c.l.b16 %v1078
      %v1127 = vunpack.c.l.b16 %v1079
      %v1128 = vunpack.c.l.b16 %v1080
      %v1129 = vunpack.c.l.b16 %v1081
      %v1130 = vunpack.c.l.b16 %v1082
      %v1131 = vpack.c.b16 %v1116, %v1115
      %v1132 = vpack.c.b16 %v1118, %v1117
      %v1133 = vpack.c.b16 %v1120, %v1119
      %v1134 = vpack.c.b16 %v1122, %v1121
      %v1135 = vpack.c.b16 %v1124, %v1123
      %v1136 = vpack.c.b16 %v1126, %v1125
      %v1137 = vpack.c.b16 %v1128, %v1127
      %v1138 = vpack.c.b16 %v1130, %v1129
      %1147 = vmatpush.bf16.msra.mxu0 %v1138
      %1148 = vmatpush.bf16.msra.mxu0 %v1137
      %1149 = vmatpush.bf16.msra.mxu0 %v1136
      %1150 = vmatpush.bf16.msra.mxu0 %v1135
      %1151 = vmatpush.bf16.msra.mxu0 %v1134
      %1152 = vmatpush.bf16.msra.mxu0 %v1133
      %1153 = vmatpush.bf16.msra.mxu0 %v1132
      %1154 = vmatpush.bf16.msra.mxu0 %v1131
      %1155 = vmatmul.bf16.gmra.mxu0 %v1091
      %v1156 = vpop.f32.mrf.mxu0
      %v1157 = vadd.f32 0.0, %v1156
      %v1158 = vpop.f32.mrf.mxu0
      %v1159 = vadd.f32 0.0, %v1158
      %1160 = vmatmul.bf16.gmra.mxu0 %v1092
      %v1161 = vpop.f32.mrf.mxu0
      %v1162 = vadd.f32 0.0, %v1161
      %v1163 = vpop.f32.mrf.mxu0
      %v1164 = vadd.f32 0.0, %v1163
      %1165 = vmatmul.bf16.gmra.mxu0 %v1093
      %v1166 = vpop.f32.mrf.mxu0
      %v1167 = vadd.f32 0.0, %v1166
      %v1168 = vpop.f32.mrf.mxu0
      %v1169 = vadd.f32 0.0, %v1168
      %1170 = vmatmul.bf16.gmra.mxu0 %v1094
      %v1171 = vpop.f32.mrf.mxu0
      %v1172 = vadd.f32 0.0, %v1171
      %v1173 = vpop.f32.mrf.mxu0
      %v1174 = vadd.f32 0.0, %v1173
      %1175 = vdwg.mxu0
      %v1176 = vadd.f32 %v988, %v1157
      %v1177 = vadd.f32 %v990, %v1159
      %v1178 = vadd.f32 %v993, %v1162
      %v1179 = vadd.f32 %v995, %v1164
      %v1180 = vadd.f32 %v998, %v1167
      %v1181 = vadd.f32 %v1000, %v1169
      %v1182 = vadd.f32 %v1003, %v1172
      %v1183 = vadd.f32 %v1005, %v1174
      %v1184 = vld [vmem:[%s513] sm:$0xf]
      %v1185 = vld [vmem:[%s513 + $0x8] sm:$0xf]
      %v1186 = vld [vmem:[%s513 + $0x10] sm:$0xf]
      %v1187 = vld [vmem:[%s513 + $0x18] sm:$0xf]
      %v1188 = vld [vmem:[%s513 + $0x20] sm:$0xf]
      %v1189 = vld [vmem:[%s513 + $0x28] sm:$0xf]
      %v1190 = vld [vmem:[%s513 + $0x30] sm:$0xf]
      %v1191 = vld [vmem:[%s513 + $0x38] sm:$0xf]
      %s1192 = scalar_lea.vmem %s3, 192
      %v1193 = vld [vmem:[%s1192] sm:$0xf]
      %v1194 = vld [vmem:[%s1192 + $0x4] sm:$0xf]
      %v1195 = vld [vmem:[%s1192 + $0x8] sm:$0xf]
      %v1196 = vld [vmem:[%s1192 + $0xc] sm:$0xf]
      %v1197 = vld [vmem:[%s1192 + $0x10] sm:$0xf]
      %v1198 = vld [vmem:[%s1192 + $0x14] sm:$0xf]
      %v1199 = vld [vmem:[%s1192 + $0x18] sm:$0xf]
      %v1200 = vld [vmem:[%s1192 + $0x1c] sm:$0xf]
      %v1201 = vld [vmem:[%s1192 + $0x20] sm:$0xf]
      %v1202 = vld [vmem:[%s1192 + $0x24] sm:$0xf]
      %v1203 = vld [vmem:[%s1192 + $0x28] sm:$0xf]
      %v1204 = vld [vmem:[%s1192 + $0x2c] sm:$0xf]
      %v1205 = vld [vmem:[%s1192 + $0x30] sm:$0xf]
      %v1206 = vld [vmem:[%s1192 + $0x34] sm:$0xf]
      %v1207 = vld [vmem:[%s1192 + $0x38] sm:$0xf]
      %v1208 = vld [vmem:[%s1192 + $0x3c] sm:$0xf]
      %v1217 = vunpack.c.l.b16 %v1184
      %v1218 = vunpack.c.l.b16 %v1185
      %v1219 = vunpack.c.l.b16 %v1186
      %v1220 = vunpack.c.l.b16 %v1187
      %v1221 = vunpack.c.l.b16 %v1188
      %v1222 = vunpack.c.l.b16 %v1189
      %v1223 = vunpack.c.l.b16 %v1190
      %v1224 = vunpack.c.l.b16 %v1191
      %v1225 = vpack.c.b16 %v1218, %v1217
      %v1226 = vpack.c.b16 %v1220, %v1219
      %v1227 = vpack.c.b16 %v1222, %v1221
      %v1228 = vpack.c.b16 %v1224, %v1223
      %v1249 = vunpack.c.l.b16 %v1193
      %v1250 = vunpack.c.l.b16 %v1194
      %v1251 = vunpack.c.l.b16 %v1195
      %v1252 = vunpack.c.l.b16 %v1196
      %v1253 = vunpack.c.l.b16 %v1197
      %v1254 = vunpack.c.l.b16 %v1198
      %v1255 = vunpack.c.l.b16 %v1199
      %v1256 = vunpack.c.l.b16 %v1200
      %v1257 = vunpack.c.l.b16 %v1201
      %v1258 = vunpack.c.l.b16 %v1202
      %v1259 = vunpack.c.l.b16 %v1203
      %v1260 = vunpack.c.l.b16 %v1204
      %v1261 = vunpack.c.l.b16 %v1205
      %v1262 = vunpack.c.l.b16 %v1206
      %v1263 = vunpack.c.l.b16 %v1207
      %v1264 = vunpack.c.l.b16 %v1208
      %v1265 = vpack.c.b16 %v1250, %v1249
      %v1266 = vpack.c.b16 %v1252, %v1251
      %v1267 = vpack.c.b16 %v1254, %v1253
      %v1268 = vpack.c.b16 %v1256, %v1255
      %v1269 = vpack.c.b16 %v1258, %v1257
      %v1270 = vpack.c.b16 %v1260, %v1259
      %v1271 = vpack.c.b16 %v1262, %v1261
      %v1272 = vpack.c.b16 %v1264, %v1263
      %1281 = vmatpush.bf16.msra.mxu0 %v1272
      %1282 = vmatpush.bf16.msra.mxu0 %v1271
      %1283 = vmatpush.bf16.msra.mxu0 %v1270
      %1284 = vmatpush.bf16.msra.mxu0 %v1269
      %1285 = vmatpush.bf16.msra.mxu0 %v1268
      %1286 = vmatpush.bf16.msra.mxu0 %v1267
      %1287 = vmatpush.bf16.msra.mxu0 %v1266
      %1288 = vmatpush.bf16.msra.mxu0 %v1265
      %1289 = vmatmul.bf16.gmra.mxu0 %v1225
      %v1290 = vpop.f32.mrf.mxu0
      %v1291 = vadd.f32 0.0, %v1290
      %v1292 = vpop.f32.mrf.mxu0
      %v1293 = vadd.f32 0.0, %v1292
      %1294 = vmatmul.bf16.gmra.mxu0 %v1226
      %v1295 = vpop.f32.mrf.mxu0
      %v1296 = vadd.f32 0.0, %v1295
      %v1297 = vpop.f32.mrf.mxu0
      %v1298 = vadd.f32 0.0, %v1297
      %1299 = vmatmul.bf16.gmra.mxu0 %v1227
      %v1300 = vpop.f32.mrf.mxu0
      %v1301 = vadd.f32 0.0, %v1300
      %v1302 = vpop.f32.mrf.mxu0
      %v1303 = vadd.f32 0.0, %v1302
      %1304 = vmatmul.bf16.gmra.mxu0 %v1228
      %v1305 = vpop.f32.mrf.mxu0
      %v1306 = vadd.f32 0.0, %v1305
      %v1307 = vpop.f32.mrf.mxu0
      %v1308 = vadd.f32 0.0, %v1307
      %1309 = vdwg.mxu0
      %v1310 = vadd.f32 %v1176, %v1291
      %v1311 = vadd.f32 %v1177, %v1293
      %v1312 = vadd.f32 %v1178, %v1296
      %v1313 = vadd.f32 %v1179, %v1298
      %v1314 = vadd.f32 %v1180, %v1301
      %v1315 = vadd.f32 %v1181, %v1303
      %v1316 = vadd.f32 %v1182, %v1306
      %v1317 = vadd.f32 %v1183, %v1308
      %v1318 = vld [vmem:[%s513] sm:$0xf]
      %v1319 = vld [vmem:[%s513 + $0x4] sm:$0x1]
      %v1320 = vld [vmem:[%s513 + $0x8] sm:$0xf]
      %v1321 = vld [vmem:[%s513 + $0xc] sm:$0x1]
      %v1322 = vld [vmem:[%s513 + $0x10] sm:$0xf]
      %v1323 = vld [vmem:[%s513 + $0x14] sm:$0x1]
      %v1324 = vld [vmem:[%s513 + $0x18] sm:$0xf]
      %v1325 = vld [vmem:[%s513 + $0x1c] sm:$0x1]
      %v1326 = vld [vmem:[%s513 + $0x20] sm:$0xf]
      %v1327 = vld [vmem:[%s513 + $0x24] sm:$0x1]
      %v1328 = vld [vmem:[%s513 + $0x28] sm:$0xf]
      %v1329 = vld [vmem:[%s513 + $0x2c] sm:$0x1]
      %v1330 = vld [vmem:[%s513 + $0x30] sm:$0xf]
      %v1331 = vld [vmem:[%s513 + $0x34] sm:$0x1]
      %v1332 = vld [vmem:[%s513 + $0x38] sm:$0xf]
      %v1333 = vld [vmem:[%s513 + $0x3c] sm:$0x1]
      %v1335 = vshrl.u32 %v1318, 16
      %v1337 = vrot.slane %v1335, 4
      %v1338 = vshll.u32 %v1318, 16
      %v1340 = vrot.slane %v1338, 5
      %v1341 = vor.u32 %v1337, %v1340
      %v1342 = vrot.slane %v1341, 4
      %v1344 = vshll.u32 %v1319, 16
      %v1346 = vrot.slane %v1344, 5
      %v1347 = vsel %vm683, %v1342, %v1346
      %v1349 = vshrl.u32 %v1320, 16
      %v1351 = vrot.slane %v1349, 4
      %v1352 = vshll.u32 %v1320, 16
      %v1354 = vrot.slane %v1352, 5
      %v1355 = vor.u32 %v1351, %v1354
      %v1356 = vrot.slane %v1355, 4
      %v1358 = vshll.u32 %v1321, 16
      %v1360 = vrot.slane %v1358, 5
      %v1361 = vsel %vm683, %v1356, %v1360
      %v1363 = vshrl.u32 %v1322, 16
      %v1365 = vrot.slane %v1363, 4
      %v1366 = vshll.u32 %v1322, 16
      %v1368 = vrot.slane %v1366, 5
      %v1369 = vor.u32 %v1365, %v1368
      %v1370 = vrot.slane %v1369, 4
      %v1372 = vshll.u32 %v1323, 16
      %v1374 = vrot.slane %v1372, 5
      %v1375 = vsel %vm683, %v1370, %v1374
      %v1377 = vshrl.u32 %v1324, 16
      %v1379 = vrot.slane %v1377, 4
      %v1380 = vshll.u32 %v1324, 16
      %v1382 = vrot.slane %v1380, 5
      %v1383 = vor.u32 %v1379, %v1382
      %v1384 = vrot.slane %v1383, 4
      %v1386 = vshll.u32 %v1325, 16
      %v1388 = vrot.slane %v1386, 5
      %v1389 = vsel %vm683, %v1384, %v1388
      %v1391 = vshrl.u32 %v1326, 16
      %v1393 = vrot.slane %v1391, 4
      %v1394 = vshll.u32 %v1326, 16
      %v1396 = vrot.slane %v1394, 5
      %v1397 = vor.u32 %v1393, %v1396
      %v1398 = vrot.slane %v1397, 4
      %v1400 = vshll.u32 %v1327, 16
      %v1402 = vrot.slane %v1400, 5
      %v1403 = vsel %vm683, %v1398, %v1402
      %v1405 = vshrl.u32 %v1328, 16
      %v1407 = vrot.slane %v1405, 4
      %v1408 = vshll.u32 %v1328, 16
      %v1410 = vrot.slane %v1408, 5
      %v1411 = vor.u32 %v1407, %v1410
      %v1412 = vrot.slane %v1411, 4
      %v1414 = vshll.u32 %v1329, 16
      %v1416 = vrot.slane %v1414, 5
      %v1417 = vsel %vm683, %v1412, %v1416
      %v1419 = vshrl.u32 %v1330, 16
      %v1421 = vrot.slane %v1419, 4
      %v1422 = vshll.u32 %v1330, 16
      %v1424 = vrot.slane %v1422, 5
      %v1425 = vor.u32 %v1421, %v1424
      %v1426 = vrot.slane %v1425, 4
      %v1428 = vshll.u32 %v1331, 16
      %v1430 = vrot.slane %v1428, 5
      %v1431 = vsel %vm683, %v1426, %v1430
      %v1433 = vshrl.u32 %v1332, 16
      %v1435 = vrot.slane %v1433, 4
      %v1436 = vshll.u32 %v1332, 16
      %v1438 = vrot.slane %v1436, 5
      %v1439 = vor.u32 %v1435, %v1438
      %v1440 = vrot.slane %v1439, 4
      %v1442 = vshll.u32 %v1333, 16
      %v1444 = vrot.slane %v1442, 5
      %v1445 = vsel %vm683, %v1440, %v1444
      %s1446 = scalar_lea.vmem %s3, 256
      %v1447 = vld [vmem:[%s1446] sm:$0xf]
      %v1448 = vld [vmem:[%s1446 + $0x4] sm:$0xf]
      %v1449 = vld [vmem:[%s1446 + $0x8] sm:$0xf]
      %v1450 = vld [vmem:[%s1446 + $0xc] sm:$0xf]
      %v1451 = vld [vmem:[%s1446 + $0x10] sm:$0xf]
      %v1452 = vld [vmem:[%s1446 + $0x14] sm:$0xf]
      %v1453 = vld [vmem:[%s1446 + $0x18] sm:$0xf]
      %v1454 = vld [vmem:[%s1446 + $0x1c] sm:$0xf]
      %v1455 = vld [vmem:[%s1446 + $0x20] sm:$0xf]
      %v1456 = vld [vmem:[%s1446 + $0x24] sm:$0xf]
      %v1457 = vld [vmem:[%s1446 + $0x28] sm:$0xf]
      %v1458 = vld [vmem:[%s1446 + $0x2c] sm:$0xf]
      %v1459 = vld [vmem:[%s1446 + $0x30] sm:$0xf]
      %v1460 = vld [vmem:[%s1446 + $0x34] sm:$0xf]
      %v1461 = vld [vmem:[%s1446 + $0x38] sm:$0xf]
      %v1462 = vld [vmem:[%s1446 + $0x3c] sm:$0xf]
      %v1463 = vunpack.c.l.b16 %v1347
      %v1464 = vunpack.c.l.b16 %v1361
      %v1465 = vunpack.c.l.b16 %v1375
      %v1466 = vunpack.c.l.b16 %v1389
      %v1467 = vunpack.c.l.b16 %v1403
      %v1468 = vunpack.c.l.b16 %v1417
      %v1469 = vunpack.c.l.b16 %v1431
      %v1470 = vunpack.c.l.b16 %v1445
      %v1471 = vpack.c.b16 %v1464, %v1463
      %v1472 = vpack.c.b16 %v1466, %v1465
      %v1473 = vpack.c.b16 %v1468, %v1467
      %v1474 = vpack.c.b16 %v1470, %v1469
      %v1495 = vunpack.c.l.b16 %v1447
      %v1496 = vunpack.c.l.b16 %v1448
      %v1497 = vunpack.c.l.b16 %v1449
      %v1498 = vunpack.c.l.b16 %v1450
      %v1499 = vunpack.c.l.b16 %v1451
      %v1500 = vunpack.c.l.b16 %v1452
      %v1501 = vunpack.c.l.b16 %v1453
      %v1502 = vunpack.c.l.b16 %v1454
      %v1503 = vunpack.c.l.b16 %v1455
      %v1504 = vunpack.c.l.b16 %v1456
      %v1505 = vunpack.c.l.b16 %v1457
      %v1506 = vunpack.c.l.b16 %v1458
      %v1507 = vunpack.c.l.b16 %v1459
      %v1508 = vunpack.c.l.b16 %v1460
      %v1509 = vunpack.c.l.b16 %v1461
      %v1510 = vunpack.c.l.b16 %v1462
      %v1511 = vpack.c.b16 %v1496, %v1495
      %v1512 = vpack.c.b16 %v1498, %v1497
      %v1513 = vpack.c.b16 %v1500, %v1499
      %v1514 = vpack.c.b16 %v1502, %v1501
      %v1515 = vpack.c.b16 %v1504, %v1503
      %v1516 = vpack.c.b16 %v1506, %v1505
      %v1517 = vpack.c.b16 %v1508, %v1507
      %v1518 = vpack.c.b16 %v1510, %v1509
      %1527 = vmatpush.bf16.msra.mxu0 %v1518
      %1528 = vmatpush.bf16.msra.mxu0 %v1517
      %1529 = vmatpush.bf16.msra.mxu0 %v1516
      %1530 = vmatpush.bf16.msra.mxu0 %v1515
      %1531 = vmatpush.bf16.msra.mxu0 %v1514
      %1532 = vmatpush.bf16.msra.mxu0 %v1513
      %1533 = vmatpush.bf16.msra.mxu0 %v1512
      %1534 = vmatpush.bf16.msra.mxu0 %v1511
      %1535 = vmatmul.bf16.gmra.mxu0 %v1471
      %v1536 = vpop.f32.mrf.mxu0
      %v1537 = vadd.f32 0.0, %v1536
      %v1538 = vpop.f32.mrf.mxu0
      %v1539 = vadd.f32 0.0, %v1538
      %1540 = vmatmul.bf16.gmra.mxu0 %v1472
      %v1541 = vpop.f32.mrf.mxu0
      %v1542 = vadd.f32 0.0, %v1541
      %v1543 = vpop.f32.mrf.mxu0
      %v1544 = vadd.f32 0.0, %v1543
      %1545 = vmatmul.bf16.gmra.mxu0 %v1473
      %v1546 = vpop.f32.mrf.mxu0
      %v1547 = vadd.f32 0.0, %v1546
      %v1548 = vpop.f32.mrf.mxu0
      %v1549 = vadd.f32 0.0, %v1548
      %1550 = vmatmul.bf16.gmra.mxu0 %v1474
      %v1551 = vpop.f32.mrf.mxu0
      %v1552 = vadd.f32 0.0, %v1551
      %v1553 = vpop.f32.mrf.mxu0
      %v1554 = vadd.f32 0.0, %v1553
      %1555 = vdwg.mxu0
      %v1556 = vadd.f32 %v1310, %v1537
      %v1557 = vadd.f32 %v1311, %v1539
      %v1558 = vadd.f32 %v1312, %v1542
      %v1559 = vadd.f32 %v1313, %v1544
      %v1560 = vadd.f32 %v1314, %v1547
      %v1561 = vadd.f32 %v1315, %v1549
      %v1562 = vadd.f32 %v1316, %v1552
      %v1563 = vadd.f32 %v1317, %v1554
      %v1564 = vld [vmem:[%s513] sm:$0xe]
      %v1565 = vld [vmem:[%s513 + $0x8] sm:$0xe]
      %v1566 = vld [vmem:[%s513 + $0x10] sm:$0xe]
      %v1567 = vld [vmem:[%s513 + $0x18] sm:$0xe]
      %v1568 = vld [vmem:[%s513 + $0x20] sm:$0xe]
      %v1569 = vld [vmem:[%s513 + $0x28] sm:$0xe]
      %v1570 = vld [vmem:[%s513 + $0x30] sm:$0xe]
      %v1571 = vld [vmem:[%s513 + $0x38] sm:$0xe]
      %v1588 = vrot.slane %v1564, 5
      %v1589 = vrot.slane %v1588, 4
      %v1590 = vrot.slane %v1319, 5
      %v1591 = vsel %vm1033, %v1589, %v1590
      %v1592 = vrot.slane %v1565, 5
      %v1593 = vrot.slane %v1592, 4
      %v1594 = vrot.slane %v1321, 5
      %v1595 = vsel %vm1033, %v1593, %v1594
      %v1596 = vrot.slane %v1566, 5
      %v1597 = vrot.slane %v1596, 4
      %v1598 = vrot.slane %v1323, 5
      %v1599 = vsel %vm1033, %v1597, %v1598
      %v1600 = vrot.slane %v1567, 5
      %v1601 = vrot.slane %v1600, 4
      %v1602 = vrot.slane %v1325, 5
      %v1603 = vsel %vm1033, %v1601, %v1602
      %v1604 = vrot.slane %v1568, 5
      %v1605 = vrot.slane %v1604, 4
      %v1606 = vrot.slane %v1327, 5
      %v1607 = vsel %vm1033, %v1605, %v1606
      %v1608 = vrot.slane %v1569, 5
      %v1609 = vrot.slane %v1608, 4
      %v1610 = vrot.slane %v1329, 5
      %v1611 = vsel %vm1033, %v1609, %v1610
      %v1612 = vrot.slane %v1570, 5
      %v1613 = vrot.slane %v1612, 4
      %v1614 = vrot.slane %v1331, 5
      %v1615 = vsel %vm1033, %v1613, %v1614
      %v1616 = vrot.slane %v1571, 5
      %v1617 = vrot.slane %v1616, 4
      %v1618 = vrot.slane %v1333, 5
      %v1619 = vsel %vm1033, %v1617, %v1618
      %s1620 = scalar_lea.vmem %s3, 320
      %v1621 = vld [vmem:[%s1620] sm:$0xf]
      %v1622 = vld [vmem:[%s1620 + $0x4] sm:$0xf]
      %v1623 = vld [vmem:[%s1620 + $0x8] sm:$0xf]
      %v1624 = vld [vmem:[%s1620 + $0xc] sm:$0xf]
      %v1625 = vld [vmem:[%s1620 + $0x10] sm:$0xf]
      %v1626 = vld [vmem:[%s1620 + $0x14] sm:$0xf]
      %v1627 = vld [vmem:[%s1620 + $0x18] sm:$0xf]
      %v1628 = vld [vmem:[%s1620 + $0x1c] sm:$0xf]
      %v1629 = vld [vmem:[%s1620 + $0x20] sm:$0xf]
      %v1630 = vld [vmem:[%s1620 + $0x24] sm:$0xf]
      %v1631 = vld [vmem:[%s1620 + $0x28] sm:$0xf]
      %v1632 = vld [vmem:[%s1620 + $0x2c] sm:$0xf]
      %v1633 = vld [vmem:[%s1620 + $0x30] sm:$0xf]
      %v1634 = vld [vmem:[%s1620 + $0x34] sm:$0xf]
      %v1635 = vld [vmem:[%s1620 + $0x38] sm:$0xf]
      %v1636 = vld [vmem:[%s1620 + $0x3c] sm:$0xf]
      %v1637 = vunpack.c.l.b16 %v1591
      %v1638 = vunpack.c.l.b16 %v1595
      %v1639 = vunpack.c.l.b16 %v1599
      %v1640 = vunpack.c.l.b16 %v1603
      %v1641 = vunpack.c.l.b16 %v1607
      %v1642 = vunpack.c.l.b16 %v1611
      %v1643 = vunpack.c.l.b16 %v1615
      %v1644 = vunpack.c.l.b16 %v1619
      %v1645 = vpack.c.b16 %v1638, %v1637
      %v1646 = vpack.c.b16 %v1640, %v1639
      %v1647 = vpack.c.b16 %v1642, %v1641
      %v1648 = vpack.c.b16 %v1644, %v1643
      %v1669 = vunpack.c.l.b16 %v1621
      %v1670 = vunpack.c.l.b16 %v1622
      %v1671 = vunpack.c.l.b16 %v1623
      %v1672 = vunpack.c.l.b16 %v1624
      %v1673 = vunpack.c.l.b16 %v1625
      %v1674 = vunpack.c.l.b16 %v1626
      %v1675 = vunpack.c.l.b16 %v1627
      %v1676 = vunpack.c.l.b16 %v1628
      %v1677 = vunpack.c.l.b16 %v1629
      %v1678 = vunpack.c.l.b16 %v1630
      %v1679 = vunpack.c.l.b16 %v1631
      %v1680 = vunpack.c.l.b16 %v1632
      %v1681 = vunpack.c.l.b16 %v1633
      %v1682 = vunpack.c.l.b16 %v1634
      %v1683 = vunpack.c.l.b16 %v1635
      %v1684 = vunpack.c.l.b16 %v1636
      %v1685 = vpack.c.b16 %v1670, %v1669
      %v1686 = vpack.c.b16 %v1672, %v1671
      %v1687 = vpack.c.b16 %v1674, %v1673
      %v1688 = vpack.c.b16 %v1676, %v1675
      %v1689 = vpack.c.b16 %v1678, %v1677
      %v1690 = vpack.c.b16 %v1680, %v1679
      %v1691 = vpack.c.b16 %v1682, %v1681
      %v1692 = vpack.c.b16 %v1684, %v1683
      %1701 = vmatpush.bf16.msra.mxu0 %v1692
      %1702 = vmatpush.bf16.msra.mxu0 %v1691
      %1703 = vmatpush.bf16.msra.mxu0 %v1690
      %1704 = vmatpush.bf16.msra.mxu0 %v1689
      %1705 = vmatpush.bf16.msra.mxu0 %v1688
      %1706 = vmatpush.bf16.msra.mxu0 %v1687
      %1707 = vmatpush.bf16.msra.mxu0 %v1686
      %1708 = vmatpush.bf16.msra.mxu0 %v1685
      %1709 = vmatmul.bf16.gmra.mxu0 %v1645
      %v1710 = vpop.f32.mrf.mxu0
      %v1711 = vadd.f32 0.0, %v1710
      %v1712 = vpop.f32.mrf.mxu0
      %v1713 = vadd.f32 0.0, %v1712
      %1714 = vmatmul.bf16.gmra.mxu0 %v1646
      %v1715 = vpop.f32.mrf.mxu0
      %v1716 = vadd.f32 0.0, %v1715
      %v1717 = vpop.f32.mrf.mxu0
      %v1718 = vadd.f32 0.0, %v1717
      %1719 = vmatmul.bf16.gmra.mxu0 %v1647
      %v1720 = vpop.f32.mrf.mxu0
      %v1721 = vadd.f32 0.0, %v1720
      %v1722 = vpop.f32.mrf.mxu0
      %v1723 = vadd.f32 0.0, %v1722
      %1724 = vmatmul.bf16.gmra.mxu0 %v1648
      %v1725 = vpop.f32.mrf.mxu0
      %v1726 = vadd.f32 0.0, %v1725
      %v1727 = vpop.f32.mrf.mxu0
      %v1728 = vadd.f32 0.0, %v1727
      %1729 = vdwg.mxu0
      %v1730 = vadd.f32 %v1556, %v1711
      %v1731 = vadd.f32 %v1557, %v1713
      %v1732 = vadd.f32 %v1558, %v1716
      %v1733 = vadd.f32 %v1559, %v1718
      %v1734 = vadd.f32 %v1560, %v1721
      %v1735 = vadd.f32 %v1561, %v1723
      %v1736 = vadd.f32 %v1562, %v1726
      %v1737 = vadd.f32 %v1563, %v1728
      %s1738 = scalar_lea.vmem [#allocation2], 16
      %v1739 = vld [vmem:[%s1738] sm:$0xf]
      %v1740 = vld [vmem:[%s1738 + $0x8] sm:$0xf]
      %v1741 = vld [vmem:[%s1738 + $0x10] sm:$0xf]
      %v1742 = vld [vmem:[%s1738 + $0x18] sm:$0xf]
      %v1743 = vld [vmem:[%s1738 + $0x20] sm:$0xf]
      %v1744 = vld [vmem:[%s1738 + $0x28] sm:$0xf]
      %v1745 = vld [vmem:[%s1738 + $0x30] sm:$0xf]
      %v1746 = vld [vmem:[%s1738 + $0x38] sm:$0xf]
      %s1747 = scalar_lea.vmem %s3, 384
      %v1748 = vld [vmem:[%s1747] sm:$0xf]
      %v1749 = vld [vmem:[%s1747 + $0x4] sm:$0xf]
      %v1750 = vld [vmem:[%s1747 + $0x8] sm:$0xf]
      %v1751 = vld [vmem:[%s1747 + $0xc] sm:$0xf]
      %v1752 = vld [vmem:[%s1747 + $0x10] sm:$0xf]
      %v1753 = vld [vmem:[%s1747 + $0x14] sm:$0xf]
      %v1754 = vld [vmem:[%s1747 + $0x18] sm:$0xf]
      %v1755 = vld [vmem:[%s1747 + $0x1c] sm:$0xf]
      %v1756 = vld [vmem:[%s1747 + $0x20] sm:$0xf]
      %v1757 = vld [vmem:[%s1747 + $0x24] sm:$0xf]
      %v1758 = vld [vmem:[%s1747 + $0x28] sm:$0xf]
      %v1759 = vld [vmem:[%s1747 + $0x2c] sm:$0xf]
      %v1760 = vld [vmem:[%s1747 + $0x30] sm:$0xf]
      %v1761 = vld [vmem:[%s1747 + $0x34] sm:$0xf]
      %v1762 = vld [vmem:[%s1747 + $0x38] sm:$0xf]
      %v1763 = vld [vmem:[%s1747 + $0x3c] sm:$0xf]
      %v1772 = vunpack.c.l.b16 %v1739
      %v1773 = vunpack.c.l.b16 %v1740
      %v1774 = vunpack.c.l.b16 %v1741
      %v1775 = vunpack.c.l.b16 %v1742
      %v1776 = vunpack.c.l.b16 %v1743
      %v1777 = vunpack.c.l.b16 %v1744
      %v1778 = vunpack.c.l.b16 %v1745
      %v1779 = vunpack.c.l.b16 %v1746
      %v1780 = vpack.c.b16 %v1773, %v1772
      %v1781 = vpack.c.b16 %v1775, %v1774
      %v1782 = vpack.c.b16 %v1777, %v1776
      %v1783 = vpack.c.b16 %v1779, %v1778
      %v1804 = vunpack.c.l.b16 %v1748
      %v1805 = vunpack.c.l.b16 %v1749
      %v1806 = vunpack.c.l.b16 %v1750
      %v1807 = vunpack.c.l.b16 %v1751
      %v1808 = vunpack.c.l.b16 %v1752
      %v1809 = vunpack.c.l.b16 %v1753
      %v1810 = vunpack.c.l.b16 %v1754
      %v1811 = vunpack.c.l.b16 %v1755
      %v1812 = vunpack.c.l.b16 %v1756
      %v1813 = vunpack.c.l.b16 %v1757
      %v1814 = vunpack.c.l.b16 %v1758
      %v1815 = vunpack.c.l.b16 %v1759
      %v1816 = vunpack.c.l.b16 %v1760
      %v1817 = vunpack.c.l.b16 %v1761
      %v1818 = vunpack.c.l.b16 %v1762
      %v1819 = vunpack.c.l.b16 %v1763
      %v1820 = vpack.c.b16 %v1805, %v1804
      %v1821 = vpack.c.b16 %v1807, %v1806
      %v1822 = vpack.c.b16 %v1809, %v1808
      %v1823 = vpack.c.b16 %v1811, %v1810
      %v1824 = vpack.c.b16 %v1813, %v1812
      %v1825 = vpack.c.b16 %v1815, %v1814
      %v1826 = vpack.c.b16 %v1817, %v1816
      %v1827 = vpack.c.b16 %v1819, %v1818
      %1836 = vmatpush.bf16.msra.mxu0 %v1827
      %1837 = vmatpush.bf16.msra.mxu0 %v1826
      %1838 = vmatpush.bf16.msra.mxu0 %v1825
      %1839 = vmatpush.bf16.msra.mxu0 %v1824
      %1840 = vmatpush.bf16.msra.mxu0 %v1823
      %1841 = vmatpush.bf16.msra.mxu0 %v1822
      %1842 = vmatpush.bf16.msra.mxu0 %v1821
      %1843 = vmatpush.bf16.msra.mxu0 %v1820
      %1844 = vmatmul.bf16.gmra.mxu0 %v1780
      %v1845 = vpop.f32.mrf.mxu0
      %v1846 = vadd.f32 0.0, %v1845
      %v1847 = vpop.f32.mrf.mxu0
      %v1848 = vadd.f32 0.0, %v1847
      %1849 = vmatmul.bf16.gmra.mxu0 %v1781
      %v1850 = vpop.f32.mrf.mxu0
      %v1851 = vadd.f32 0.0, %v1850
      %v1852 = vpop.f32.mrf.mxu0
      %v1853 = vadd.f32 0.0, %v1852
      %1854 = vmatmul.bf16.gmra.mxu0 %v1782
      %v1855 = vpop.f32.mrf.mxu0
      %v1856 = vadd.f32 0.0, %v1855
      %v1857 = vpop.f32.mrf.mxu0
      %v1858 = vadd.f32 0.0, %v1857
      %1859 = vmatmul.bf16.gmra.mxu0 %v1783
      %v1860 = vpop.f32.mrf.mxu0
      %v1861 = vadd.f32 0.0, %v1860
      %v1862 = vpop.f32.mrf.mxu0
      %v1863 = vadd.f32 0.0, %v1862
      %1864 = vdwg.mxu0
      %v1865 = vadd.f32 %v1730, %v1846
      %v1866 = vadd.f32 %v1731, %v1848
      %v1867 = vadd.f32 %v1732, %v1851
      %v1868 = vadd.f32 %v1733, %v1853
      %v1869 = vadd.f32 %v1734, %v1856
      %v1870 = vadd.f32 %v1735, %v1858
      %v1871 = vadd.f32 %v1736, %v1861
      %v1872 = vadd.f32 %v1737, %v1863
      %v1873 = vld [vmem:[%s1738] sm:$0xf]
      %v1874 = vld [vmem:[%s1738 + $0x4] sm:$0x1]
      %v1875 = vld [vmem:[%s1738 + $0x8] sm:$0xf]
      %v1876 = vld [vmem:[%s1738 + $0xc] sm:$0x1]
      %v1877 = vld [vmem:[%s1738 + $0x10] sm:$0xf]
      %v1878 = vld [vmem:[%s1738 + $0x14] sm:$0x1]
      %v1879 = vld [vmem:[%s1738 + $0x18] sm:$0xf]
      %v1880 = vld [vmem:[%s1738 + $0x1c] sm:$0x1]
      %v1881 = vld [vmem:[%s1738 + $0x20] sm:$0xf]
      %v1882 = vld [vmem:[%s1738 + $0x24] sm:$0x1]
      %v1883 = vld [vmem:[%s1738 + $0x28] sm:$0xf]
      %v1884 = vld [vmem:[%s1738 + $0x2c] sm:$0x1]
      %v1885 = vld [vmem:[%s1738 + $0x30] sm:$0xf]
      %v1886 = vld [vmem:[%s1738 + $0x34] sm:$0x1]
      %v1887 = vld [vmem:[%s1738 + $0x38] sm:$0xf]
      %v1888 = vld [vmem:[%s1738 + $0x3c] sm:$0x1]
      %v1890 = vshrl.u32 %v1873, 16
      %v1892 = vrot.slane %v1890, 4
      %v1893 = vshll.u32 %v1873, 16
      %v1895 = vrot.slane %v1893, 5
      %v1896 = vor.u32 %v1892, %v1895
      %v1897 = vrot.slane %v1896, 4
      %v1899 = vshll.u32 %v1874, 16
      %v1901 = vrot.slane %v1899, 5
      %v1902 = vsel %vm683, %v1897, %v1901
      %v1904 = vshrl.u32 %v1875, 16
      %v1906 = vrot.slane %v1904, 4
      %v1907 = vshll.u32 %v1875, 16
      %v1909 = vrot.slane %v1907, 5
      %v1910 = vor.u32 %v1906, %v1909
      %v1911 = vrot.slane %v1910, 4
      %v1913 = vshll.u32 %v1876, 16
      %v1915 = vrot.slane %v1913, 5
      %v1916 = vsel %vm683, %v1911, %v1915
      %v1918 = vshrl.u32 %v1877, 16
      %v1920 = vrot.slane %v1918, 4
      %v1921 = vshll.u32 %v1877, 16
      %v1923 = vrot.slane %v1921, 5
      %v1924 = vor.u32 %v1920, %v1923
      %v1925 = vrot.slane %v1924, 4
      %v1927 = vshll.u32 %v1878, 16
      %v1929 = vrot.slane %v1927, 5
      %v1930 = vsel %vm683, %v1925, %v1929
      %v1932 = vshrl.u32 %v1879, 16
      %v1934 = vrot.slane %v1932, 4
      %v1935 = vshll.u32 %v1879, 16
      %v1937 = vrot.slane %v1935, 5
      %v1938 = vor.u32 %v1934, %v1937
      %v1939 = vrot.slane %v1938, 4
      %v1941 = vshll.u32 %v1880, 16
      %v1943 = vrot.slane %v1941, 5
      %v1944 = vsel %vm683, %v1939, %v1943
      %v1946 = vshrl.u32 %v1881, 16
      %v1948 = vrot.slane %v1946, 4
      %v1949 = vshll.u32 %v1881, 16
      %v1951 = vrot.slane %v1949, 5
      %v1952 = vor.u32 %v1948, %v1951
      %v1953 = vrot.slane %v1952, 4
      %v1955 = vshll.u32 %v1882, 16
      %v1957 = vrot.slane %v1955, 5
      %v1958 = vsel %vm683, %v1953, %v1957
      %v1960 = vshrl.u32 %v1883, 16
      %v1962 = vrot.slane %v1960, 4
      %v1963 = vshll.u32 %v1883, 16
      %v1965 = vrot.slane %v1963, 5
      %v1966 = vor.u32 %v1962, %v1965
      %v1967 = vrot.slane %v1966, 4
      %v1969 = vshll.u32 %v1884, 16
      %v1971 = vrot.slane %v1969, 5
      %v1972 = vsel %vm683, %v1967, %v1971
      %v1974 = vshrl.u32 %v1885, 16
      %v1976 = vrot.slane %v1974, 4
      %v1977 = vshll.u32 %v1885, 16
      %v1979 = vrot.slane %v1977, 5
      %v1980 = vor.u32 %v1976, %v1979
      %v1981 = vrot.slane %v1980, 4
      %v1983 = vshll.u32 %v1886, 16
      %v1985 = vrot.slane %v1983, 5
      %v1986 = vsel %vm683, %v1981, %v1985
      %v1988 = vshrl.u32 %v1887, 16
      %v1990 = vrot.slane %v1988, 4
      %v1991 = vshll.u32 %v1887, 16
      %v1993 = vrot.slane %v1991, 5
      %v1994 = vor.u32 %v1990, %v1993
      %v1995 = vrot.slane %v1994, 4
      %v1997 = vshll.u32 %v1888, 16
      %v1999 = vrot.slane %v1997, 5
      %v2000 = vsel %vm683, %v1995, %v1999
      %s2001 = scalar_lea.vmem %s3, 448
      %v2002 = vld [vmem:[%s2001] sm:$0xf]
      %v2003 = vld [vmem:[%s2001 + $0x4] sm:$0xf]
      %v2004 = vld [vmem:[%s2001 + $0x8] sm:$0xf]
      %v2005 = vld [vmem:[%s2001 + $0xc] sm:$0xf]
      %v2006 = vld [vmem:[%s2001 + $0x10] sm:$0xf]
      %v2007 = vld [vmem:[%s2001 + $0x14] sm:$0xf]
      %v2008 = vld [vmem:[%s2001 + $0x18] sm:$0xf]
      %v2009 = vld [vmem:[%s2001 + $0x1c] sm:$0xf]
      %v2010 = vld [vmem:[%s2001 + $0x20] sm:$0xf]
      %v2011 = vld [vmem:[%s2001 + $0x24] sm:$0xf]
      %v2012 = vld [vmem:[%s2001 + $0x28] sm:$0xf]
      %v2013 = vld [vmem:[%s2001 + $0x2c] sm:$0xf]
      %v2014 = vld [vmem:[%s2001 + $0x30] sm:$0xf]
      %v2015 = vld [vmem:[%s2001 + $0x34] sm:$0xf]
      %v2016 = vld [vmem:[%s2001 + $0x38] sm:$0xf]
      %v2017 = vld [vmem:[%s2001 + $0x3c] sm:$0xf]
      %v2018 = vunpack.c.l.b16 %v1902
      %v2019 = vunpack.c.l.b16 %v1916
      %v2020 = vunpack.c.l.b16 %v1930
      %v2021 = vunpack.c.l.b16 %v1944
      %v2022 = vunpack.c.l.b16 %v1958
      %v2023 = vunpack.c.l.b16 %v1972
      %v2024 = vunpack.c.l.b16 %v1986
      %v2025 = vunpack.c.l.b16 %v2000
      %v2026 = vpack.c.b16 %v2019, %v2018
      %v2027 = vpack.c.b16 %v2021, %v2020
      %v2028 = vpack.c.b16 %v2023, %v2022
      %v2029 = vpack.c.b16 %v2025, %v2024
      %v2050 = vunpack.c.l.b16 %v2002
      %v2051 = vunpack.c.l.b16 %v2003
      %v2052 = vunpack.c.l.b16 %v2004
      %v2053 = vunpack.c.l.b16 %v2005
      %v2054 = vunpack.c.l.b16 %v2006
      %v2055 = vunpack.c.l.b16 %v2007
      %v2056 = vunpack.c.l.b16 %v2008
      %v2057 = vunpack.c.l.b16 %v2009
      %v2058 = vunpack.c.l.b16 %v2010
      %v2059 = vunpack.c.l.b16 %v2011
      %v2060 = vunpack.c.l.b16 %v2012
      %v2061 = vunpack.c.l.b16 %v2013
      %v2062 = vunpack.c.l.b16 %v2014
      %v2063 = vunpack.c.l.b16 %v2015
      %v2064 = vunpack.c.l.b16 %v2016
      %v2065 = vunpack.c.l.b16 %v2017
      %v2066 = vpack.c.b16 %v2051, %v2050
      %v2067 = vpack.c.b16 %v2053, %v2052
      %v2068 = vpack.c.b16 %v2055, %v2054
      %v2069 = vpack.c.b16 %v2057, %v2056
      %v2070 = vpack.c.b16 %v2059, %v2058
      %v2071 = vpack.c.b16 %v2061, %v2060
      %v2072 = vpack.c.b16 %v2063, %v2062
      %v2073 = vpack.c.b16 %v2065, %v2064
      %2082 = vmatpush.bf16.msra.mxu0 %v2073
      %2083 = vmatpush.bf16.msra.mxu0 %v2072
      %2084 = vmatpush.bf16.msra.mxu0 %v2071
      %2085 = vmatpush.bf16.msra.mxu0 %v2070
      %2086 = vmatpush.bf16.msra.mxu0 %v2069
      %2087 = vmatpush.bf16.msra.mxu0 %v2068
      %2088 = vmatpush.bf16.msra.mxu0 %v2067
      %2089 = vmatpush.bf16.msra.mxu0 %v2066
      %2090 = vmatmul.bf16.gmra.mxu0 %v2026
      %v2091 = vpop.f32.mrf.mxu0
      %v2092 = vadd.f32 0.0, %v2091
      %v2093 = vpop.f32.mrf.mxu0
      %v2094 = vadd.f32 0.0, %v2093
      %2095 = vmatmul.bf16.gmra.mxu0 %v2027
      %v2096 = vpop.f32.mrf.mxu0
      %v2097 = vadd.f32 0.0, %v2096
      %v2098 = vpop.f32.mrf.mxu0
      %v2099 = vadd.f32 0.0, %v2098
      %2100 = vmatmul.bf16.gmra.mxu0 %v2028
      %v2101 = vpop.f32.mrf.mxu0
      %v2102 = vadd.f32 0.0, %v2101
      %v2103 = vpop.f32.mrf.mxu0
      %v2104 = vadd.f32 0.0, %v2103
      %2105 = vmatmul.bf16.gmra.mxu0 %v2029
      %v2106 = vpop.f32.mrf.mxu0
      %v2107 = vadd.f32 0.0, %v2106
      %v2108 = vpop.f32.mrf.mxu0
      %v2109 = vadd.f32 0.0, %v2108
      %2110 = vdwg.mxu0
      %v2111 = vadd.f32 %v1865, %v2092
      %v2112 = vadd.f32 %v1866, %v2094
      %v2113 = vadd.f32 %v1867, %v2097
      %v2114 = vadd.f32 %v1868, %v2099
      %v2115 = vadd.f32 %v1869, %v2102
      %v2116 = vadd.f32 %v1870, %v2104
      %v2117 = vadd.f32 %v1871, %v2107
      %v2118 = vadd.f32 %v1872, %v2109
      %v2119 = vld [vmem:[%s1738] sm:$0xe]
      %v2120 = vld [vmem:[%s1738 + $0x8] sm:$0xe]
      %v2121 = vld [vmem:[%s1738 + $0x10] sm:$0xe]
      %v2122 = vld [vmem:[%s1738 + $0x18] sm:$0xe]
      %v2123 = vld [vmem:[%s1738 + $0x20] sm:$0xe]
      %v2124 = vld [vmem:[%s1738 + $0x28] sm:$0xe]
      %v2125 = vld [vmem:[%s1738 + $0x30] sm:$0xe]
      %v2126 = vld [vmem:[%s1738 + $0x38] sm:$0xe]
      %v2143 = vrot.slane %v2119, 5
      %v2144 = vrot.slane %v2143, 4
      %v2145 = vrot.slane %v1874, 5
      %v2146 = vsel %vm1033, %v2144, %v2145
      %v2147 = vrot.slane %v2120, 5
      %v2148 = vrot.slane %v2147, 4
      %v2149 = vrot.slane %v1876, 5
      %v2150 = vsel %vm1033, %v2148, %v2149
      %v2151 = vrot.slane %v2121, 5
      %v2152 = vrot.slane %v2151, 4
      %v2153 = vrot.slane %v1878, 5
      %v2154 = vsel %vm1033, %v2152, %v2153
      %v2155 = vrot.slane %v2122, 5
      %v2156 = vrot.slane %v2155, 4
      %v2157 = vrot.slane %v1880, 5
      %v2158 = vsel %vm1033, %v2156, %v2157
      %v2159 = vrot.slane %v2123, 5
      %v2160 = vrot.slane %v2159, 4
      %v2161 = vrot.slane %v1882, 5
      %v2162 = vsel %vm1033, %v2160, %v2161
      %v2163 = vrot.slane %v2124, 5
      %v2164 = vrot.slane %v2163, 4
      %v2165 = vrot.slane %v1884, 5
      %v2166 = vsel %vm1033, %v2164, %v2165
      %v2167 = vrot.slane %v2125, 5
      %v2168 = vrot.slane %v2167, 4
      %v2169 = vrot.slane %v1886, 5
      %v2170 = vsel %vm1033, %v2168, %v2169
      %v2171 = vrot.slane %v2126, 5
      %v2172 = vrot.slane %v2171, 4
      %v2173 = vrot.slane %v1888, 5
      %v2174 = vsel %vm1033, %v2172, %v2173
      %s2175 = scalar_lea.vmem %s3, 512
      %v2176 = vld [vmem:[%s2175] sm:$0xf]
      %v2177 = vld [vmem:[%s2175 + $0x4] sm:$0xf]
      %v2178 = vld [vmem:[%s2175 + $0x8] sm:$0xf]
      %v2179 = vld [vmem:[%s2175 + $0xc] sm:$0xf]
      %v2180 = vld [vmem:[%s2175 + $0x10] sm:$0xf]
      %v2181 = vld [vmem:[%s2175 + $0x14] sm:$0xf]
      %v2182 = vld [vmem:[%s2175 + $0x18] sm:$0xf]
      %v2183 = vld [vmem:[%s2175 + $0x1c] sm:$0xf]
      %v2184 = vld [vmem:[%s2175 + $0x20] sm:$0xf]
      %v2185 = vld [vmem:[%s2175 + $0x24] sm:$0xf]
      %v2186 = vld [vmem:[%s2175 + $0x28] sm:$0xf]
      %v2187 = vld [vmem:[%s2175 + $0x2c] sm:$0xf]
      %v2188 = vld [vmem:[%s2175 + $0x30] sm:$0xf]
      %v2189 = vld [vmem:[%s2175 + $0x34] sm:$0xf]
      %v2190 = vld [vmem:[%s2175 + $0x38] sm:$0xf]
      %v2191 = vld [vmem:[%s2175 + $0x3c] sm:$0xf]
      %v2192 = vunpack.c.l.b16 %v2146
      %v2193 = vunpack.c.l.b16 %v2150
      %v2194 = vunpack.c.l.b16 %v2154
      %v2195 = vunpack.c.l.b16 %v2158
      %v2196 = vunpack.c.l.b16 %v2162
      %v2197 = vunpack.c.l.b16 %v2166
      %v2198 = vunpack.c.l.b16 %v2170
      %v2199 = vunpack.c.l.b16 %v2174
      %v2200 = vpack.c.b16 %v2193, %v2192
      %v2201 = vpack.c.b16 %v2195, %v2194
      %v2202 = vpack.c.b16 %v2197, %v2196
      %v2203 = vpack.c.b16 %v2199, %v2198
      %v2224 = vunpack.c.l.b16 %v2176
      %v2225 = vunpack.c.l.b16 %v2177
      %v2226 = vunpack.c.l.b16 %v2178
      %v2227 = vunpack.c.l.b16 %v2179
      %v2228 = vunpack.c.l.b16 %v2180
      %v2229 = vunpack.c.l.b16 %v2181
      %v2230 = vunpack.c.l.b16 %v2182
      %v2231 = vunpack.c.l.b16 %v2183
      %v2232 = vunpack.c.l.b16 %v2184
      %v2233 = vunpack.c.l.b16 %v2185
      %v2234 = vunpack.c.l.b16 %v2186
      %v2235 = vunpack.c.l.b16 %v2187
      %v2236 = vunpack.c.l.b16 %v2188
      %v2237 = vunpack.c.l.b16 %v2189
      %v2238 = vunpack.c.l.b16 %v2190
      %v2239 = vunpack.c.l.b16 %v2191
      %v2240 = vpack.c.b16 %v2225, %v2224
      %v2241 = vpack.c.b16 %v2227, %v2226
      %v2242 = vpack.c.b16 %v2229, %v2228
      %v2243 = vpack.c.b16 %v2231, %v2230
      %v2244 = vpack.c.b16 %v2233, %v2232
      %v2245 = vpack.c.b16 %v2235, %v2234
      %v2246 = vpack.c.b16 %v2237, %v2236
      %v2247 = vpack.c.b16 %v2239, %v2238
      %2256 = vmatpush.bf16.msra.mxu0 %v2247
      %2257 = vmatpush.bf16.msra.mxu0 %v2246
      %2258 = vmatpush.bf16.msra.mxu0 %v2245
      %2259 = vmatpush.bf16.msra.mxu0 %v2244
      %2260 = vmatpush.bf16.msra.mxu0 %v2243
      %2261 = vmatpush.bf16.msra.mxu0 %v2242
      %2262 = vmatpush.bf16.msra.mxu0 %v2241
      %2263 = vmatpush.bf16.msra.mxu0 %v2240
      %2264 = vmatmul.bf16.gmra.mxu0 %v2200
      %v2265 = vpop.f32.mrf.mxu0
      %v2266 = vadd.f32 0.0, %v2265
      %v2267 = vpop.f32.mrf.mxu0
      %v2268 = vadd.f32 0.0, %v2267
      %2269 = vmatmul.bf16.gmra.mxu0 %v2201
      %v2270 = vpop.f32.mrf.mxu0
      %v2271 = vadd.f32 0.0, %v2270
      %v2272 = vpop.f32.mrf.mxu0
      %v2273 = vadd.f32 0.0, %v2272
      %2274 = vmatmul.bf16.gmra.mxu0 %v2202
      %v2275 = vpop.f32.mrf.mxu0
      %v2276 = vadd.f32 0.0, %v2275
      %v2277 = vpop.f32.mrf.mxu0
      %v2278 = vadd.f32 0.0, %v2277
      %2279 = vmatmul.bf16.gmra.mxu0 %v2203
      %v2280 = vpop.f32.mrf.mxu0
      %v2281 = vadd.f32 0.0, %v2280
      %v2282 = vpop.f32.mrf.mxu0
      %v2283 = vadd.f32 0.0, %v2282
      %2284 = vdwg.mxu0
      %v2285 = vadd.f32 %v2111, %v2266
      %v2286 = vadd.f32 %v2112, %v2268
      %v2287 = vadd.f32 %v2113, %v2271
      %v2288 = vadd.f32 %v2114, %v2273
      %v2289 = vadd.f32 %v2115, %v2276
      %v2290 = vadd.f32 %v2116, %v2278
      %v2291 = vadd.f32 %v2117, %v2281
      %v2292 = vadd.f32 %v2118, %v2283
      %2293 = vst [vmem:[%s392] sm:$0xff] %v2285
      %2294 = vst [vmem:[%s392 + $0x8] sm:$0xff] %v2286
      %2295 = vst [vmem:[%s392 + $0x10] sm:$0xff] %v2287
      %2296 = vst [vmem:[%s392 + $0x18] sm:$0xff] %v2288
      %2297 = vst [vmem:[%s392 + $0x20] sm:$0xff] %v2289
      %2298 = vst [vmem:[%s392 + $0x28] sm:$0xff] %v2290
      %2299 = vst [vmem:[%s392 + $0x30] sm:$0xff] %v2291
      %2300 = vst [vmem:[%s392 + $0x38] sm:$0xff] %v2292
      %v2301 = vadd.f32 %v2285, %v2286
      %v2302 = vadd.f32 %v2301, %v2287
      %v2303 = vadd.f32 %v2302, %v2288
      %v2304 = vadd.f32 %v2303, %v2289
      %v2305 = vadd.f32 %v2304, %v2290
      %v2306 = vadd.f32 %v2305, %v2291
      %v2307 = vadd.f32 %v2306, %v2292
      %v2308 = vrot.slane %v2307, 4
      %v2309 = vadd.f32 %v2307, %v2308
      %v2310 = vrot.slane %v2309, 2
      %v2311 = vadd.f32 %v2309, %v2310
      %v2312 = vrot.slane %v2311, 1
      %v2313 = vadd.f32 %v2311, %v2312
      %v2314 = vmul.f32 %v2285, %v2285
      %v2315 = vmul.f32 %v2286, %v2286
      %v2316 = vmul.f32 %v2287, %v2287
      %v2317 = vmul.f32 %v2288, %v2288
      %v2318 = vmul.f32 %v2289, %v2289
      %v2319 = vmul.f32 %v2290, %v2290
      %v2320 = vmul.f32 %v2291, %v2291
      %v2321 = vmul.f32 %v2292, %v2292
      %v2322 = vadd.f32 %v2314, %v2315
      %v2323 = vadd.f32 %v2322, %v2316
      %v2324 = vadd.f32 %v2323, %v2317
      %v2325 = vadd.f32 %v2324, %v2318
      %v2326 = vadd.f32 %v2325, %v2319
      %v2327 = vadd.f32 %v2326, %v2320
      %v2328 = vadd.f32 %v2327, %v2321
      %v2329 = vrot.slane %v2328, 4
      %v2330 = vadd.f32 %v2328, %v2329
      %v2331 = vrot.slane %v2330, 2
      %v2332 = vadd.f32 %v2330, %v2331
      %v2333 = vrot.slane %v2332, 1
      %v2334 = vadd.f32 %v2332, %v2333
      %vm2335 = vcmask 1040384
      %v2336 = vsel %vm2335, %v2313, %v2334
      %2337 = vst [vmem:[%s400] sm:$0x3] %v2336
      %s2338 = smul.u32 8, %s22
      %p2339 = scmp.lt.s32.totalorder %s21, 1
      %s2340 = scalar_select %p2339, %s21, 1
      %p2341 = scmp.lt.s32.totalorder %s2338, 7
      %s2342 = scalar_select %p2341, %s2338, 7
      %s2343 = smul.addr %s2340, 8
      %s2344 = sadd.s32 %s2342, %s2343
      %s2345 = smul.addr %s2344, 8
      %s2346 = scalar_lea.vmem %s4, %s2345
      %p2347 = scmp.lt.s32.totalorder %s21, 1
      %s2348 = scalar_select %p2347, %s21, 1
      %p2349 = scmp.lt.s32.totalorder %s22, 0
      %s2350 = scalar_select %p2349, %s22, 0
      %s2351 = sadd.s32 %s2350, %s2348
      %s2352 = smul.addr %s2351, 2
      %s2353 = scalar_lea.vmem %s5, %s2352
      // Predicated region
      $region41: #{down_forward.5} parent=35 // pred_check
        %p2354 = pneg %p170
      $region42: #{down_forward.5} parent=35 // pred_check_branch
        %2356 = sbr.rel (%p2354) target = $region44
      $region43: #{down_forward.5} parent=35 // pred_region
        %s2357 = smul.u32 8, %s22
      $region44: #{down_forward.5} parent=35 // pred_fallthru
        _
      // Predicated region
      $region45: #{down_forward.5} parent=35 // pred_check
        %p2358 = pneg %p198
      $region46: #{down_forward.5} parent=35 // pred_check_branch
        %2360 = sbr.rel (%p2358) target = $region48
      $region47: #{down_forward.5} parent=35 // pred_region
        _
      $region48: #{down_forward.5} parent=35 // pred_fallthru
        _
    $region36: #{down_forward.5} parent=5 // pred_fallthru
      _
    %p2361 = scmp.le.s32.totalorder 2, %s12
    // Predicated region
    $region49: #{down_forward.5} parent=5 // pred_check
      %p2362 = pneg %p2361
    $region50: #{down_forward.5} parent=5 // pred_check_branch
      %2364 = sbr.rel (%p2362) target = $region52
    $region51: #{down_forward.5} parent=5 // pred_region
      %s2365 = ssub.s32 %s12, 2
      // Predicated region
      $region53: #{down_forward.5} parent=51 // pred_check
        %p2366 = pneg %p176
      $region54: #{down_forward.5} parent=51 // pred_check_branch
        %2368 = sbr.rel (%p2366) target = $region56
      $region55: #{down_forward.5} parent=51 // pred_region
        %s2369 = smul.u32 8, %s24
        %p2370 = scmp.lt.s32.totalorder %s23, 1
        %s2371 = scalar_select %p2370, %s23, 1
        %p2372 = scmp.lt.s32.totalorder %s2369, 7
        %s2373 = scalar_select %p2372, %s2369, 7
        %s2374 = smul.addr %s2371, 8
        %s2375 = sadd.s32 %s2373, %s2374
        %s2376 = smul.addr %s2375, 8
        %s2377 = scalar_lea.vmem %s4, %s2376
      $region56: #{down_forward.5} parent=51 // pred_fallthru
        _
      // Predicated region
      $region57: #{down_forward.5} parent=51 // pred_check
        %p2378 = pneg %p204
      $region58: #{down_forward.5} parent=51 // pred_check_branch
        %2380 = sbr.rel (%p2378) target = $region60
      $region59: #{down_forward.5} parent=51 // pred_region
        %p2381 = scmp.lt.s32.totalorder %s23, 1
        %s2382 = scalar_select %p2381, %s23, 1
        %p2383 = scmp.lt.s32.totalorder %s24, 0
        %s2384 = scalar_select %p2383, %s24, 0
        %s2385 = sadd.s32 %s2384, %s2382
        %s2386 = smul.addr %s2385, 2
        %s2387 = scalar_lea.vmem %s5, %s2386
      $region60: #{down_forward.5} parent=51 // pred_fallthru
        _
    $region52: #{down_forward.5} parent=5 // pred_fallthru
      _
  $region6: #{down_forward.5} parent=0 // loop_footer
    %s16 = sadd.s32 1, %s12
  $region7: #{down_forward.5} parent=0 // loop_footer_branch
    %11 = sbr.rel target = $region3
  $region8: #{down_forward.5} parent=0 // loop_exit
    _

// kernel: down_forward.6
$region0: #{down_forward.6}
  #allocation0 [shape = 'u32[]', space=smem, size = 0x4, offset = 0x4, fixed_abs, tag = 'smem constant byte address 0x4 - core index']
  #allocation1 [shape = 'u32[72,128]{1,0:T(1,128)}', space=vmem, size = 0x9000, scoped, tag = 'internal scratch']
  #allocation2 [shape = 'bf16[10,10,128]{2,1,0:T(8,128)(2,1)}', space=vmem, size = 0xa000, scoped, tag = 'scratch operand']
  %s0 = inlined_call_operand.vmem [shape: f32[2,8,8,128], index: 0, kind: input, shape index: {}, may-alias: {0,1,2}]
  %s1 = inlined_call_operand.vmem [shape: f32[2,8,8,128], index: 1, kind: input, shape index: {}, may-alias: {0,1,2}]
  %s2 = inlined_call_operand.vmem [shape: f32[2,8,8,128], index: 2, kind: input, shape index: {}, may-alias: {0,1,2}]
  %s3 = inlined_call_operand.vmem [shape: f32[2,1,2,128], index: 3, kind: input, shape index: {}]
  %s4 = inlined_call_operand.vmem [shape: f32[1,128], index: 4, kind: input, shape index: {}]
  %s5 = inlined_call_operand.vmem [shape: f32[1,128], index: 5, kind: input, shape index: {}]
  %s6 = inlined_call_operand.vmem [shape: bf16[9,128,128], index: 6, kind: input, shape index: {}]
  %s7 = inlined_call_operand.vmem [shape: f32[2,8,8,128], index: 7, kind: output, shape index: {0}]
  %s8 = inlined_call_operand.vmem [shape: f32[2,1,2,128], index: 8, kind: output, shape index: {1}]
  %9 = xla_tuple %s7, %s8
  %s10 = sld [smem:[#allocation0]]
  $region73: #{down_forward.6} parent=0
    _
  %s12 = ssub.s32 1, %s10
  %s13 = scalar_select 0, %s12, %s10
  loop: start=0, step=1, limit=4
  $region2: #{down_forward.6} parent=0 // loop_pre_header
    _
  $region3: #{down_forward.6} parent=0 // loop_header
    %s15 = sphi 0, %s19
    %p16 = scmp.ge.s32.totalorder %s15, 4
    %s22 = sphi 0, %s34
    %s23 = sphi 0, %s30
    %s24 = sphi 0, %s22
    %s25 = sphi 0, %s23
    %s26 = sphi 0, %s24
    %s27 = sphi 0, %s25
    %s47 = sphi 0, %s49
    %s50 = sphi 0, %s47
    %s51 = sphi 0, %s50
    %s67 = sphi 0, %s51
    %s75 = sphi 0, %s77
    %s78 = sphi 0, %s75
    %s79 = sphi 0, %s78
    %s95 = sphi 0, %s79
    %s111 = sphi 0, %s113
    %s114 = sphi 0, %s111
    %s115 = sphi 0, %s114
    %s131 = sphi 0, %s115
    %s135 = sphi 0, %s135
    %s137 = sphi 0, %s135
    %s138 = sphi 0, %s137
    %s152 = sphi 0, %s138
    %s156 = sphi 0, %s156
    %s158 = sphi 0, %s156
    %s159 = sphi 0, %s158
    %s173 = sphi 0, %s159
    %s177 = sphi 0, %s177
    %s179 = sphi 0, %s177
    %s180 = sphi 0, %s179
    %s194 = sphi 0, %s180
    %s198 = sphi 0, %s198
    %s200 = sphi 0, %s198
    %s201 = sphi 0, %s200
    %s215 = sphi 0, %s201
    %s223 = sphi 0, %s225
    %s226 = sphi 0, %s223
    %s227 = sphi 0, %s226
    %s243 = sphi 0, %s227
    %s251 = sphi 0, %s253
    %s254 = sphi 0, %s251
    %s255 = sphi 0, %s254
    %s271 = sphi 0, %s255
  $region4: #{down_forward.6} parent=0 // loop_header_branch
    %18 = sbr.rel (%p16) target = $region8
  $region5: #{down_forward.6} parent=0 // loop_body
    %s20 = ssub.s32 %s15, 1
    %s21 = ssub.s32 %s15, 2
    %s28 = sadd.s32 1, %s23
    %p29 = scmp.ge.s32.totalorder %s28, 1
    %s30 = scalar_select %p29, 0, %s28
    %s31 = sadd.s32 1, %s22
    %s32 = scalar_select %p29, %s31, %s22
    %p33 = scmp.ge.s32.totalorder %s32, 2
    %s34 = scalar_select %p33, 0, %s32
    %s35 = smul.u32 %s23, 8
    %s36 = ssub.s32 %s35, 1
    %p37 = scmp.gt.s32.totalorder %s36, 0
    %s38 = scalar_select %p37, %s36, 0
    %s39 = smul.u32 %s30, 8
    %s40 = ssub.s32 %s39, 1
    %p41 = scmp.gt.s32.totalorder %s40, 0
    %s42 = scalar_select %p41, %s40, 0
    %s43 = ssub.s32 %s22, %s34
    %s44 = ssub.s32 %s38, %s42
    %s45 = sor.u32 %s43, %s44
    %p46 = scmp.eq.s32.totalorder %s45, 0
    %s48 = sadd.s32 %s47, 1
    %s49 = scalar_select %p46, %s47, %s48
    %p52 = pneg %p46
    %p53 = scmp.eq.s32.totalorder %s15, 1
    %p54 = por %p52, %p53
    %p55 = scmp.ne.s32.totalorder %s47, %s50
    %p56 = scmp.eq.s32.totalorder %s15, 0
    %p57 = por %p55, %p56
    %p58 = scmp.ne.s32.totalorder %s47, %s50
    %p59 = scmp.eq.s32.totalorder %s20, 1
    %p60 = por %p58, %p59
    %p61 = scmp.ne.s32.totalorder %s50, %s51
    %p62 = scmp.eq.s32.totalorder %s20, 0
    %p63 = por %p61, %p62
    %p64 = scmp.ne.s32.totalorder %s50, %s51
    %p65 = scmp.eq.s32.totalorder %s21, 1
    %p66 = por %p64, %p65
    %p68 = scmp.ne.s32.totalorder %s51, %s67
    %p69 = scmp.eq.s32.totalorder %s21, 0
    %p70 = por %p68, %p69
    %s71 = ssub.s32 %s22, %s34
    %s72 = ssub.s32 %s23, %s30
    %s73 = sor.u32 %s71, %s72
    %p74 = scmp.eq.s32.totalorder %s73, 0
    %s76 = sadd.s32 %s75, 1
    %s77 = scalar_select %p74, %s75, %s76
    %p80 = pneg %p74
    %p81 = scmp.eq.s32.totalorder %s15, 1
    %p82 = por %p80, %p81
    %p83 = scmp.ne.s32.totalorder %s75, %s78
    %p84 = scmp.eq.s32.totalorder %s15, 0
    %p85 = por %p83, %p84
    %p86 = scmp.ne.s32.totalorder %s75, %s78
    %p87 = scmp.eq.s32.totalorder %s20, 1
    %p88 = por %p86, %p87
    %p89 = scmp.ne.s32.totalorder %s78, %s79
    %p90 = scmp.eq.s32.totalorder %s20, 0
    %p91 = por %p89, %p90
    %p92 = scmp.ne.s32.totalorder %s78, %s79
    %p93 = scmp.eq.s32.totalorder %s21, 1
    %p94 = por %p92, %p93
    %p96 = scmp.ne.s32.totalorder %s79, %s95
    %p97 = scmp.eq.s32.totalorder %s21, 0
    %p98 = por %p96, %p97
    %s99 = smul.u32 %s23, 8
    %s100 = sadd.s32 %s99, 8
    %p101 = scmp.lt.s32.totalorder %s100, 7
    %s102 = scalar_select %p101, %s100, 7
    %s103 = smul.u32 %s30, 8
    %s104 = sadd.s32 %s103, 8
    %p105 = scmp.lt.s32.totalorder %s104, 7
    %s106 = scalar_select %p105, %s104, 7
    %s107 = ssub.s32 %s22, %s34
    %s108 = ssub.s32 %s102, %s106
    %s109 = sor.u32 %s107, %s108
    %p110 = scmp.eq.s32.totalorder %s109, 0
    %s112 = sadd.s32 %s111, 1
    %s113 = scalar_select %p110, %s111, %s112
    %p116 = pneg %p110
    %p117 = scmp.eq.s32.totalorder %s15, 1
    %p118 = por %p116, %p117
    %p119 = scmp.ne.s32.totalorder %s111, %s114
    %p120 = scmp.eq.s32.totalorder %s15, 0
    %p121 = por %p119, %p120
    %p122 = scmp.ne.s32.totalorder %s111, %s114
    %p123 = scmp.eq.s32.totalorder %s20, 1
    %p124 = por %p122, %p123
    %p125 = scmp.ne.s32.totalorder %s114, %s115
    %p126 = scmp.eq.s32.totalorder %s20, 0
    %p127 = por %p125, %p126
    %p128 = scmp.ne.s32.totalorder %s114, %s115
    %p129 = scmp.eq.s32.totalorder %s21, 1
    %p130 = por %p128, %p129
    %p132 = scmp.ne.s32.totalorder %s115, %s131
    %p133 = scmp.eq.s32.totalorder %s21, 0
    %p134 = por %p132, %p133
    %s136 = sadd.s32 %s135, 1
    %p139 = scmp.eq.s32.totalorder %s15, 1
    %p140 = scmp.ne.s32.totalorder %s135, %s137
    %p141 = scmp.eq.s32.totalorder %s15, 0
    %p142 = por %p140, %p141
    %p143 = scmp.ne.s32.totalorder %s135, %s137
    %p144 = scmp.eq.s32.totalorder %s20, 1
    %p145 = por %p143, %p144
    %p146 = scmp.ne.s32.totalorder %s137, %s138
    %p147 = scmp.eq.s32.totalorder %s20, 0
    %p148 = por %p146, %p147
    %p149 = scmp.ne.s32.totalorder %s137, %s138
    %p150 = scmp.eq.s32.totalorder %s21, 1
    %p151 = por %p149, %p150
    %p153 = scmp.ne.s32.totalorder %s138, %s152
    %p154 = scmp.eq.s32.totalorder %s21, 0
    %p155 = por %p153, %p154
    %s157 = sadd.s32 %s156, 1
    %p160 = scmp.eq.s32.totalorder %s15, 1
    %p161 = scmp.ne.s32.totalorder %s156, %s158
    %p162 = scmp.eq.s32.totalorder %s15, 0
    %p163 = por %p161, %p162
    %p164 = scmp.ne.s32.totalorder %s156, %s158
    %p165 = scmp.eq.s32.totalorder %s20, 1
    %p166 = por %p164, %p165
    %p167 = scmp.ne.s32.totalorder %s158, %s159
    %p168 = scmp.eq.s32.totalorder %s20, 0
    %p169 = por %p167, %p168
    %p170 = scmp.ne.s32.totalorder %s158, %s159
    %p171 = scmp.eq.s32.totalorder %s21, 1
    %p172 = por %p170, %p171
    %p174 = scmp.ne.s32.totalorder %s159, %s173
    %p175 = scmp.eq.s32.totalorder %s21, 0
    %p176 = por %p174, %p175
    %s178 = sadd.s32 %s177, 1
    %p181 = scmp.eq.s32.totalorder %s15, 1
    %p182 = scmp.ne.s32.totalorder %s177, %s179
    %p183 = scmp.eq.s32.totalorder %s15, 0
    %p184 = por %p182, %p183
    %p185 = scmp.ne.s32.totalorder %s177, %s179
    %p186 = scmp.eq.s32.totalorder %s20, 1
    %p187 = por %p185, %p186
    %p188 = scmp.ne.s32.totalorder %s179, %s180
    %p189 = scmp.eq.s32.totalorder %s20, 0
    %p190 = por %p188, %p189
    %p191 = scmp.ne.s32.totalorder %s179, %s180
    %p192 = scmp.eq.s32.totalorder %s21, 1
    %p193 = por %p191, %p192
    %p195 = scmp.ne.s32.totalorder %s180, %s194
    %p196 = scmp.eq.s32.totalorder %s21, 0
    %p197 = por %p195, %p196
    %s199 = sadd.s32 %s198, 1
    %p202 = scmp.eq.s32.totalorder %s15, 1
    %p203 = scmp.ne.s32.totalorder %s198, %s200
    %p204 = scmp.eq.s32.totalorder %s15, 0
    %p205 = por %p203, %p204
    %p206 = scmp.ne.s32.totalorder %s198, %s200
    %p207 = scmp.eq.s32.totalorder %s20, 1
    %p208 = por %p206, %p207
    %p209 = scmp.ne.s32.totalorder %s200, %s201
    %p210 = scmp.eq.s32.totalorder %s20, 0
    %p211 = por %p209, %p210
    %p212 = scmp.ne.s32.totalorder %s200, %s201
    %p213 = scmp.eq.s32.totalorder %s21, 1
    %p214 = por %p212, %p213
    %p216 = scmp.ne.s32.totalorder %s201, %s215
    %p217 = scmp.eq.s32.totalorder %s21, 0
    %p218 = por %p216, %p217
    %s219 = ssub.s32 %s22, %s34
    %s220 = ssub.s32 %s23, %s30
    %s221 = sor.u32 %s219, %s220
    %p222 = scmp.eq.s32.totalorder %s221, 0
    %s224 = sadd.s32 %s223, 1
    %s225 = scalar_select %p222, %s223, %s224
    %p228 = pneg %p222
    %p229 = scmp.eq.s32.totalorder %s15, 1
    %p230 = por %p228, %p229
    %p231 = scmp.ne.s32.totalorder %s223, %s226
    %p232 = scmp.eq.s32.totalorder %s15, 0
    %p233 = por %p231, %p232
    %p234 = scmp.ne.s32.totalorder %s223, %s226
    %p235 = scmp.eq.s32.totalorder %s20, 1
    %p236 = por %p234, %p235
    %p237 = scmp.ne.s32.totalorder %s226, %s227
    %p238 = scmp.eq.s32.totalorder %s20, 0
    %p239 = por %p237, %p238
    %p240 = scmp.ne.s32.totalorder %s226, %s227
    %p241 = scmp.eq.s32.totalorder %s21, 1
    %p242 = por %p240, %p241
    %p244 = scmp.ne.s32.totalorder %s227, %s243
    %p245 = scmp.eq.s32.totalorder %s21, 0
    %p246 = por %p244, %p245
    %s247 = ssub.s32 %s22, %s34
    %s248 = ssub.s32 %s23, %s30
    %s249 = sor.u32 %s247, %s248
    %p250 = scmp.eq.s32.totalorder %s249, 0
    %s252 = sadd.s32 %s251, 1
    %s253 = scalar_select %p250, %s251, %s252
    %p256 = pneg %p250
    %p257 = scmp.eq.s32.totalorder %s15, 1
    %p258 = por %p256, %p257
    %p259 = scmp.ne.s32.totalorder %s251, %s254
    %p260 = scmp.eq.s32.totalorder %s15, 0
    %p261 = por %p259, %p260
    %p262 = scmp.ne.s32.totalorder %s251, %s254
    %p263 = scmp.eq.s32.totalorder %s20, 1
    %p264 = por %p262, %p263
    %p265 = scmp.ne.s32.totalorder %s254, %s255
    %p266 = scmp.eq.s32.totalorder %s20, 0
    %p267 = por %p265, %p266
    %p268 = scmp.ne.s32.totalorder %s254, %s255
    %p269 = scmp.eq.s32.totalorder %s21, 1
    %p270 = por %p268, %p269
    %p272 = scmp.ne.s32.totalorder %s255, %s271
    %p273 = scmp.eq.s32.totalorder %s21, 0
    %p274 = por %p272, %p273
    %p275 = scmp.le.s32.totalorder 1, %s15
    %p276 = scmp.lt.s32.totalorder %s15, 3
    %p277 = pnand %p275, %p276
    %p278 = pneg %p277
    // Predicated region
    $region9: #{down_forward.6} parent=5 // pred_check
      _
    $region10: #{down_forward.6} parent=5 // pred_check_branch
      %280 = sbr.rel (%p277) target = $region12
    $region11: #{down_forward.6} parent=5 // pred_region
      %s281 = ssub.s32 %s15, 1
      // Predicated region
      $region13: #{down_forward.6} parent=11 // pred_check
        %p282 = pneg %p148
      $region14: #{down_forward.6} parent=11 // pred_check_branch
        %284 = sbr.rel (%p282) target = $region16
      $region15: #{down_forward.6} parent=11 // pred_region
        _
      $region16: #{down_forward.6} parent=11 // pred_fallthru
        _
      // Predicated region
      $region17: #{down_forward.6} parent=11 // pred_check
        %p285 = pneg %p169
      $region18: #{down_forward.6} parent=11 // pred_check_branch
        %287 = sbr.rel (%p285) target = $region20
      $region19: #{down_forward.6} parent=11 // pred_region
        _
      $region20: #{down_forward.6} parent=11 // pred_fallthru
        _
      // Predicated region
      $region21: #{down_forward.6} parent=11 // pred_check
        %p288 = pneg %p190
      $region22: #{down_forward.6} parent=11 // pred_check_branch
        %290 = sbr.rel (%p288) target = $region24
      $region23: #{down_forward.6} parent=11 // pred_region
        _
      $region24: #{down_forward.6} parent=11 // pred_fallthru
        _
      // Predicated region
      $region25: #{down_forward.6} parent=11 // pred_check
        %p291 = pneg %p211
      $region26: #{down_forward.6} parent=11 // pred_check_branch
        %293 = sbr.rel (%p291) target = $region28
      $region27: #{down_forward.6} parent=11 // pred_region
        _
      $region28: #{down_forward.6} parent=11 // pred_fallthru
        _
    $region12: #{down_forward.6} parent=5 // pred_fallthru
      _
    %p294 = scmp.lt.s32.totalorder %s15, 2
    // Predicated region
    $region29: #{down_forward.6} parent=5 // pred_check
      %p295 = pneg %p294
    $region30: #{down_forward.6} parent=5 // pred_check_branch
      %297 = sbr.rel (%p295) target = $region32
    $region31: #{down_forward.6} parent=5 // pred_region
      // Predicated region
      $region33: #{down_forward.6} parent=31 // pred_check
        %p298 = pneg %p57
      $region34: #{down_forward.6} parent=31 // pred_check_branch
        %300 = sbr.rel (%p298) target = $region36
      $region35: #{down_forward.6} parent=31 // pred_region
        %s301 = smul.u32 %s23, 8
        %s302 = ssub.s32 %s301, 1
        %p303 = scmp.gt.s32.totalorder %s302, 0
        %s304 = scalar_select %p303, %s302, 0
        %p305 = scmp.lt.s32.totalorder %s22, 1
        %s306 = scalar_select %p305, %s22, 1
        %p307 = scmp.lt.s32.totalorder %s304, 7
        %s308 = scalar_select %p307, %s304, 7
        %s309 = smul.addr %s306, 8
        %s310 = sadd.s32 %s308, %s309
        %s311 = smul.addr %s310, 8
        %s312 = scalar_lea.vmem %s0, %s311
        %s313 = smul.u32 %s23, 8
        %s314 = ssub.s32 %s313, 1
        %p315 = scmp.gt.s32.totalorder %s314, 0
        %s316 = scalar_select %p315, %s314, 0
      $region36: #{down_forward.6} parent=31 // pred_fallthru
        _
      // Predicated region
      $region37: #{down_forward.6} parent=31 // pred_check
        %p317 = pneg %p85
      $region38: #{down_forward.6} parent=31 // pred_check_branch
        %319 = sbr.rel (%p317) target = $region40
      $region39: #{down_forward.6} parent=31 // pred_region
        %s320 = smul.u32 8, %s23
        %p321 = scmp.lt.s32.totalorder %s22, 1
        %s322 = scalar_select %p321, %s22, 1
        %p323 = scmp.lt.s32.totalorder %s320, 7
        %s324 = scalar_select %p323, %s320, 7
        %s325 = smul.addr %s322, 8
        %s326 = sadd.s32 %s324, %s325
        %s327 = smul.addr %s326, 8
        %s328 = scalar_lea.vmem %s1, %s327
        %s329 = smul.u32 8, %s23
      $region40: #{down_forward.6} parent=31 // pred_fallthru
        _
      // Predicated region
      $region41: #{down_forward.6} parent=31 // pred_check
        %p330 = pneg %p121
      $region42: #{down_forward.6} parent=31 // pred_check_branch
        %332 = sbr.rel (%p330) target = $region44
      $region43: #{down_forward.6} parent=31 // pred_region
        %s333 = smul.u32 %s23, 8
        %s334 = sadd.s32 %s333, 8
        %p335 = scmp.lt.s32.totalorder %s334, 7
        %s336 = scalar_select %p335, %s334, 7
        %p337 = scmp.lt.s32.totalorder %s22, 1
        %s338 = scalar_select %p337, %s22, 1
        %p339 = scmp.lt.s32.totalorder %s336, 7
        %s340 = scalar_select %p339, %s336, 7
        %s341 = smul.addr %s338, 8
        %s342 = sadd.s32 %s340, %s341
        %s343 = smul.addr %s342, 8
        %s344 = scalar_lea.vmem %s2, %s343
        %s345 = smul.u32 %s23, 8
        %s346 = sadd.s32 %s345, 8
        %p347 = scmp.lt.s32.totalorder %s346, 7
        %s348 = scalar_select %p347, %s346, 7
      $region44: #{down_forward.6} parent=31 // pred_fallthru
        _
    $region32: #{down_forward.6} parent=5 // pred_fallthru
      _
    %p349 = scmp.le.s32.totalorder 1, %s15
    %p350 = scmp.lt.s32.totalorder %s15, 3
    %p351 = pnand %p349, %p350
    %p352 = pneg %p351
    // Predicated region
    $region45: #{down_forward.6} parent=5 // pred_check
      _
    $region46: #{down_forward.6} parent=5 // pred_check_branch
      %354 = sbr.rel (%p351) target = $region48
    $region47: #{down_forward.6} parent=5 // pred_region
      %s355 = ssub.s32 %s15, 1
      %s356 = smul.u32 %s25, 8
      %s357 = ssub.s32 %s356, 1
      %p358 = scmp.gt.s32.totalorder %s357, 0
      %s359 = scalar_select %p358, %s357, 0
      %p360 = scmp.lt.s32.totalorder %s24, 1
      %s361 = scalar_select %p360, %s24, 1
      %p362 = scmp.lt.s32.totalorder %s359, 7
      %s363 = scalar_select %p362, %s359, 7
      %s364 = smul.addr %s361, 8
      %s365 = sadd.s32 %s363, %s364
      %s366 = smul.addr %s365, 8
      %s367 = scalar_lea.vmem %s0, %s366
      %p368 = pneg %p63
      %p369 = pneg %p60
      %s370 = smul.u32 8, %s25
      %p371 = scmp.lt.s32.totalorder %s24, 1
      %s372 = scalar_select %p371, %s24, 1
      %p373 = scmp.lt.s32.totalorder %s370, 7
      %s374 = scalar_select %p373, %s370, 7
      %s375 = smul.addr %s372, 8
      %s376 = sadd.s32 %s374, %s375
      %s377 = smul.addr %s376, 8
      %s378 = scalar_lea.vmem %s1, %s377
      %p379 = pneg %p91
      %p380 = pneg %p88
      %s381 = smul.u32 %s25, 8
      %s382 = sadd.s32 %s381, 8
      %p383 = scmp.lt.s32.totalorder %s382, 7
      %s384 = scalar_select %p383, %s382, 7
      %p385 = scmp.lt.s32.totalorder %s24, 1
      %s386 = scalar_select %p385, %s24, 1
      %p387 = scmp.lt.s32.totalorder %s384, 7
      %s388 = scalar_select %p387, %s384, 7
      %s389 = smul.addr %s386, 8
      %s390 = sadd.s32 %s388, %s389
      %s391 = smul.addr %s390, 8
      %s392 = scalar_lea.vmem %s2, %s391
      %p393 = pneg %p127
      %p394 = pneg %p124
      %p395 = pneg %p148
      %p396 = pneg %p145
      %p397 = pneg %p169
      %p398 = pneg %p166
      %p399 = pneg %p190
      %p400 = pneg %p187
      %p401 = pneg %p211
      %p402 = pneg %p208
      %p403 = pneg %p239
      %p404 = pneg %p236
      %s405 = smul.u32 8, %s25
      %p406 = scmp.lt.s32.totalorder %s24, 1
      %s407 = scalar_select %p406, %s24, 1
      %p408 = scmp.lt.s32.totalorder %s405, 7
      %s409 = scalar_select %p408, %s405, 7
      %s410 = smul.addr %s407, 8
      %s411 = sadd.s32 %s409, %s410
      %s412 = smul.addr %s411, 8
      %s413 = scalar_lea.vmem %s7, %s412
      %p414 = pneg %p267
      %p415 = pneg %p264
      %p416 = scmp.lt.s32.totalorder %s24, 1
      %s417 = scalar_select %p416, %s24, 1
      %p418 = scmp.lt.s32.totalorder %s25, 0
      %s419 = scalar_select %p418, %s25, 0
      %s420 = sadd.s32 %s419, %s417
      %s421 = smul.addr %s420, 2
      %s422 = scalar_lea.vmem %s8, %s421
      %s423 = smul.u32 %s25, 8
      %s424 = ssub.s32 %s423, 1
      %p425 = scmp.gt.s32.totalorder %s424, 0
      %s426 = scalar_select %p425, %s424, 0
      %p427 = scmp.lt.s32.totalorder %s24, 1
      %s428 = scalar_select %p427, %s24, 1
      %p429 = scmp.lt.s32.totalorder %s426, 7
      %s430 = scalar_select %p429, %s426, 7
      %s431 = smul.addr %s428, 8
      %s432 = sadd.s32 %s430, %s431
      %s433 = smul.addr %s432, 8
      %s434 = scalar_lea.vmem %s0, %s433
      %s435 = smul.u32 %s25, 8
      %s436 = ssub.s32 %s435, 1
      %p437 = scmp.gt.s32.totalorder %s436, 0
      %s438 = scalar_select %p437, %s436, 0
      %s439 = smul.u32 8, %s25
      %p440 = scmp.lt.s32.totalorder %s24, 1
      %s441 = scalar_select %p440, %s24, 1
      %p442 = scmp.lt.s32.totalorder %s439, 7
      %s443 = scalar_select %p442, %s439, 7
      %s444 = smul.addr %s441, 8
      %s445 = sadd.s32 %s443, %s444
      %s446 = smul.addr %s445, 8
      %s447 = scalar_lea.vmem %s1, %s446
      %s448 = smul.u32 8, %s25
      %s449 = smul.u32 %s25, 8
      %s450 = sadd.s32 %s449, 8
      %p451 = scmp.lt.s32.totalorder %s450, 7
      %s452 = scalar_select %p451, %s450, 7
      %p453 = scmp.lt.s32.totalorder %s24, 1
      %s454 = scalar_select %p453, %s24, 1
      %p455 = scmp.lt.s32.totalorder %s452, 7
      %s456 = scalar_select %p455, %s452, 7
      %s457 = smul.addr %s454, 8
      %s458 = sadd.s32 %s456, %s457
      %s459 = smul.addr %s458, 8
      %s460 = scalar_lea.vmem %s2, %s459
      %s461 = smul.u32 %s25, 8
      %s462 = sadd.s32 %s461, 8
      %p463 = scmp.lt.s32.totalorder %s462, 7
      %s464 = scalar_select %p463, %s462, 7
      %s465 = smul.u32 8, %s25
      %p466 = scmp.lt.s32.totalorder %s24, 1
      %s467 = scalar_select %p466, %s24, 1
      %p468 = scmp.lt.s32.totalorder %s465, 7
      %s469 = scalar_select %p468, %s465, 7
      %s470 = smul.addr %s467, 8
      %s471 = sadd.s32 %s469, %s470
      %s472 = smul.addr %s471, 8
      %s473 = scalar_lea.vmem %s7, %s472
      %s474 = smul.u32 8, %s25
      %p475 = scmp.lt.s32.totalorder %s24, 1
      %s476 = scalar_select %p475, %s24, 1
      %p477 = scmp.lt.s32.totalorder %s25, 0
      %s478 = scalar_select %p477, %s25, 0
      %s479 = sadd.s32 %s478, %s476
      %s480 = smul.addr %s479, 2
      %s481 = scalar_lea.vmem %s8, %s480
      %v483 = vld [vmem:[%s3] sm:$0x3]
      %v484 = vld [vmem:[%s3 + $0x2] sm:$0x3]
      %v485 = vld [vmem:[%s4] sm:$0x1]
      %v486 = vld [vmem:[%s5] sm:$0x1]
      %vm487 = vcmask 1041408
      %v488 = vsel %vm487, %v483, 0.0
      %v489 = vsel %vm487, %v484, 0.0
      %v490 = vadd.f32 %v488, %v489
      %v491 = vmul.f32 %v490, 0.0078125
      %v492 = vmul.f32 %v491, %v491
      %v494 = vrot.slane %v492, 7
      %v496 = vsub.f32 %v491, %v494
      %v497 = vmax.f32 %v496, 0.0
      %v498 = vadd.f32 %v497, 1e-05
      %v499 = vrsqrt.pop %v498
      %v500 = vmul.f32 %v499, %v498
      %v501 = vmul.f32 %v500, %v499
      %v502 = vmul.f32 0.5, %v501
      %v503 = vsub.f32 1.5, %v502
      %v504 = vmul.f32 %v499, %v503
      %vm505 = vweird.f32 %v498
      %vm506 = vweird.f32 %v499
      %vm507 = vmor %vm505, %vm506
      %v508 = vsel %vm507, %v499, %v504
      %510 = vst [vmem:[#allocation1] sm:$0xff] %v508
      %s511 = scalar_lea.vmem [#allocation1], 1
      %v512 = vld [vmem:[%s511] ss:$9 sm:$0xff]
      %v514 = vmul.f32 %v485, %v512
      %v515 = vmul.f32 %v491, %v514
      %v516 = vsub.f32 %v486, %v515
      %v517 = vld [vmem:[%s434] sm:$0xff]
      %v519 = vperm.slane %v514, 0
      %v521 = vmul.f32 %v517, %v519
      %v523 = vperm.slane %v516, 0
      %v525 = vadd.f32 %v521, %v523
      %vm526 = vcmp.ge.f32.partialorder %v525, 0.0
      %v527 = vmul.f32 %v525, 0.01
      %v528 = vsel %vm526, %v525, %v527
      %v529 = vpack.c.bf16 %v528, %v528
      %v531 = vshrl.u32 %v529, 16
      %v533 = vrot.slane %v531, 7
      %v534 = vshll.u32 %v529, 16
      %v536 = vor.u32 %v533, %v534
      %v537 = vrot.slane %v533, 4
      %vm540 = vcmask 1043456
      %vm541 = vsmask.f32 7938
      %vm542 = vmand %vm540, %vm541
      %v543 = vld [vmem:[#allocation2] sm:$0xf]
      %v544 = vsel %vm542, %v536, %v543
      %545 = vst [vmem:[#allocation2] sm:$0xf] %v544
      %vm546 = vcmask 1040384
      %vm547 = vsmask.f32 256
      %vm548 = vmand %vm546, %vm547
      %v549 = vld [vmem:[#allocation2 + $0x4] sm:$0x1]
      %v550 = vsel %vm548, %v537, %v549
      %551 = vst [vmem:[#allocation2 + $0x4] sm:$0x1] %v550
      %v552 = vld [vmem:[%s447] sm:$0xff]
      %v553 = vld [vmem:[%s447 + $0x8] sm:$0xff]
      %v554 = vld [vmem:[%s447 + $0x10] sm:$0xff]
      %v555 = vld [vmem:[%s447 + $0x18] sm:$0xff]
      %v556 = vld [vmem:[%s447 + $0x20] sm:$0xff]
      %v557 = vld [vmem:[%s447 + $0x28] sm:$0xff]
      %v558 = vld [vmem:[%s447 + $0x30] sm:$0xff]
      %v559 = vld [vmem:[%s447 + $0x38] sm:$0xff]
      %v560 = vmul.f32 %v552, %v519
      %v561 = vmul.f32 %v553, %v519
      %v562 = vmul.f32 %v554, %v519
      %v563 = vmul.f32 %v555, %v519
      %v564 = vmul.f32 %v556, %v519
      %v565 = vmul.f32 %v557, %v519
      %v566 = vmul.f32 %v558, %v519
      %v567 = vmul.f32 %v559, %v519
      %v568 = vadd.f32 %v560, %v523
      %v569 = vadd.f32 %v561, %v523
      %v570 = vadd.f32 %v562, %v523
      %v571 = vadd.f32 %v563, %v523
      %v572 = vadd.f32 %v564, %v523
      %v573 = vadd.f32 %v565, %v523
      %v574 = vadd.f32 %v566, %v523
      %v575 = vadd.f32 %v567, %v523
      %vm576 = vcmp.ge.f32.partialorder %v568, 0.0
      %vm577 = vcmp.ge.f32.partialorder %v569, 0.0
      %vm578 = vcmp.ge.f32.partialorder %v570, 0.0
      %vm579 = vcmp.ge.f32.partialorder %v571, 0.0
      %vm580 = vcmp.ge.f32.partialorder %v572, 0.0
      %vm581 = vcmp.ge.f32.partialorder %v573, 0.0
      %vm582 = vcmp.ge.f32.partialorder %v574, 0.0
      %vm583 = vcmp.ge.f32.partialorder %v575, 0.0
      %v584 = vmul.f32 %v568, 0.01
      %v585 = vmul.f32 %v569, 0.01
      %v586 = vmul.f32 %v570, 0.01
      %v587 = vmul.f32 %v571, 0.01
      %v588 = vmul.f32 %v572, 0.01
      %v589 = vmul.f32 %v573, 0.01
      %v590 = vmul.f32 %v574, 0.01
      %v591 = vmul.f32 %v575, 0.01
      %v592 = vsel %vm576, %v568, %v584
      %v593 = vsel %vm577, %v569, %v585
      %v594 = vsel %vm578, %v570, %v586
      %v595 = vsel %vm579, %v571, %v587
      %v596 = vsel %vm580, %v572, %v588
      %v597 = vsel %vm581, %v573, %v589
      %v598 = vsel %vm582, %v574, %v590
      %v599 = vsel %vm583, %v575, %v591
      %v600 = vpack.c.bf16 %v592, %v592
      %v601 = vpack.c.bf16 %v593, %v593
      %v602 = vpack.c.bf16 %v594, %v594
      %v603 = vpack.c.bf16 %v595, %v595
      %v604 = vpack.c.bf16 %v596, %v596
      %v605 = vpack.c.bf16 %v597, %v597
      %v606 = vpack.c.bf16 %v598, %v598
      %v607 = vpack.c.bf16 %v599, %v599
      %v609 = vshrl.u32 %v600, 16
      %v611 = vrot.slane %v609, 7
      %v612 = vshll.u32 %v600, 16
      %v614 = vor.u32 %v611, %v612
      %v615 = vrot.slane %v611, 4
      %v617 = vshrl.u32 %v601, 16
      %v619 = vrot.slane %v617, 7
      %v620 = vshll.u32 %v601, 16
      %v622 = vor.u32 %v619, %v620
      %v623 = vrot.slane %v619, 4
      %v625 = vshrl.u32 %v602, 16
      %v627 = vrot.slane %v625, 7
      %v628 = vshll.u32 %v602, 16
      %v630 = vor.u32 %v627, %v628
      %v631 = vrot.slane %v627, 4
      %v633 = vshrl.u32 %v603, 16
      %v635 = vrot.slane %v633, 7
      %v636 = vshll.u32 %v603, 16
      %v638 = vor.u32 %v635, %v636
      %v639 = vrot.slane %v635, 4
      %v641 = vshrl.u32 %v604, 16
      %v643 = vrot.slane %v641, 7
      %v644 = vshll.u32 %v604, 16
      %v646 = vor.u32 %v643, %v644
      %v647 = vrot.slane %v643, 4
      %v649 = vshrl.u32 %v605, 16
      %v651 = vrot.slane %v649, 7
      %v652 = vshll.u32 %v605, 16
      %v654 = vor.u32 %v651, %v652
      %v655 = vrot.slane %v651, 4
      %v657 = vshrl.u32 %v606, 16
      %v659 = vrot.slane %v657, 7
      %v660 = vshll.u32 %v606, 16
      %v662 = vor.u32 %v659, %v660
      %v663 = vrot.slane %v659, 4
      %v665 = vshrl.u32 %v607, 16
      %v667 = vrot.slane %v665, 7
      %v668 = vshll.u32 %v607, 16
      %v670 = vor.u32 %v667, %v668
      %v671 = vrot.slane %v667, 4
      %s688 = scalar_lea.vmem [#allocation2], 8
      %v689 = vld [vmem:[%s688] sm:$0xf]
      %v690 = vsel %vm542, %v614, %v689
      %691 = vst [vmem:[%s688] sm:$0xf] %v690
      %v692 = vld [vmem:[%s688 + $0x4] sm:$0x1]
      %v693 = vsel %vm548, %v615, %v692
      %694 = vst [vmem:[%s688 + $0x4] sm:$0x1] %v693
      %v695 = vld [vmem:[%s688 + $0x8] sm:$0xf]
      %v696 = vsel %vm542, %v622, %v695
      %697 = vst [vmem:[%s688 + $0x8] sm:$0xf] %v696
      %v698 = vld [vmem:[%s688 + $0xc] sm:$0x1]
      %v699 = vsel %vm548, %v623, %v698
      %700 = vst [vmem:[%s688 + $0xc] sm:$0x1] %v699
      %v701 = vld [vmem:[%s688 + $0x10] sm:$0xf]
      %v702 = vsel %vm542, %v630, %v701
      %703 = vst [vmem:[%s688 + $0x10] sm:$0xf] %v702
      %v704 = vld [vmem:[%s688 + $0x14] sm:$0x1]
      %v705 = vsel %vm548, %v631, %v704
      %706 = vst [vmem:[%s688 + $0x14] sm:$0x1] %v705
      %v707 = vld [vmem:[%s688 + $0x18] sm:$0xf]
      %v708 = vsel %vm542, %v638, %v707
      %709 = vst [vmem:[%s688 + $0x18] sm:$0xf] %v708
      %v710 = vld [vmem:[%s688 + $0x1c] sm:$0x1]
      %v711 = vsel %vm548, %v639, %v710
      %712 = vst [vmem:[%s688 + $0x1c] sm:$0x1] %v711
      %v713 = vld [vmem:[%s688 + $0x20] sm:$0xf]
      %v714 = vsel %vm542, %v646, %v713
      %715 = vst [vmem:[%s688 + $0x20] sm:$0xf] %v714
      %v716 = vld [vmem:[%s688 + $0x24] sm:$0x1]
      %v717 = vsel %vm548, %v647, %v716
      %718 = vst [vmem:[%s688 + $0x24] sm:$0x1] %v717
      %v719 = vld [vmem:[%s688 + $0x28] sm:$0xf]
      %v720 = vsel %vm542, %v654, %v719
      %721 = vst [vmem:[%s688 + $0x28] sm:$0xf] %v720
      %v722 = vld [vmem:[%s688 + $0x2c] sm:$0x1]
      %v723 = vsel %vm548, %v655, %v722
      %724 = vst [vmem:[%s688 + $0x2c] sm:$0x1] %v723
      %v725 = vld [vmem:[%s688 + $0x30] sm:$0xf]
      %v726 = vsel %vm542, %v662, %v725
      %727 = vst [vmem:[%s688 + $0x30] sm:$0xf] %v726
      %v728 = vld [vmem:[%s688 + $0x34] sm:$0x1]
      %v729 = vsel %vm548, %v663, %v728
      %730 = vst [vmem:[%s688 + $0x34] sm:$0x1] %v729
      %v731 = vld [vmem:[%s688 + $0x38] sm:$0xf]
      %v732 = vsel %vm542, %v670, %v731
      %733 = vst [vmem:[%s688 + $0x38] sm:$0xf] %v732
      %v734 = vld [vmem:[%s688 + $0x3c] sm:$0x1]
      %v735 = vsel %vm548, %v671, %v734
      %736 = vst [vmem:[%s688 + $0x3c] sm:$0x1] %v735
      %v737 = vld [vmem:[%s460] sm:$0xff]
      %v738 = vmul.f32 %v737, %v519
      %v739 = vadd.f32 %v738, %v523
      %vm740 = vcmp.ge.f32.partialorder %v739, 0.0
      %v741 = vmul.f32 %v739, 0.01
      %v742 = vsel %vm740, %v739, %v741
      %v743 = vpack.c.bf16 %v742, %v742
      %v745 = vshrl.u32 %v743, 16
      %v747 = vrot.slane %v745, 7
      %v748 = vshll.u32 %v743, 16
      %v750 = vor.u32 %v747, %v748
      %v751 = vrot.slane %v747, 4
      %s754 = scalar_lea.vmem [#allocation2], 72
      %v755 = vld [vmem:[%s754] sm:$0xf]
      %v756 = vsel %vm542, %v750, %v755
      %757 = vst [vmem:[%s754] sm:$0xf] %v756
      %v758 = vld [vmem:[%s754 + $0x4] sm:$0x1]
      %v759 = vsel %vm548, %v751, %v758
      %760 = vst [vmem:[%s754 + $0x4] sm:$0x1] %v759
      %v761 = vld [vmem:[#allocation2] sm:$0x1]
      %v762 = vsel %vm548, 0, %v761
      %763 = vst [vmem:[#allocation2] sm:$0x1] %v762
      %v764 = vld [vmem:[#allocation2 + $0x8] sm:$0x1]
      %v765 = vsel %vm548, 0, %v764
      %766 = vst [vmem:[#allocation2 + $0x8] sm:$0x1] %v765
      %v767 = vld [vmem:[#allocation2 + $0x10] sm:$0x1]
      %v768 = vsel %vm548, 0, %v767
      %769 = vst [vmem:[#allocation2 + $0x10] sm:$0x1] %v768
      %v770 = vld [vmem:[#allocation2 + $0x18] sm:$0x1]
      %v771 = vsel %vm548, 0, %v770
      %772 = vst [vmem:[#allocation2 + $0x18] sm:$0x1] %v771
      %v773 = vld [vmem:[#allocation2 + $0x20] sm:$0x1]
      %v774 = vsel %vm548, 0, %v773
      %775 = vst [vmem:[#allocation2 + $0x20] sm:$0x1] %v774
      %v776 = vld [vmem:[#allocation2 + $0x28] sm:$0x1]
      %v777 = vsel %vm548, 0, %v776
      %778 = vst [vmem:[#allocation2 + $0x28] sm:$0x1] %v777
      %v779 = vld [vmem:[#allocation2 + $0x30] sm:$0x1]
      %v780 = vsel %vm548, 0, %v779
      %781 = vst [vmem:[#allocation2 + $0x30] sm:$0x1] %v780
      %v782 = vld [vmem:[#allocation2 + $0x38] sm:$0x1]
      %v783 = vsel %vm548, 0, %v782
      %784 = vst [vmem:[#allocation2 + $0x38] sm:$0x1] %v783
      %v785 = vld [vmem:[#allocation2 + $0x40] sm:$0x1]
      %v786 = vsel %vm548, 0, %v785
      %787 = vst [vmem:[#allocation2 + $0x40] sm:$0x1] %v786
      %v788 = vld [vmem:[#allocation2 + $0x48] sm:$0x1]
      %v789 = vsel %vm548, 0, %v788
      %790 = vst [vmem:[#allocation2 + $0x48] sm:$0x1] %v789
      %vm791 = vmand %vm546, %vm541
      %v792 = vld [vmem:[#allocation2 + $0x4] sm:$0x1]
      %v793 = vsel %vm791, 0, %v792
      %794 = vst [vmem:[#allocation2 + $0x4] sm:$0x1] %v793
      %v795 = vld [vmem:[#allocation2 + $0xc] sm:$0x1]
      %v796 = vsel %vm791, 0, %v795
      %797 = vst [vmem:[#allocation2 + $0xc] sm:$0x1] %v796
      %v798 = vld [vmem:[#allocation2 + $0x14] sm:$0x1]
      %v799 = vsel %vm791, 0, %v798
      %800 = vst [vmem:[#allocation2 + $0x14] sm:$0x1] %v799
      %v801 = vld [vmem:[#allocation2 + $0x1c] sm:$0x1]
      %v802 = vsel %vm791, 0, %v801
      %803 = vst [vmem:[#allocation2 + $0x1c] sm:$0x1] %v802
      %v804 = vld [vmem:[#allocation2 + $0x24] sm:$0x1]
      %v805 = vsel %vm791, 0, %v804
      %806 = vst [vmem:[#allocation2 + $0x24] sm:$0x1] %v805
      %v807 = vld [vmem:[#allocation2 + $0x2c] sm:$0x1]
      %v808 = vsel %vm791, 0, %v807
      %809 = vst [vmem:[#allocation2 + $0x2c] sm:$0x1] %v808
      %v810 = vld [vmem:[#allocation2 + $0x34] sm:$0x1]
      %v811 = vsel %vm791, 0, %v810
      %812 = vst [vmem:[#allocation2 + $0x34] sm:$0x1] %v811
      %v813 = vld [vmem:[#allocation2 + $0x3c] sm:$0x1]
      %v814 = vsel %vm791, 0, %v813
      %815 = vst [vmem:[#allocation2 + $0x3c] sm:$0x1] %v814
      %v816 = vld [vmem:[#allocation2 + $0x44] sm:$0x1]
      %v817 = vsel %vm791, 0, %v816
      %818 = vst [vmem:[#allocation2 + $0x44] sm:$0x1] %v817
      %v819 = vld [vmem:[#allocation2 + $0x4c] sm:$0x1]
      %v820 = vsel %vm791, 0, %v819
      %821 = vst [vmem:[#allocation2 + $0x4c] sm:$0x1] %v820
      %p822 = scmp.eq.s32.totalorder %s25, 0
      // Predicated region
      $region49: #{down_forward.6} parent=47 // pred_check
        %p823 = pneg %p822
      $region50: #{down_forward.6} parent=47 // pred_check_branch
        %825 = sbr.rel (%p823) target = $region52
      $region51: #{down_forward.6} parent=47 // pred_region
        %826 = vst [vmem:[#allocation2] sm:$0xf] 0
        %827 = vst [vmem:[#allocation2 + $0x4] sm:$0x1] 0
        %828 = vst [vmem:[%s754] sm:$0xf] 0
        %829 = vst [vmem:[%s754 + $0x4] sm:$0x1] 0
      $region52: #{down_forward.6} parent=47 // pred_fallthru
        _
      %v830 = vld [vmem:[#allocation2] sm:$0xf]
      %v831 = vld [vmem:[#allocation2 + $0x8] sm:$0xf]
      %v832 = vld [vmem:[#allocation2 + $0x10] sm:$0xf]
      %v833 = vld [vmem:[#allocation2 + $0x18] sm:$0xf]
      %v834 = vld [vmem:[#allocation2 + $0x20] sm:$0xf]
      %v835 = vld [vmem:[#allocation2 + $0x28] sm:$0xf]
      %v836 = vld [vmem:[#allocation2 + $0x30] sm:$0xf]
      %v837 = vld [vmem:[#allocation2 + $0x38] sm:$0xf]
      %v838 = vld [vmem:[%s6] sm:$0xf]
      %v839 = vld [vmem:[%s6 + $0x4] sm:$0xf]
      %v840 = vld [vmem:[%s6 + $0x8] sm:$0xf]
      %v841 = vld [vmem:[%s6 + $0xc] sm:$0xf]
      %v842 = vld [vmem:[%s6 + $0x10] sm:$0xf]
      %v843 = vld [vmem:[%s6 + $0x14] sm:$0xf]
      %v844 = vld [vmem:[%s6 + $0x18] sm:$0xf]
      %v845 = vld [vmem:[%s6 + $0x1c] sm:$0xf]
      %v846 = vld [vmem:[%s6 + $0x20] sm:$0xf]
      %v847 = vld [vmem:[%s6 + $0x24] sm:$0xf]
      %v848 = vld [vmem:[%s6 + $0x28] sm:$0xf]
      %v849 = vld [vmem:[%s6 + $0x2c] sm:$0xf]
      %v850 = vld [vmem:[%s6 + $0x30] sm:$0xf]
      %v851 = vld [vmem:[%s6 + $0x34] sm:$0xf]
      %v852 = vld [vmem:[%s6 + $0x38] sm:$0xf]
      %v853 = vld [vmem:[%s6 + $0x3c] sm:$0xf]
      %v854 = vld [vmem:[#allocation2 + $0x4] sm:$0x1]
      %v855 = vld [vmem:[#allocation2 + $0xc] sm:$0x1]
      %v856 = vld [vmem:[#allocation2 + $0x14] sm:$0x1]
      %v857 = vld [vmem:[#allocation2 + $0x1c] sm:$0x1]
      %v858 = vld [vmem:[#allocation2 + $0x24] sm:$0x1]
      %v859 = vld [vmem:[#allocation2 + $0x2c] sm:$0x1]
      %v860 = vld [vmem:[#allocation2 + $0x34] sm:$0x1]
      %v861 = vld [vmem:[#allocation2 + $0x3c] sm:$0x1]
      %vm862 = vsmask.f32 3328
      %vm863 = vsmask.f32 7440
      %vm864 = vmor %vm862, %vm863
      %v866 = vshrl.u32 %v830, 16
      %v868 = vrot.slane %v866, 4
      %v869 = vshll.u32 %v830, 16
      %v871 = vrot.slane %v869, 5
      %v872 = vor.u32 %v868, %v871
      %v873 = vrot.slane %v872, 4
      %v875 = vshll.u32 %v854, 16
      %v877 = vrot.slane %v875, 5
      %v878 = vsel %vm864, %v873, %v877
      %v880 = vshrl.u32 %v831, 16
      %v882 = vrot.slane %v880, 4
      %v883 = vshll.u32 %v831, 16
      %v885 = vrot.slane %v883, 5
      %v886 = vor.u32 %v882, %v885
      %v887 = vrot.slane %v886, 4
      %v889 = vshll.u32 %v855, 16
      %v891 = vrot.slane %v889, 5
      %v892 = vsel %vm864, %v887, %v891
      %v894 = vshrl.u32 %v832, 16
      %v896 = vrot.slane %v894, 4
      %v897 = vshll.u32 %v832, 16
      %v899 = vrot.slane %v897, 5
      %v900 = vor.u32 %v896, %v899
      %v901 = vrot.slane %v900, 4
      %v903 = vshll.u32 %v856, 16
      %v905 = vrot.slane %v903, 5
      %v906 = vsel %vm864, %v901, %v905
      %v908 = vshrl.u32 %v833, 16
      %v910 = vrot.slane %v908, 4
      %v911 = vshll.u32 %v833, 16
      %v913 = vrot.slane %v911, 5
      %v914 = vor.u32 %v910, %v913
      %v915 = vrot.slane %v914, 4
      %v917 = vshll.u32 %v857, 16
      %v919 = vrot.slane %v917, 5
      %v920 = vsel %vm864, %v915, %v919
      %v922 = vshrl.u32 %v834, 16
      %v924 = vrot.slane %v922, 4
      %v925 = vshll.u32 %v834, 16
      %v927 = vrot.slane %v925, 5
      %v928 = vor.u32 %v924, %v927
      %v929 = vrot.slane %v928, 4
      %v931 = vshll.u32 %v858, 16
      %v933 = vrot.slane %v931, 5
      %v934 = vsel %vm864, %v929, %v933
      %v936 = vshrl.u32 %v835, 16
      %v938 = vrot.slane %v936, 4
      %v939 = vshll.u32 %v835, 16
      %v941 = vrot.slane %v939, 5
      %v942 = vor.u32 %v938, %v941
      %v943 = vrot.slane %v942, 4
      %v945 = vshll.u32 %v859, 16
      %v947 = vrot.slane %v945, 5
      %v948 = vsel %vm864, %v943, %v947
      %v950 = vshrl.u32 %v836, 16
      %v952 = vrot.slane %v950, 4
      %v953 = vshll.u32 %v836, 16
      %v955 = vrot.slane %v953, 5
      %v956 = vor.u32 %v952, %v955
      %v957 = vrot.slane %v956, 4
      %v959 = vshll.u32 %v860, 16
      %v961 = vrot.slane %v959, 5
      %v962 = vsel %vm864, %v957, %v961
      %v964 = vshrl.u32 %v837, 16
      %v966 = vrot.slane %v964, 4
      %v967 = vshll.u32 %v837, 16
      %v969 = vrot.slane %v967, 5
      %v970 = vor.u32 %v966, %v969
      %v971 = vrot.slane %v970, 4
      %v973 = vshll.u32 %v861, 16
      %v975 = vrot.slane %v973, 5
      %v976 = vsel %vm864, %v971, %v975
      %s977 = scalar_lea.vmem %s6, 64
      %v978 = vld [vmem:[%s977] sm:$0xf]
      %v979 = vld [vmem:[%s977 + $0x4] sm:$0xf]
      %v980 = vld [vmem:[%s977 + $0x8] sm:$0xf]
      %v981 = vld [vmem:[%s977 + $0xc] sm:$0xf]
      %v982 = vld [vmem:[%s977 + $0x10] sm:$0xf]
      %v983 = vld [vmem:[%s977 + $0x14] sm:$0xf]
      %v984 = vld [vmem:[%s977 + $0x18] sm:$0xf]
      %v985 = vld [vmem:[%s977 + $0x1c] sm:$0xf]
      %v986 = vld [vmem:[%s977 + $0x20] sm:$0xf]
      %v987 = vld [vmem:[%s977 + $0x24] sm:$0xf]
      %v988 = vld [vmem:[%s977 + $0x28] sm:$0xf]
      %v989 = vld [vmem:[%s977 + $0x2c] sm:$0xf]
      %v990 = vld [vmem:[%s977 + $0x30] sm:$0xf]
      %v991 = vld [vmem:[%s977 + $0x34] sm:$0xf]
      %v992 = vld [vmem:[%s977 + $0x38] sm:$0xf]
      %v993 = vld [vmem:[%s977 + $0x3c] sm:$0xf]
      %v994 = vunpack.c.l.b16 %v878
      %v995 = vunpack.c.l.b16 %v892
      %v996 = vunpack.c.l.b16 %v906
      %v997 = vunpack.c.l.b16 %v920
      %v998 = vunpack.c.l.b16 %v934
      %v999 = vunpack.c.l.b16 %v948
      %v1000 = vunpack.c.l.b16 %v962
      %v1001 = vunpack.c.l.b16 %v976
      %v1002 = vpack.c.b16 %v995, %v994
      %v1003 = vpack.c.b16 %v997, %v996
      %v1004 = vpack.c.b16 %v999, %v998
      %v1005 = vpack.c.b16 %v1001, %v1000
      %v1026 = vunpack.c.l.b16 %v978
      %v1027 = vunpack.c.l.b16 %v979
      %v1028 = vunpack.c.l.b16 %v980
      %v1029 = vunpack.c.l.b16 %v981
      %v1030 = vunpack.c.l.b16 %v982
      %v1031 = vunpack.c.l.b16 %v983
      %v1032 = vunpack.c.l.b16 %v984
      %v1033 = vunpack.c.l.b16 %v985
      %v1034 = vunpack.c.l.b16 %v986
      %v1035 = vunpack.c.l.b16 %v987
      %v1036 = vunpack.c.l.b16 %v988
      %v1037 = vunpack.c.l.b16 %v989
      %v1038 = vunpack.c.l.b16 %v990
      %v1039 = vunpack.c.l.b16 %v991
      %v1040 = vunpack.c.l.b16 %v992
      %v1041 = vunpack.c.l.b16 %v993
      %v1042 = vpack.c.b16 %v1027, %v1026
      %v1043 = vpack.c.b16 %v1029, %v1028
      %v1044 = vpack.c.b16 %v1031, %v1030
      %v1045 = vpack.c.b16 %v1033, %v1032
      %v1046 = vpack.c.b16 %v1035, %v1034
      %v1047 = vpack.c.b16 %v1037, %v1036
      %v1048 = vpack.c.b16 %v1039, %v1038
      %v1049 = vpack.c.b16 %v1041, %v1040
      %1058 = vmatpush.bf16.msra.mxu0 %v1049
      %1059 = vmatpush.bf16.msra.mxu0 %v1048
      %1060 = vmatpush.bf16.msra.mxu0 %v1047
      %1061 = vmatpush.bf16.msra.mxu0 %v1046
      %1062 = vmatpush.bf16.msra.mxu0 %v1045
      %1063 = vmatpush.bf16.msra.mxu0 %v1044
      %1064 = vmatpush.bf16.msra.mxu0 %v1043
      %1065 = vmatpush.bf16.msra.mxu0 %v1042
      %1066 = vmatmul.bf16.gmra.mxu0 %v1002
      %v1067 = vpop.f32.mrf.mxu0
      %v1068 = vadd.f32 0.0, %v1067
      %v1069 = vpop.f32.mrf.mxu0
      %v1070 = vadd.f32 0.0, %v1069
      %1071 = vmatmul.bf16.gmra.mxu0 %v1003
      %v1072 = vpop.f32.mrf.mxu0
      %v1073 = vadd.f32 0.0, %v1072
      %v1074 = vpop.f32.mrf.mxu0
      %v1075 = vadd.f32 0.0, %v1074
      %1076 = vmatmul.bf16.gmra.mxu0 %v1004
      %v1077 = vpop.f32.mrf.mxu0
      %v1078 = vadd.f32 0.0, %v1077
      %v1079 = vpop.f32.mrf.mxu0
      %v1080 = vadd.f32 0.0, %v1079
      %1081 = vmatmul.bf16.gmra.mxu0 %v1005
      %v1082 = vpop.f32.mrf.mxu0
      %v1083 = vadd.f32 0.0, %v1082
      %v1084 = vpop.f32.mrf.mxu0
      %v1085 = vadd.f32 0.0, %v1084
      %1086 = vdwg.mxu0
      %v1095 = vunpack.c.l.b16 %v830
      %v1096 = vunpack.c.l.b16 %v831
      %v1097 = vunpack.c.l.b16 %v832
      %v1098 = vunpack.c.l.b16 %v833
      %v1099 = vunpack.c.l.b16 %v834
      %v1100 = vunpack.c.l.b16 %v835
      %v1101 = vunpack.c.l.b16 %v836
      %v1102 = vunpack.c.l.b16 %v837
      %v1103 = vpack.c.b16 %v1096, %v1095
      %v1104 = vpack.c.b16 %v1098, %v1097
      %v1105 = vpack.c.b16 %v1100, %v1099
      %v1106 = vpack.c.b16 %v1102, %v1101
      %v1127 = vunpack.c.l.b16 %v838
      %v1128 = vunpack.c.l.b16 %v839
      %v1129 = vunpack.c.l.b16 %v840
      %v1130 = vunpack.c.l.b16 %v841
      %v1131 = vunpack.c.l.b16 %v842
      %v1132 = vunpack.c.l.b16 %v843
      %v1133 = vunpack.c.l.b16 %v844
      %v1134 = vunpack.c.l.b16 %v845
      %v1135 = vunpack.c.l.b16 %v846
      %v1136 = vunpack.c.l.b16 %v847
      %v1137 = vunpack.c.l.b16 %v848
      %v1138 = vunpack.c.l.b16 %v849
      %v1139 = vunpack.c.l.b16 %v850
      %v1140 = vunpack.c.l.b16 %v851
      %v1141 = vunpack.c.l.b16 %v852
      %v1142 = vunpack.c.l.b16 %v853
      %v1143 = vpack.c.b16 %v1128, %v1127
      %v1144 = vpack.c.b16 %v1130, %v1129
      %v1145 = vpack.c.b16 %v1132, %v1131
      %v1146 = vpack.c.b16 %v1134, %v1133
      %v1147 = vpack.c.b16 %v1136, %v1135
      %v1148 = vpack.c.b16 %v1138, %v1137
      %v1149 = vpack.c.b16 %v1140, %v1139
      %v1150 = vpack.c.b16 %v1142, %v1141
      %1159 = vmatpush.bf16.msra.mxu0 %v1150
      %1160 = vmatpush.bf16.msra.mxu0 %v1149
      %1161 = vmatpush.bf16.msra.mxu0 %v1148
      %1162 = vmatpush.bf16.msra.mxu0 %v1147
      %1163 = vmatpush.bf16.msra.mxu0 %v1146
      %1164 = vmatpush.bf16.msra.mxu0 %v1145
      %1165 = vmatpush.bf16.msra.mxu0 %v1144
      %1166 = vmatpush.bf16.msra.mxu0 %v1143
      %1167 = vmatmul.bf16.gmra.mxu0 %v1103
      %v1168 = vpop.f32.mrf.mxu0
      %v1169 = vadd.f32 %v1068, %v1168
      %v1170 = vpop.f32.mrf.mxu0
      %v1171 = vadd.f32 %v1070, %v1170
      %1172 = vmatmul.bf16.gmra.mxu0 %v1104
      %v1173 = vpop.f32.mrf.mxu0
      %v1174 = vadd.f32 %v1073, %v1173
      %v1175 = vpop.f32.mrf.mxu0
      %v1176 = vadd.f32 %v1075, %v1175
      %1177 = vmatmul.bf16.gmra.mxu0 %v1105
      %v1178 = vpop.f32.mrf.mxu0
      %v1179 = vadd.f32 %v1078, %v1178
      %v1180 = vpop.f32.mrf.mxu0
      %v1181 = vadd.f32 %v1080, %v1180
      %1182 = vmatmul.bf16.gmra.mxu0 %v1106
      %v1183 = vpop.f32.mrf.mxu0
      %v1184 = vadd.f32 %v1083, %v1183
      %v1185 = vpop.f32.mrf.mxu0
      %v1186 = vadd.f32 %v1085, %v1185
      %1187 = vdwg.mxu0
      %v1188 = vld [vmem:[#allocation2] sm:$0xe]
      %v1189 = vld [vmem:[#allocation2 + $0x8] sm:$0xe]
      %v1190 = vld [vmem:[#allocation2 + $0x10] sm:$0xe]
      %v1191 = vld [vmem:[#allocation2 + $0x18] sm:$0xe]
      %v1192 = vld [vmem:[#allocation2 + $0x20] sm:$0xe]
      %v1193 = vld [vmem:[#allocation2 + $0x28] sm:$0xe]
      %v1194 = vld [vmem:[#allocation2 + $0x30] sm:$0xe]
      %v1195 = vld [vmem:[#allocation2 + $0x38] sm:$0xe]
      %vm1212 = vcmask 1042432
      %vm1213 = vcmask 1046532
      %vm1214 = vmor %vm1212, %vm1213
      %v1215 = vrot.slane %v1188, 5
      %v1216 = vrot.slane %v1215, 4
      %v1217 = vrot.slane %v854, 5
      %v1218 = vsel %vm1214, %v1216, %v1217
      %v1219 = vrot.slane %v1189, 5
      %v1220 = vrot.slane %v1219, 4
      %v1221 = vrot.slane %v855, 5
      %v1222 = vsel %vm1214, %v1220, %v1221
      %v1223 = vrot.slane %v1190, 5
      %v1224 = vrot.slane %v1223, 4
      %v1225 = vrot.slane %v856, 5
      %v1226 = vsel %vm1214, %v1224, %v1225
      %v1227 = vrot.slane %v1191, 5
      %v1228 = vrot.slane %v1227, 4
      %v1229 = vrot.slane %v857, 5
      %v1230 = vsel %vm1214, %v1228, %v1229
      %v1231 = vrot.slane %v1192, 5
      %v1232 = vrot.slane %v1231, 4
      %v1233 = vrot.slane %v858, 5
      %v1234 = vsel %vm1214, %v1232, %v1233
      %v1235 = vrot.slane %v1193, 5
      %v1236 = vrot.slane %v1235, 4
      %v1237 = vrot.slane %v859, 5
      %v1238 = vsel %vm1214, %v1236, %v1237
      %v1239 = vrot.slane %v1194, 5
      %v1240 = vrot.slane %v1239, 4
      %v1241 = vrot.slane %v860, 5
      %v1242 = vsel %vm1214, %v1240, %v1241
      %v1243 = vrot.slane %v1195, 5
      %v1244 = vrot.slane %v1243, 4
      %v1245 = vrot.slane %v861, 5
      %v1246 = vsel %vm1214, %v1244, %v1245
      %s1247 = scalar_lea.vmem %s6, 128
      %v1248 = vld [vmem:[%s1247] sm:$0xf]
      %v1249 = vld [vmem:[%s1247 + $0x4] sm:$0xf]
      %v1250 = vld [vmem:[%s1247 + $0x8] sm:$0xf]
      %v1251 = vld [vmem:[%s1247 + $0xc] sm:$0xf]
      %v1252 = vld [vmem:[%s1247 + $0x10] sm:$0xf]
      %v1253 = vld [vmem:[%s1247 + $0x14] sm:$0xf]
      %v1254 = vld [vmem:[%s1247 + $0x18] sm:$0xf]
      %v1255 = vld [vmem:[%s1247 + $0x1c] sm:$0xf]
      %v1256 = vld [vmem:[%s1247 + $0x20] sm:$0xf]
      %v1257 = vld [vmem:[%s1247 + $0x24] sm:$0xf]
      %v1258 = vld [vmem:[%s1247 + $0x28] sm:$0xf]
      %v1259 = vld [vmem:[%s1247 + $0x2c] sm:$0xf]
      %v1260 = vld [vmem:[%s1247 + $0x30] sm:$0xf]
      %v1261 = vld [vmem:[%s1247 + $0x34] sm:$0xf]
      %v1262 = vld [vmem:[%s1247 + $0x38] sm:$0xf]
      %v1263 = vld [vmem:[%s1247 + $0x3c] sm:$0xf]
      %v1264 = vunpack.c.l.b16 %v1218
      %v1265 = vunpack.c.l.b16 %v1222
      %v1266 = vunpack.c.l.b16 %v1226
      %v1267 = vunpack.c.l.b16 %v1230
      %v1268 = vunpack.c.l.b16 %v1234
      %v1269 = vunpack.c.l.b16 %v1238
      %v1270 = vunpack.c.l.b16 %v1242
      %v1271 = vunpack.c.l.b16 %v1246
      %v1272 = vpack.c.b16 %v1265, %v1264
      %v1273 = vpack.c.b16 %v1267, %v1266
      %v1274 = vpack.c.b16 %v1269, %v1268
      %v1275 = vpack.c.b16 %v1271, %v1270
      %v1296 = vunpack.c.l.b16 %v1248
      %v1297 = vunpack.c.l.b16 %v1249
      %v1298 = vunpack.c.l.b16 %v1250
      %v1299 = vunpack.c.l.b16 %v1251
      %v1300 = vunpack.c.l.b16 %v1252
      %v1301 = vunpack.c.l.b16 %v1253
      %v1302 = vunpack.c.l.b16 %v1254
      %v1303 = vunpack.c.l.b16 %v1255
      %v1304 = vunpack.c.l.b16 %v1256
      %v1305 = vunpack.c.l.b16 %v1257
      %v1306 = vunpack.c.l.b16 %v1258
      %v1307 = vunpack.c.l.b16 %v1259
      %v1308 = vunpack.c.l.b16 %v1260
      %v1309 = vunpack.c.l.b16 %v1261
      %v1310 = vunpack.c.l.b16 %v1262
      %v1311 = vunpack.c.l.b16 %v1263
      %v1312 = vpack.c.b16 %v1297, %v1296
      %v1313 = vpack.c.b16 %v1299, %v1298
      %v1314 = vpack.c.b16 %v1301, %v1300
      %v1315 = vpack.c.b16 %v1303, %v1302
      %v1316 = vpack.c.b16 %v1305, %v1304
      %v1317 = vpack.c.b16 %v1307, %v1306
      %v1318 = vpack.c.b16 %v1309, %v1308
      %v1319 = vpack.c.b16 %v1311, %v1310
      %1328 = vmatpush.bf16.msra.mxu0 %v1319
      %1329 = vmatpush.bf16.msra.mxu0 %v1318
      %1330 = vmatpush.bf16.msra.mxu0 %v1317
      %1331 = vmatpush.bf16.msra.mxu0 %v1316
      %1332 = vmatpush.bf16.msra.mxu0 %v1315
      %1333 = vmatpush.bf16.msra.mxu0 %v1314
      %1334 = vmatpush.bf16.msra.mxu0 %v1313
      %1335 = vmatpush.bf16.msra.mxu0 %v1312
      %1336 = vmatmul.bf16.gmra.mxu0 %v1272
      %v1337 = vpop.f32.mrf.mxu0
      %v1338 = vadd.f32 0.0, %v1337
      %v1339 = vpop.f32.mrf.mxu0
      %v1340 = vadd.f32 0.0, %v1339
      %1341 = vmatmul.bf16.gmra.mxu0 %v1273
      %v1342 = vpop.f32.mrf.mxu0
      %v1343 = vadd.f32 0.0, %v1342
      %v1344 = vpop.f32.mrf.mxu0
      %v1345 = vadd.f32 0.0, %v1344
      %1346 = vmatmul.bf16.gmra.mxu0 %v1274
      %v1347 = vpop.f32.mrf.mxu0
      %v1348 = vadd.f32 0.0, %v1347
      %v1349 = vpop.f32.mrf.mxu0
      %v1350 = vadd.f32 0.0, %v1349
      %1351 = vmatmul.bf16.gmra.mxu0 %v1275
      %v1352 = vpop.f32.mrf.mxu0
      %v1353 = vadd.f32 0.0, %v1352
      %v1354 = vpop.f32.mrf.mxu0
      %v1355 = vadd.f32 0.0, %v1354
      %1356 = vdwg.mxu0
      %v1357 = vadd.f32 %v1169, %v1338
      %v1358 = vadd.f32 %v1171, %v1340
      %v1359 = vadd.f32 %v1174, %v1343
      %v1360 = vadd.f32 %v1176, %v1345
      %v1361 = vadd.f32 %v1179, %v1348
      %v1362 = vadd.f32 %v1181, %v1350
      %v1363 = vadd.f32 %v1184, %v1353
      %v1364 = vadd.f32 %v1186, %v1355
      %v1365 = vld [vmem:[%s688] sm:$0xf]
      %v1366 = vld [vmem:[%s688 + $0x8] sm:$0xf]
      %v1367 = vld [vmem:[%s688 + $0x10] sm:$0xf]
      %v1368 = vld [vmem:[%s688 + $0x18] sm:$0xf]
      %v1369 = vld [vmem:[%s688 + $0x20] sm:$0xf]
      %v1370 = vld [vmem:[%s688 + $0x28] sm:$0xf]
      %v1371 = vld [vmem:[%s688 + $0x30] sm:$0xf]
      %v1372 = vld [vmem:[%s688 + $0x38] sm:$0xf]
      %s1373 = scalar_lea.vmem %s6, 192
      %v1374 = vld [vmem:[%s1373] sm:$0xf]
      %v1375 = vld [vmem:[%s1373 + $0x4] sm:$0xf]
      %v1376 = vld [vmem:[%s1373 + $0x8] sm:$0xf]
      %v1377 = vld [vmem:[%s1373 + $0xc] sm:$0xf]
      %v1378 = vld [vmem:[%s1373 + $0x10] sm:$0xf]
      %v1379 = vld [vmem:[%s1373 + $0x14] sm:$0xf]
      %v1380 = vld [vmem:[%s1373 + $0x18] sm:$0xf]
      %v1381 = vld [vmem:[%s1373 + $0x1c] sm:$0xf]
      %v1382 = vld [vmem:[%s1373 + $0x20] sm:$0xf]
      %v1383 = vld [vmem:[%s1373 + $0x24] sm:$0xf]
      %v1384 = vld [vmem:[%s1373 + $0x28] sm:$0xf]
      %v1385 = vld [vmem:[%s1373 + $0x2c] sm:$0xf]
      %v1386 = vld [vmem:[%s1373 + $0x30] sm:$0xf]
      %v1387 = vld [vmem:[%s1373 + $0x34] sm:$0xf]
      %v1388 = vld [vmem:[%s1373 + $0x38] sm:$0xf]
      %v1389 = vld [vmem:[%s1373 + $0x3c] sm:$0xf]
      %v1398 = vunpack.c.l.b16 %v1365
      %v1399 = vunpack.c.l.b16 %v1366
      %v1400 = vunpack.c.l.b16 %v1367
      %v1401 = vunpack.c.l.b16 %v1368
      %v1402 = vunpack.c.l.b16 %v1369
      %v1403 = vunpack.c.l.b16 %v1370
      %v1404 = vunpack.c.l.b16 %v1371
      %v1405 = vunpack.c.l.b16 %v1372
      %v1406 = vpack.c.b16 %v1399, %v1398
      %v1407 = vpack.c.b16 %v1401, %v1400
      %v1408 = vpack.c.b16 %v1403, %v1402
      %v1409 = vpack.c.b16 %v1405, %v1404
      %v1430 = vunpack.c.l.b16 %v1374
      %v1431 = vunpack.c.l.b16 %v1375
      %v1432 = vunpack.c.l.b16 %v1376
      %v1433 = vunpack.c.l.b16 %v1377
      %v1434 = vunpack.c.l.b16 %v1378
      %v1435 = vunpack.c.l.b16 %v1379
      %v1436 = vunpack.c.l.b16 %v1380
      %v1437 = vunpack.c.l.b16 %v1381
      %v1438 = vunpack.c.l.b16 %v1382
      %v1439 = vunpack.c.l.b16 %v1383
      %v1440 = vunpack.c.l.b16 %v1384
      %v1441 = vunpack.c.l.b16 %v1385
      %v1442 = vunpack.c.l.b16 %v1386
      %v1443 = vunpack.c.l.b16 %v1387
      %v1444 = vunpack.c.l.b16 %v1388
      %v1445 = vunpack.c.l.b16 %v1389
      %v1446 = vpack.c.b16 %v1431, %v1430
      %v1447 = vpack.c.b16 %v1433, %v1432
      %v1448 = vpack.c.b16 %v1435, %v1434
      %v1449 = vpack.c.b16 %v1437, %v1436
      %v1450 = vpack.c.b16 %v1439, %v1438
      %v1451 = vpack.c.b16 %v1441, %v1440
      %v1452 = vpack.c.b16 %v1443, %v1442
      %v1453 = vpack.c.b16 %v1445, %v1444
      %1462 = vmatpush.bf16.msra.mxu0 %v1453
      %1463 = vmatpush.bf16.msra.mxu0 %v1452
      %1464 = vmatpush.bf16.msra.mxu0 %v1451
      %1465 = vmatpush.bf16.msra.mxu0 %v1450
      %1466 = vmatpush.bf16.msra.mxu0 %v1449
      %1467 = vmatpush.bf16.msra.mxu0 %v1448
      %1468 = vmatpush.bf16.msra.mxu0 %v1447
      %1469 = vmatpush.bf16.msra.mxu0 %v1446
      %1470 = vmatmul.bf16.gmra.mxu0 %v1406
      %v1471 = vpop.f32.mrf.mxu0
      %v1472 = vadd.f32 0.0, %v1471
      %v1473 = vpop.f32.mrf.mxu0
      %v1474 = vadd.f32 0.0, %v1473
      %1475 = vmatmul.bf16.gmra.mxu0 %v1407
      %v1476 = vpop.f32.mrf.mxu0
      %v1477 = vadd.f32 0.0, %v1476
      %v1478 = vpop.f32.mrf.mxu0
      %v1479 = vadd.f32 0.0, %v1478
      %1480 = vmatmul.bf16.gmra.mxu0 %v1408
      %v1481 = vpop.f32.mrf.mxu0
      %v1482 = vadd.f32 0.0, %v1481
      %v1483 = vpop.f32.mrf.mxu0
      %v1484 = vadd.f32 0.0, %v1483
      %1485 = vmatmul.bf16.gmra.mxu0 %v1409
      %v1486 = vpop.f32.mrf.mxu0
      %v1487 = vadd.f32 0.0, %v1486
      %v1488 = vpop.f32.mrf.mxu0
      %v1489 = vadd.f32 0.0, %v1488
      %1490 = vdwg.mxu0
      %v1491 = vadd.f32 %v1357, %v1472
      %v1492 = vadd.f32 %v1358, %v1474
      %v1493 = vadd.f32 %v1359, %v1477
      %v1494 = vadd.f32 %v1360, %v1479
      %v1495 = vadd.f32 %v1361, %v1482
      %v1496 = vadd.f32 %v1362, %v1484
      %v1497 = vadd.f32 %v1363, %v1487
      %v1498 = vadd.f32 %v1364, %v1489
      %v1499 = vld [vmem:[%s688] sm:$0xf]
      %v1500 = vld [vmem:[%s688 + $0x4] sm:$0x1]
      %v1501 = vld [vmem:[%s688 + $0x8] sm:$0xf]
      %v1502 = vld [vmem:[%s688 + $0xc] sm:$0x1]
      %v1503 = vld [vmem:[%s688 + $0x10] sm:$0xf]
      %v1504 = vld [vmem:[%s688 + $0x14] sm:$0x1]
      %v1505 = vld [vmem:[%s688 + $0x18] sm:$0xf]
      %v1506 = vld [vmem:[%s688 + $0x1c] sm:$0x1]
      %v1507 = vld [vmem:[%s688 + $0x20] sm:$0xf]
      %v1508 = vld [vmem:[%s688 + $0x24] sm:$0x1]
      %v1509 = vld [vmem:[%s688 + $0x28] sm:$0xf]
      %v1510 = vld [vmem:[%s688 + $0x2c] sm:$0x1]
      %v1511 = vld [vmem:[%s688 + $0x30] sm:$0xf]
      %v1512 = vld [vmem:[%s688 + $0x34] sm:$0x1]
      %v1513 = vld [vmem:[%s688 + $0x38] sm:$0xf]
      %v1514 = vld [vmem:[%s688 + $0x3c] sm:$0x1]
      %v1516 = vshrl.u32 %v1499, 16
      %v1518 = vrot.slane %v1516, 4
      %v1519 = vshll.u32 %v1499, 16
      %v1521 = vrot.slane %v1519, 5
      %v1522 = vor.u32 %v1518, %v1521
      %v1523 = vrot.slane %v1522, 4
      %v1525 = vshll.u32 %v1500, 16
      %v1527 = vrot.slane %v1525, 5
      %v1528 = vsel %vm864, %v1523, %v1527
      %v1530 = vshrl.u32 %v1501, 16
      %v1532 = vrot.slane %v1530, 4
      %v1533 = vshll.u32 %v1501, 16
      %v1535 = vrot.slane %v1533, 5
      %v1536 = vor.u32 %v1532, %v1535
      %v1537 = vrot.slane %v1536, 4
      %v1539 = vshll.u32 %v1502, 16
      %v1541 = vrot.slane %v1539, 5
      %v1542 = vsel %vm864, %v1537, %v1541
      %v1544 = vshrl.u32 %v1503, 16
      %v1546 = vrot.slane %v1544, 4
      %v1547 = vshll.u32 %v1503, 16
      %v1549 = vrot.slane %v1547, 5
      %v1550 = vor.u32 %v1546, %v1549
      %v1551 = vrot.slane %v1550, 4
      %v1553 = vshll.u32 %v1504, 16
      %v1555 = vrot.slane %v1553, 5
      %v1556 = vsel %vm864, %v1551, %v1555
      %v1558 = vshrl.u32 %v1505, 16
      %v1560 = vrot.slane %v1558, 4
      %v1561 = vshll.u32 %v1505, 16
      %v1563 = vrot.slane %v1561, 5
      %v1564 = vor.u32 %v1560, %v1563
      %v1565 = vrot.slane %v1564, 4
      %v1567 = vshll.u32 %v1506, 16
      %v1569 = vrot.slane %v1567, 5
      %v1570 = vsel %vm864, %v1565, %v1569
      %v1572 = vshrl.u32 %v1507, 16
      %v1574 = vrot.slane %v1572, 4
      %v1575 = vshll.u32 %v1507, 16
      %v1577 = vrot.slane %v1575, 5
      %v1578 = vor.u32 %v1574, %v1577
      %v1579 = vrot.slane %v1578, 4
      %v1581 = vshll.u32 %v1508, 16
      %v1583 = vrot.slane %v1581, 5
      %v1584 = vsel %vm864, %v1579, %v1583
      %v1586 = vshrl.u32 %v1509, 16
      %v1588 = vrot.slane %v1586, 4
      %v1589 = vshll.u32 %v1509, 16
      %v1591 = vrot.slane %v1589, 5
      %v1592 = vor.u32 %v1588, %v1591
      %v1593 = vrot.slane %v1592, 4
      %v1595 = vshll.u32 %v1510, 16
      %v1597 = vrot.slane %v1595, 5
      %v1598 = vsel %vm864, %v1593, %v1597
      %v1600 = vshrl.u32 %v1511, 16
      %v1602 = vrot.slane %v1600, 4
      %v1603 = vshll.u32 %v1511, 16
      %v1605 = vrot.slane %v1603, 5
      %v1606 = vor.u32 %v1602, %v1605
      %v1607 = vrot.slane %v1606, 4
      %v1609 = vshll.u32 %v1512, 16
      %v1611 = vrot.slane %v1609, 5
      %v1612 = vsel %vm864, %v1607, %v1611
      %v1614 = vshrl.u32 %v1513, 16
      %v1616 = vrot.slane %v1614, 4
      %v1617 = vshll.u32 %v1513, 16
      %v1619 = vrot.slane %v1617, 5
      %v1620 = vor.u32 %v1616, %v1619
      %v1621 = vrot.slane %v1620, 4
      %v1623 = vshll.u32 %v1514, 16
      %v1625 = vrot.slane %v1623, 5
      %v1626 = vsel %vm864, %v1621, %v1625
      %s1627 = scalar_lea.vmem %s6, 256
      %v1628 = vld [vmem:[%s1627] sm:$0xf]
      %v1629 = vld [vmem:[%s1627 + $0x4] sm:$0xf]
      %v1630 = vld [vmem:[%s1627 + $0x8] sm:$0xf]
      %v1631 = vld [vmem:[%s1627 + $0xc] sm:$0xf]
      %v1632 = vld [vmem:[%s1627 + $0x10] sm:$0xf]
      %v1633 = vld [vmem:[%s1627 + $0x14] sm:$0xf]
      %v1634 = vld [vmem:[%s1627 + $0x18] sm:$0xf]
      %v1635 = vld [vmem:[%s1627 + $0x1c] sm:$0xf]
      %v1636 = vld [vmem:[%s1627 + $0x20] sm:$0xf]
      %v1637 = vld [vmem:[%s1627 + $0x24] sm:$0xf]
      %v1638 = vld [vmem:[%s1627 + $0x28] sm:$0xf]
      %v1639 = vld [vmem:[%s1627 + $0x2c] sm:$0xf]
      %v1640 = vld [vmem:[%s1627 + $0x30] sm:$0xf]
      %v1641 = vld [vmem:[%s1627 + $0x34] sm:$0xf]
      %v1642 = vld [vmem:[%s1627 + $0x38] sm:$0xf]
      %v1643 = vld [vmem:[%s1627 + $0x3c] sm:$0xf]
      %v1644 = vunpack.c.l.b16 %v1528
      %v1645 = vunpack.c.l.b16 %v1542
      %v1646 = vunpack.c.l.b16 %v1556
      %v1647 = vunpack.c.l.b16 %v1570
      %v1648 = vunpack.c.l.b16 %v1584
      %v1649 = vunpack.c.l.b16 %v1598
      %v1650 = vunpack.c.l.b16 %v1612
      %v1651 = vunpack.c.l.b16 %v1626
      %v1652 = vpack.c.b16 %v1645, %v1644
      %v1653 = vpack.c.b16 %v1647, %v1646
      %v1654 = vpack.c.b16 %v1649, %v1648
      %v1655 = vpack.c.b16 %v1651, %v1650
      %v1676 = vunpack.c.l.b16 %v1628
      %v1677 = vunpack.c.l.b16 %v1629
      %v1678 = vunpack.c.l.b16 %v1630
      %v1679 = vunpack.c.l.b16 %v1631
      %v1680 = vunpack.c.l.b16 %v1632
      %v1681 = vunpack.c.l.b16 %v1633
      %v1682 = vunpack.c.l.b16 %v1634
      %v1683 = vunpack.c.l.b16 %v1635
      %v1684 = vunpack.c.l.b16 %v1636
      %v1685 = vunpack.c.l.b16 %v1637
      %v1686 = vunpack.c.l.b16 %v1638
      %v1687 = vunpack.c.l.b16 %v1639
      %v1688 = vunpack.c.l.b16 %v1640
      %v1689 = vunpack.c.l.b16 %v1641
      %v1690 = vunpack.c.l.b16 %v1642
      %v1691 = vunpack.c.l.b16 %v1643
      %v1692 = vpack.c.b16 %v1677, %v1676
      %v1693 = vpack.c.b16 %v1679, %v1678
      %v1694 = vpack.c.b16 %v1681, %v1680
      %v1695 = vpack.c.b16 %v1683, %v1682
      %v1696 = vpack.c.b16 %v1685, %v1684
      %v1697 = vpack.c.b16 %v1687, %v1686
      %v1698 = vpack.c.b16 %v1689, %v1688
      %v1699 = vpack.c.b16 %v1691, %v1690
      %1708 = vmatpush.bf16.msra.mxu0 %v1699
      %1709 = vmatpush.bf16.msra.mxu0 %v1698
      %1710 = vmatpush.bf16.msra.mxu0 %v1697
      %1711 = vmatpush.bf16.msra.mxu0 %v1696
      %1712 = vmatpush.bf16.msra.mxu0 %v1695
      %1713 = vmatpush.bf16.msra.mxu0 %v1694
      %1714 = vmatpush.bf16.msra.mxu0 %v1693
      %1715 = vmatpush.bf16.msra.mxu0 %v1692
      %1716 = vmatmul.bf16.gmra.mxu0 %v1652
      %v1717 = vpop.f32.mrf.mxu0
      %v1718 = vadd.f32 0.0, %v1717
      %v1719 = vpop.f32.mrf.mxu0
      %v1720 = vadd.f32 0.0, %v1719
      %1721 = vmatmul.bf16.gmra.mxu0 %v1653
      %v1722 = vpop.f32.mrf.mxu0
      %v1723 = vadd.f32 0.0, %v1722
      %v1724 = vpop.f32.mrf.mxu0
      %v1725 = vadd.f32 0.0, %v1724
      %1726 = vmatmul.bf16.gmra.mxu0 %v1654
      %v1727 = vpop.f32.mrf.mxu0
      %v1728 = vadd.f32 0.0, %v1727
      %v1729 = vpop.f32.mrf.mxu0
      %v1730 = vadd.f32 0.0, %v1729
      %1731 = vmatmul.bf16.gmra.mxu0 %v1655
      %v1732 = vpop.f32.mrf.mxu0
      %v1733 = vadd.f32 0.0, %v1732
      %v1734 = vpop.f32.mrf.mxu0
      %v1735 = vadd.f32 0.0, %v1734
      %1736 = vdwg.mxu0
      %v1737 = vadd.f32 %v1491, %v1718
      %v1738 = vadd.f32 %v1492, %v1720
      %v1739 = vadd.f32 %v1493, %v1723
      %v1740 = vadd.f32 %v1494, %v1725
      %v1741 = vadd.f32 %v1495, %v1728
      %v1742 = vadd.f32 %v1496, %v1730
      %v1743 = vadd.f32 %v1497, %v1733
      %v1744 = vadd.f32 %v1498, %v1735
      %v1745 = vld [vmem:[%s688] sm:$0xe]
      %v1746 = vld [vmem:[%s688 + $0x8] sm:$0xe]
      %v1747 = vld [vmem:[%s688 + $0x10] sm:$0xe]
      %v1748 = vld [vmem:[%s688 + $0x18] sm:$0xe]
      %v1749 = vld [vmem:[%s688 + $0x20] sm:$0xe]
      %v1750 = vld [vmem:[%s688 + $0x28] sm:$0xe]
      %v1751 = vld [vmem:[%s688 + $0x30] sm:$0xe]
      %v1752 = vld [vmem:[%s688 + $0x38] sm:$0xe]
      %v1769 = vrot.slane %v1745, 5
      %v1770 = vrot.slane %v1769, 4
      %v1771 = vrot.slane %v1500, 5
      %v1772 = vsel %vm1214, %v1770, %v1771
      %v1773 = vrot.slane %v1746, 5
      %v1774 = vrot.slane %v1773, 4
      %v1775 = vrot.slane %v1502, 5
      %v1776 = vsel %vm1214, %v1774, %v1775
      %v1777 = vrot.slane %v1747, 5
      %v1778 = vrot.slane %v1777, 4
      %v1779 = vrot.slane %v1504, 5
      %v1780 = vsel %vm1214, %v1778, %v1779
      %v1781 = vrot.slane %v1748, 5
      %v1782 = vrot.slane %v1781, 4
      %v1783 = vrot.slane %v1506, 5
      %v1784 = vsel %vm1214, %v1782, %v1783
      %v1785 = vrot.slane %v1749, 5
      %v1786 = vrot.slane %v1785, 4
      %v1787 = vrot.slane %v1508, 5
      %v1788 = vsel %vm1214, %v1786, %v1787
      %v1789 = vrot.slane %v1750, 5
      %v1790 = vrot.slane %v1789, 4
      %v1791 = vrot.slane %v1510, 5
      %v1792 = vsel %vm1214, %v1790, %v1791
      %v1793 = vrot.slane %v1751, 5
      %v1794 = vrot.slane %v1793, 4
      %v1795 = vrot.slane %v1512, 5
      %v1796 = vsel %vm1214, %v1794, %v1795
      %v1797 = vrot.slane %v1752, 5
      %v1798 = vrot.slane %v1797, 4
      %v1799 = vrot.slane %v1514, 5
      %v1800 = vsel %vm1214, %v1798, %v1799
      %s1801 = scalar_lea.vmem %s6, 320
      %v1802 = vld [vmem:[%s1801] sm:$0xf]
      %v1803 = vld [vmem:[%s1801 + $0x4] sm:$0xf]
      %v1804 = vld [vmem:[%s1801 + $0x8] sm:$0xf]
      %v1805 = vld [vmem:[%s1801 + $0xc] sm:$0xf]
      %v1806 = vld [vmem:[%s1801 + $0x10] sm:$0xf]
      %v1807 = vld [vmem:[%s1801 + $0x14] sm:$0xf]
      %v1808 = vld [vmem:[%s1801 + $0x18] sm:$0xf]
      %v1809 = vld [vmem:[%s1801 + $0x1c] sm:$0xf]
      %v1810 = vld [vmem:[%s1801 + $0x20] sm:$0xf]
      %v1811 = vld [vmem:[%s1801 + $0x24] sm:$0xf]
      %v1812 = vld [vmem:[%s1801 + $0x28] sm:$0xf]
      %v1813 = vld [vmem:[%s1801 + $0x2c] sm:$0xf]
      %v1814 = vld [vmem:[%s1801 + $0x30] sm:$0xf]
      %v1815 = vld [vmem:[%s1801 + $0x34] sm:$0xf]
      %v1816 = vld [vmem:[%s1801 + $0x38] sm:$0xf]
      %v1817 = vld [vmem:[%s1801 + $0x3c] sm:$0xf]
      %v1818 = vunpack.c.l.b16 %v1772
      %v1819 = vunpack.c.l.b16 %v1776
      %v1820 = vunpack.c.l.b16 %v1780
      %v1821 = vunpack.c.l.b16 %v1784
      %v1822 = vunpack.c.l.b16 %v1788
      %v1823 = vunpack.c.l.b16 %v1792
      %v1824 = vunpack.c.l.b16 %v1796
      %v1825 = vunpack.c.l.b16 %v1800
      %v1826 = vpack.c.b16 %v1819, %v1818
      %v1827 = vpack.c.b16 %v1821, %v1820
      %v1828 = vpack.c.b16 %v1823, %v1822
      %v1829 = vpack.c.b16 %v1825, %v1824
      %v1850 = vunpack.c.l.b16 %v1802
      %v1851 = vunpack.c.l.b16 %v1803
      %v1852 = vunpack.c.l.b16 %v1804
      %v1853 = vunpack.c.l.b16 %v1805
      %v1854 = vunpack.c.l.b16 %v1806
      %v1855 = vunpack.c.l.b16 %v1807
      %v1856 = vunpack.c.l.b16 %v1808
      %v1857 = vunpack.c.l.b16 %v1809
      %v1858 = vunpack.c.l.b16 %v1810
      %v1859 = vunpack.c.l.b16 %v1811
      %v1860 = vunpack.c.l.b16 %v1812
      %v1861 = vunpack.c.l.b16 %v1813
      %v1862 = vunpack.c.l.b16 %v1814
      %v1863 = vunpack.c.l.b16 %v1815
      %v1864 = vunpack.c.l.b16 %v1816
      %v1865 = vunpack.c.l.b16 %v1817
      %v1866 = vpack.c.b16 %v1851, %v1850
      %v1867 = vpack.c.b16 %v1853, %v1852
      %v1868 = vpack.c.b16 %v1855, %v1854
      %v1869 = vpack.c.b16 %v1857, %v1856
      %v1870 = vpack.c.b16 %v1859, %v1858
      %v1871 = vpack.c.b16 %v1861, %v1860
      %v1872 = vpack.c.b16 %v1863, %v1862
      %v1873 = vpack.c.b16 %v1865, %v1864
      %1882 = vmatpush.bf16.msra.mxu0 %v1873
      %1883 = vmatpush.bf16.msra.mxu0 %v1872
      %1884 = vmatpush.bf16.msra.mxu0 %v1871
      %1885 = vmatpush.bf16.msra.mxu0 %v1870
      %1886 = vmatpush.bf16.msra.mxu0 %v1869
      %1887 = vmatpush.bf16.msra.mxu0 %v1868
      %1888 = vmatpush.bf16.msra.mxu0 %v1867
      %1889 = vmatpush.bf16.msra.mxu0 %v1866
      %1890 = vmatmul.bf16.gmra.mxu0 %v1826
      %v1891 = vpop.f32.mrf.mxu0
      %v1892 = vadd.f32 0.0, %v1891
      %v1893 = vpop.f32.mrf.mxu0
      %v1894 = vadd.f32 0.0, %v1893
      %1895 = vmatmul.bf16.gmra.mxu0 %v1827
      %v1896 = vpop.f32.mrf.mxu0
      %v1897 = vadd.f32 0.0, %v1896
      %v1898 = vpop.f32.mrf.mxu0
      %v1899 = vadd.f32 0.0, %v1898
      %1900 = vmatmul.bf16.gmra.mxu0 %v1828
      %v1901 = vpop.f32.mrf.mxu0
      %v1902 = vadd.f32 0.0, %v1901
      %v1903 = vpop.f32.mrf.mxu0
      %v1904 = vadd.f32 0.0, %v1903
      %1905 = vmatmul.bf16.gmra.mxu0 %v1829
      %v1906 = vpop.f32.mrf.mxu0
      %v1907 = vadd.f32 0.0, %v1906
      %v1908 = vpop.f32.mrf.mxu0
      %v1909 = vadd.f32 0.0, %v1908
      %1910 = vdwg.mxu0
      %v1911 = vadd.f32 %v1737, %v1892
      %v1912 = vadd.f32 %v1738, %v1894
      %v1913 = vadd.f32 %v1739, %v1897
      %v1914 = vadd.f32 %v1740, %v1899
      %v1915 = vadd.f32 %v1741, %v1902
      %v1916 = vadd.f32 %v1742, %v1904
      %v1917 = vadd.f32 %v1743, %v1907
      %v1918 = vadd.f32 %v1744, %v1909
      %s1919 = scalar_lea.vmem [#allocation2], 16
      %v1920 = vld [vmem:[%s1919] sm:$0xf]
      %v1921 = vld [vmem:[%s1919 + $0x8] sm:$0xf]
      %v1922 = vld [vmem:[%s1919 + $0x10] sm:$0xf]
      %v1923 = vld [vmem:[%s1919 + $0x18] sm:$0xf]
      %v1924 = vld [vmem:[%s1919 + $0x20] sm:$0xf]
      %v1925 = vld [vmem:[%s1919 + $0x28] sm:$0xf]
      %v1926 = vld [vmem:[%s1919 + $0x30] sm:$0xf]
      %v1927 = vld [vmem:[%s1919 + $0x38] sm:$0xf]
      %s1928 = scalar_lea.vmem %s6, 384
      %v1929 = vld [vmem:[%s1928] sm:$0xf]
      %v1930 = vld [vmem:[%s1928 + $0x4] sm:$0xf]
      %v1931 = vld [vmem:[%s1928 + $0x8] sm:$0xf]
      %v1932 = vld [vmem:[%s1928 + $0xc] sm:$0xf]
      %v1933 = vld [vmem:[%s1928 + $0x10] sm:$0xf]
      %v1934 = vld [vmem:[%s1928 + $0x14] sm:$0xf]
      %v1935 = vld [vmem:[%s1928 + $0x18] sm:$0xf]
      %v1936 = vld [vmem:[%s1928 + $0x1c] sm:$0xf]
      %v1937 = vld [vmem:[%s1928 + $0x20] sm:$0xf]
      %v1938 = vld [vmem:[%s1928 + $0x24] sm:$0xf]
      %v1939 = vld [vmem:[%s1928 + $0x28] sm:$0xf]
      %v1940 = vld [vmem:[%s1928 + $0x2c] sm:$0xf]
      %v1941 = vld [vmem:[%s1928 + $0x30] sm:$0xf]
      %v1942 = vld [vmem:[%s1928 + $0x34] sm:$0xf]
      %v1943 = vld [vmem:[%s1928 + $0x38] sm:$0xf]
      %v1944 = vld [vmem:[%s1928 + $0x3c] sm:$0xf]
      %v1953 = vunpack.c.l.b16 %v1920
      %v1954 = vunpack.c.l.b16 %v1921
      %v1955 = vunpack.c.l.b16 %v1922
      %v1956 = vunpack.c.l.b16 %v1923
      %v1957 = vunpack.c.l.b16 %v1924
      %v1958 = vunpack.c.l.b16 %v1925
      %v1959 = vunpack.c.l.b16 %v1926
      %v1960 = vunpack.c.l.b16 %v1927
      %v1961 = vpack.c.b16 %v1954, %v1953
      %v1962 = vpack.c.b16 %v1956, %v1955
      %v1963 = vpack.c.b16 %v1958, %v1957
      %v1964 = vpack.c.b16 %v1960, %v1959
      %v1985 = vunpack.c.l.b16 %v1929
      %v1986 = vunpack.c.l.b16 %v1930
      %v1987 = vunpack.c.l.b16 %v1931
      %v1988 = vunpack.c.l.b16 %v1932
      %v1989 = vunpack.c.l.b16 %v1933
      %v1990 = vunpack.c.l.b16 %v1934
      %v1991 = vunpack.c.l.b16 %v1935
      %v1992 = vunpack.c.l.b16 %v1936
      %v1993 = vunpack.c.l.b16 %v1937
      %v1994 = vunpack.c.l.b16 %v1938
      %v1995 = vunpack.c.l.b16 %v1939
      %v1996 = vunpack.c.l.b16 %v1940
      %v1997 = vunpack.c.l.b16 %v1941
      %v1998 = vunpack.c.l.b16 %v1942
      %v1999 = vunpack.c.l.b16 %v1943
      %v2000 = vunpack.c.l.b16 %v1944
      %v2001 = vpack.c.b16 %v1986, %v1985
      %v2002 = vpack.c.b16 %v1988, %v1987
      %v2003 = vpack.c.b16 %v1990, %v1989
      %v2004 = vpack.c.b16 %v1992, %v1991
      %v2005 = vpack.c.b16 %v1994, %v1993
      %v2006 = vpack.c.b16 %v1996, %v1995
      %v2007 = vpack.c.b16 %v1998, %v1997
      %v2008 = vpack.c.b16 %v2000, %v1999
      %2017 = vmatpush.bf16.msra.mxu0 %v2008
      %2018 = vmatpush.bf16.msra.mxu0 %v2007
      %2019 = vmatpush.bf16.msra.mxu0 %v2006
      %2020 = vmatpush.bf16.msra.mxu0 %v2005
      %2021 = vmatpush.bf16.msra.mxu0 %v2004
      %2022 = vmatpush.bf16.msra.mxu0 %v2003
      %2023 = vmatpush.bf16.msra.mxu0 %v2002
      %2024 = vmatpush.bf16.msra.mxu0 %v2001
      %2025 = vmatmul.bf16.gmra.mxu0 %v1961
      %v2026 = vpop.f32.mrf.mxu0
      %v2027 = vadd.f32 0.0, %v2026
      %v2028 = vpop.f32.mrf.mxu0
      %v2029 = vadd.f32 0.0, %v2028
      %2030 = vmatmul.bf16.gmra.mxu0 %v1962
      %v2031 = vpop.f32.mrf.mxu0
      %v2032 = vadd.f32 0.0, %v2031
      %v2033 = vpop.f32.mrf.mxu0
      %v2034 = vadd.f32 0.0, %v2033
      %2035 = vmatmul.bf16.gmra.mxu0 %v1963
      %v2036 = vpop.f32.mrf.mxu0
      %v2037 = vadd.f32 0.0, %v2036
      %v2038 = vpop.f32.mrf.mxu0
      %v2039 = vadd.f32 0.0, %v2038
      %2040 = vmatmul.bf16.gmra.mxu0 %v1964
      %v2041 = vpop.f32.mrf.mxu0
      %v2042 = vadd.f32 0.0, %v2041
      %v2043 = vpop.f32.mrf.mxu0
      %v2044 = vadd.f32 0.0, %v2043
      %2045 = vdwg.mxu0
      %v2046 = vadd.f32 %v1911, %v2027
      %v2047 = vadd.f32 %v1912, %v2029
      %v2048 = vadd.f32 %v1913, %v2032
      %v2049 = vadd.f32 %v1914, %v2034
      %v2050 = vadd.f32 %v1915, %v2037
      %v2051 = vadd.f32 %v1916, %v2039
      %v2052 = vadd.f32 %v1917, %v2042
      %v2053 = vadd.f32 %v1918, %v2044
      %v2054 = vld [vmem:[%s1919] sm:$0xf]
      %v2055 = vld [vmem:[%s1919 + $0x4] sm:$0x1]
      %v2056 = vld [vmem:[%s1919 + $0x8] sm:$0xf]
      %v2057 = vld [vmem:[%s1919 + $0xc] sm:$0x1]
      %v2058 = vld [vmem:[%s1919 + $0x10] sm:$0xf]
      %v2059 = vld [vmem:[%s1919 + $0x14] sm:$0x1]
      %v2060 = vld [vmem:[%s1919 + $0x18] sm:$0xf]
      %v2061 = vld [vmem:[%s1919 + $0x1c] sm:$0x1]
      %v2062 = vld [vmem:[%s1919 + $0x20] sm:$0xf]
      %v2063 = vld [vmem:[%s1919 + $0x24] sm:$0x1]
      %v2064 = vld [vmem:[%s1919 + $0x28] sm:$0xf]
      %v2065 = vld [vmem:[%s1919 + $0x2c] sm:$0x1]
      %v2066 = vld [vmem:[%s1919 + $0x30] sm:$0xf]
      %v2067 = vld [vmem:[%s1919 + $0x34] sm:$0x1]
      %v2068 = vld [vmem:[%s1919 + $0x38] sm:$0xf]
      %v2069 = vld [vmem:[%s1919 + $0x3c] sm:$0x1]
      %v2071 = vshrl.u32 %v2054, 16
      %v2073 = vrot.slane %v2071, 4
      %v2074 = vshll.u32 %v2054, 16
      %v2076 = vrot.slane %v2074, 5
      %v2077 = vor.u32 %v2073, %v2076
      %v2078 = vrot.slane %v2077, 4
      %v2080 = vshll.u32 %v2055, 16
      %v2082 = vrot.slane %v2080, 5
      %v2083 = vsel %vm864, %v2078, %v2082
      %v2085 = vshrl.u32 %v2056, 16
      %v2087 = vrot.slane %v2085, 4
      %v2088 = vshll.u32 %v2056, 16
      %v2090 = vrot.slane %v2088, 5
      %v2091 = vor.u32 %v2087, %v2090
      %v2092 = vrot.slane %v2091, 4
      %v2094 = vshll.u32 %v2057, 16
      %v2096 = vrot.slane %v2094, 5
      %v2097 = vsel %vm864, %v2092, %v2096
      %v2099 = vshrl.u32 %v2058, 16
      %v2101 = vrot.slane %v2099, 4
      %v2102 = vshll.u32 %v2058, 16
      %v2104 = vrot.slane %v2102, 5
      %v2105 = vor.u32 %v2101, %v2104
      %v2106 = vrot.slane %v2105, 4
      %v2108 = vshll.u32 %v2059, 16
      %v2110 = vrot.slane %v2108, 5
      %v2111 = vsel %vm864, %v2106, %v2110
      %v2113 = vshrl.u32 %v2060, 16
      %v2115 = vrot.slane %v2113, 4
      %v2116 = vshll.u32 %v2060, 16
      %v2118 = vrot.slane %v2116, 5
      %v2119 = vor.u32 %v2115, %v2118
      %v2120 = vrot.slane %v2119, 4
      %v2122 = vshll.u32 %v2061, 16
      %v2124 = vrot.slane %v2122, 5
      %v2125 = vsel %vm864, %v2120, %v2124
      %v2127 = vshrl.u32 %v2062, 16
      %v2129 = vrot.slane %v2127, 4
      %v2130 = vshll.u32 %v2062, 16
      %v2132 = vrot.slane %v2130, 5
      %v2133 = vor.u32 %v2129, %v2132
      %v2134 = vrot.slane %v2133, 4
      %v2136 = vshll.u32 %v2063, 16
      %v2138 = vrot.slane %v2136, 5
      %v2139 = vsel %vm864, %v2134, %v2138
      %v2141 = vshrl.u32 %v2064, 16
      %v2143 = vrot.slane %v2141, 4
      %v2144 = vshll.u32 %v2064, 16
      %v2146 = vrot.slane %v2144, 5
      %v2147 = vor.u32 %v2143, %v2146
      %v2148 = vrot.slane %v2147, 4
      %v2150 = vshll.u32 %v2065, 16
      %v2152 = vrot.slane %v2150, 5
      %v2153 = vsel %vm864, %v2148, %v2152
      %v2155 = vshrl.u32 %v2066, 16
      %v2157 = vrot.slane %v2155, 4
      %v2158 = vshll.u32 %v2066, 16
      %v2160 = vrot.slane %v2158, 5
      %v2161 = vor.u32 %v2157, %v2160
      %v2162 = vrot.slane %v2161, 4
      %v2164 = vshll.u32 %v2067, 16
      %v2166 = vrot.slane %v2164, 5
      %v2167 = vsel %vm864, %v2162, %v2166
      %v2169 = vshrl.u32 %v2068, 16
      %v2171 = vrot.slane %v2169, 4
      %v2172 = vshll.u32 %v2068, 16
      %v2174 = vrot.slane %v2172, 5
      %v2175 = vor.u32 %v2171, %v2174
      %v2176 = vrot.slane %v2175, 4
      %v2178 = vshll.u32 %v2069, 16
      %v2180 = vrot.slane %v2178, 5
      %v2181 = vsel %vm864, %v2176, %v2180
      %s2182 = scalar_lea.vmem %s6, 448
      %v2183 = vld [vmem:[%s2182] sm:$0xf]
      %v2184 = vld [vmem:[%s2182 + $0x4] sm:$0xf]
      %v2185 = vld [vmem:[%s2182 + $0x8] sm:$0xf]
      %v2186 = vld [vmem:[%s2182 + $0xc] sm:$0xf]
      %v2187 = vld [vmem:[%s2182 + $0x10] sm:$0xf]
      %v2188 = vld [vmem:[%s2182 + $0x14] sm:$0xf]
      %v2189 = vld [vmem:[%s2182 + $0x18] sm:$0xf]
      %v2190 = vld [vmem:[%s2182 + $0x1c] sm:$0xf]
      %v2191 = vld [vmem:[%s2182 + $0x20] sm:$0xf]
      %v2192 = vld [vmem:[%s2182 + $0x24] sm:$0xf]
      %v2193 = vld [vmem:[%s2182 + $0x28] sm:$0xf]
      %v2194 = vld [vmem:[%s2182 + $0x2c] sm:$0xf]
      %v2195 = vld [vmem:[%s2182 + $0x30] sm:$0xf]
      %v2196 = vld [vmem:[%s2182 + $0x34] sm:$0xf]
      %v2197 = vld [vmem:[%s2182 + $0x38] sm:$0xf]
      %v2198 = vld [vmem:[%s2182 + $0x3c] sm:$0xf]
      %v2199 = vunpack.c.l.b16 %v2083
      %v2200 = vunpack.c.l.b16 %v2097
      %v2201 = vunpack.c.l.b16 %v2111
      %v2202 = vunpack.c.l.b16 %v2125
      %v2203 = vunpack.c.l.b16 %v2139
      %v2204 = vunpack.c.l.b16 %v2153
      %v2205 = vunpack.c.l.b16 %v2167
      %v2206 = vunpack.c.l.b16 %v2181
      %v2207 = vpack.c.b16 %v2200, %v2199
      %v2208 = vpack.c.b16 %v2202, %v2201
      %v2209 = vpack.c.b16 %v2204, %v2203
      %v2210 = vpack.c.b16 %v2206, %v2205
      %v2231 = vunpack.c.l.b16 %v2183
      %v2232 = vunpack.c.l.b16 %v2184
      %v2233 = vunpack.c.l.b16 %v2185
      %v2234 = vunpack.c.l.b16 %v2186
      %v2235 = vunpack.c.l.b16 %v2187
      %v2236 = vunpack.c.l.b16 %v2188
      %v2237 = vunpack.c.l.b16 %v2189
      %v2238 = vunpack.c.l.b16 %v2190
      %v2239 = vunpack.c.l.b16 %v2191
      %v2240 = vunpack.c.l.b16 %v2192
      %v2241 = vunpack.c.l.b16 %v2193
      %v2242 = vunpack.c.l.b16 %v2194
      %v2243 = vunpack.c.l.b16 %v2195
      %v2244 = vunpack.c.l.b16 %v2196
      %v2245 = vunpack.c.l.b16 %v2197
      %v2246 = vunpack.c.l.b16 %v2198
      %v2247 = vpack.c.b16 %v2232, %v2231
      %v2248 = vpack.c.b16 %v2234, %v2233
      %v2249 = vpack.c.b16 %v2236, %v2235
      %v2250 = vpack.c.b16 %v2238, %v2237
      %v2251 = vpack.c.b16 %v2240, %v2239
      %v2252 = vpack.c.b16 %v2242, %v2241
      %v2253 = vpack.c.b16 %v2244, %v2243
      %v2254 = vpack.c.b16 %v2246, %v2245
      %2263 = vmatpush.bf16.msra.mxu0 %v2254
      %2264 = vmatpush.bf16.msra.mxu0 %v2253
      %2265 = vmatpush.bf16.msra.mxu0 %v2252
      %2266 = vmatpush.bf16.msra.mxu0 %v2251
      %2267 = vmatpush.bf16.msra.mxu0 %v2250
      %2268 = vmatpush.bf16.msra.mxu0 %v2249
      %2269 = vmatpush.bf16.msra.mxu0 %v2248
      %2270 = vmatpush.bf16.msra.mxu0 %v2247
      %2271 = vmatmul.bf16.gmra.mxu0 %v2207
      %v2272 = vpop.f32.mrf.mxu0
      %v2273 = vadd.f32 0.0, %v2272
      %v2274 = vpop.f32.mrf.mxu0
      %v2275 = vadd.f32 0.0, %v2274
      %2276 = vmatmul.bf16.gmra.mxu0 %v2208
      %v2277 = vpop.f32.mrf.mxu0
      %v2278 = vadd.f32 0.0, %v2277
      %v2279 = vpop.f32.mrf.mxu0
      %v2280 = vadd.f32 0.0, %v2279
      %2281 = vmatmul.bf16.gmra.mxu0 %v2209
      %v2282 = vpop.f32.mrf.mxu0
      %v2283 = vadd.f32 0.0, %v2282
      %v2284 = vpop.f32.mrf.mxu0
      %v2285 = vadd.f32 0.0, %v2284
      %2286 = vmatmul.bf16.gmra.mxu0 %v2210
      %v2287 = vpop.f32.mrf.mxu0
      %v2288 = vadd.f32 0.0, %v2287
      %v2289 = vpop.f32.mrf.mxu0
      %v2290 = vadd.f32 0.0, %v2289
      %2291 = vdwg.mxu0
      %v2292 = vadd.f32 %v2046, %v2273
      %v2293 = vadd.f32 %v2047, %v2275
      %v2294 = vadd.f32 %v2048, %v2278
      %v2295 = vadd.f32 %v2049, %v2280
      %v2296 = vadd.f32 %v2050, %v2283
      %v2297 = vadd.f32 %v2051, %v2285
      %v2298 = vadd.f32 %v2052, %v2288
      %v2299 = vadd.f32 %v2053, %v2290
      %v2300 = vld [vmem:[%s1919] sm:$0xe]
      %v2301 = vld [vmem:[%s1919 + $0x8] sm:$0xe]
      %v2302 = vld [vmem:[%s1919 + $0x10] sm:$0xe]
      %v2303 = vld [vmem:[%s1919 + $0x18] sm:$0xe]
      %v2304 = vld [vmem:[%s1919 + $0x20] sm:$0xe]
      %v2305 = vld [vmem:[%s1919 + $0x28] sm:$0xe]
      %v2306 = vld [vmem:[%s1919 + $0x30] sm:$0xe]
      %v2307 = vld [vmem:[%s1919 + $0x38] sm:$0xe]
      %v2324 = vrot.slane %v2300, 5
      %v2325 = vrot.slane %v2324, 4
      %v2326 = vrot.slane %v2055, 5
      %v2327 = vsel %vm1214, %v2325, %v2326
      %v2328 = vrot.slane %v2301, 5
      %v2329 = vrot.slane %v2328, 4
      %v2330 = vrot.slane %v2057, 5
      %v2331 = vsel %vm1214, %v2329, %v2330
      %v2332 = vrot.slane %v2302, 5
      %v2333 = vrot.slane %v2332, 4
      %v2334 = vrot.slane %v2059, 5
      %v2335 = vsel %vm1214, %v2333, %v2334
      %v2336 = vrot.slane %v2303, 5
      %v2337 = vrot.slane %v2336, 4
      %v2338 = vrot.slane %v2061, 5
      %v2339 = vsel %vm1214, %v2337, %v2338
      %v2340 = vrot.slane %v2304, 5
      %v2341 = vrot.slane %v2340, 4
      %v2342 = vrot.slane %v2063, 5
      %v2343 = vsel %vm1214, %v2341, %v2342
      %v2344 = vrot.slane %v2305, 5
      %v2345 = vrot.slane %v2344, 4
      %v2346 = vrot.slane %v2065, 5
      %v2347 = vsel %vm1214, %v2345, %v2346
      %v2348 = vrot.slane %v2306, 5
      %v2349 = vrot.slane %v2348, 4
      %v2350 = vrot.slane %v2067, 5
      %v2351 = vsel %vm1214, %v2349, %v2350
      %v2352 = vrot.slane %v2307, 5
      %v2353 = vrot.slane %v2352, 4
      %v2354 = vrot.slane %v2069, 5
      %v2355 = vsel %vm1214, %v2353, %v2354
      %s2356 = scalar_lea.vmem %s6, 512
      %v2357 = vld [vmem:[%s2356] sm:$0xf]
      %v2358 = vld [vmem:[%s2356 + $0x4] sm:$0xf]
      %v2359 = vld [vmem:[%s2356 + $0x8] sm:$0xf]
      %v2360 = vld [vmem:[%s2356 + $0xc] sm:$0xf]
      %v2361 = vld [vmem:[%s2356 + $0x10] sm:$0xf]
      %v2362 = vld [vmem:[%s2356 + $0x14] sm:$0xf]
      %v2363 = vld [vmem:[%s2356 + $0x18] sm:$0xf]
      %v2364 = vld [vmem:[%s2356 + $0x1c] sm:$0xf]
      %v2365 = vld [vmem:[%s2356 + $0x20] sm:$0xf]
      %v2366 = vld [vmem:[%s2356 + $0x24] sm:$0xf]
      %v2367 = vld [vmem:[%s2356 + $0x28] sm:$0xf]
      %v2368 = vld [vmem:[%s2356 + $0x2c] sm:$0xf]
      %v2369 = vld [vmem:[%s2356 + $0x30] sm:$0xf]
      %v2370 = vld [vmem:[%s2356 + $0x34] sm:$0xf]
      %v2371 = vld [vmem:[%s2356 + $0x38] sm:$0xf]
      %v2372 = vld [vmem:[%s2356 + $0x3c] sm:$0xf]
      %v2373 = vunpack.c.l.b16 %v2327
      %v2374 = vunpack.c.l.b16 %v2331
      %v2375 = vunpack.c.l.b16 %v2335
      %v2376 = vunpack.c.l.b16 %v2339
      %v2377 = vunpack.c.l.b16 %v2343
      %v2378 = vunpack.c.l.b16 %v2347
      %v2379 = vunpack.c.l.b16 %v2351
      %v2380 = vunpack.c.l.b16 %v2355
      %v2381 = vpack.c.b16 %v2374, %v2373
      %v2382 = vpack.c.b16 %v2376, %v2375
      %v2383 = vpack.c.b16 %v2378, %v2377
      %v2384 = vpack.c.b16 %v2380, %v2379
      %v2405 = vunpack.c.l.b16 %v2357
      %v2406 = vunpack.c.l.b16 %v2358
      %v2407 = vunpack.c.l.b16 %v2359
      %v2408 = vunpack.c.l.b16 %v2360
      %v2409 = vunpack.c.l.b16 %v2361
      %v2410 = vunpack.c.l.b16 %v2362
      %v2411 = vunpack.c.l.b16 %v2363
      %v2412 = vunpack.c.l.b16 %v2364
      %v2413 = vunpack.c.l.b16 %v2365
      %v2414 = vunpack.c.l.b16 %v2366
      %v2415 = vunpack.c.l.b16 %v2367
      %v2416 = vunpack.c.l.b16 %v2368
      %v2417 = vunpack.c.l.b16 %v2369
      %v2418 = vunpack.c.l.b16 %v2370
      %v2419 = vunpack.c.l.b16 %v2371
      %v2420 = vunpack.c.l.b16 %v2372
      %v2421 = vpack.c.b16 %v2406, %v2405
      %v2422 = vpack.c.b16 %v2408, %v2407
      %v2423 = vpack.c.b16 %v2410, %v2409
      %v2424 = vpack.c.b16 %v2412, %v2411
      %v2425 = vpack.c.b16 %v2414, %v2413
      %v2426 = vpack.c.b16 %v2416, %v2415
      %v2427 = vpack.c.b16 %v2418, %v2417
      %v2428 = vpack.c.b16 %v2420, %v2419
      %2437 = vmatpush.bf16.msra.mxu0 %v2428
      %2438 = vmatpush.bf16.msra.mxu0 %v2427
      %2439 = vmatpush.bf16.msra.mxu0 %v2426
      %2440 = vmatpush.bf16.msra.mxu0 %v2425
      %2441 = vmatpush.bf16.msra.mxu0 %v2424
      %2442 = vmatpush.bf16.msra.mxu0 %v2423
      %2443 = vmatpush.bf16.msra.mxu0 %v2422
      %2444 = vmatpush.bf16.msra.mxu0 %v2421
      %2445 = vmatmul.bf16.gmra.mxu0 %v2381
      %v2446 = vpop.f32.mrf.mxu0
      %v2447 = vadd.f32 0.0, %v2446
      %v2448 = vpop.f32.mrf.mxu0
      %v2449 = vadd.f32 0.0, %v2448
      %2450 = vmatmul.bf16.gmra.mxu0 %v2382
      %v2451 = vpop.f32.mrf.mxu0
      %v2452 = vadd.f32 0.0, %v2451
      %v2453 = vpop.f32.mrf.mxu0
      %v2454 = vadd.f32 0.0, %v2453
      %2455 = vmatmul.bf16.gmra.mxu0 %v2383
      %v2456 = vpop.f32.mrf.mxu0
      %v2457 = vadd.f32 0.0, %v2456
      %v2458 = vpop.f32.mrf.mxu0
      %v2459 = vadd.f32 0.0, %v2458
      %2460 = vmatmul.bf16.gmra.mxu0 %v2384
      %v2461 = vpop.f32.mrf.mxu0
      %v2462 = vadd.f32 0.0, %v2461
      %v2463 = vpop.f32.mrf.mxu0
      %v2464 = vadd.f32 0.0, %v2463
      %2465 = vdwg.mxu0
      %v2466 = vadd.f32 %v2292, %v2447
      %v2467 = vadd.f32 %v2293, %v2449
      %v2468 = vadd.f32 %v2294, %v2452
      %v2469 = vadd.f32 %v2295, %v2454
      %v2470 = vadd.f32 %v2296, %v2457
      %v2471 = vadd.f32 %v2297, %v2459
      %v2472 = vadd.f32 %v2298, %v2462
      %v2473 = vadd.f32 %v2299, %v2464
      %2474 = vst [vmem:[%s473] sm:$0xff] %v2466
      %2475 = vst [vmem:[%s473 + $0x8] sm:$0xff] %v2467
      %2476 = vst [vmem:[%s473 + $0x10] sm:$0xff] %v2468
      %2477 = vst [vmem:[%s473 + $0x18] sm:$0xff] %v2469
      %2478 = vst [vmem:[%s473 + $0x20] sm:$0xff] %v2470
      %2479 = vst [vmem:[%s473 + $0x28] sm:$0xff] %v2471
      %2480 = vst [vmem:[%s473 + $0x30] sm:$0xff] %v2472
      %2481 = vst [vmem:[%s473 + $0x38] sm:$0xff] %v2473
      %v2482 = vadd.f32 %v2466, %v2467
      %v2483 = vadd.f32 %v2482, %v2468
      %v2484 = vadd.f32 %v2483, %v2469
      %v2485 = vadd.f32 %v2484, %v2470
      %v2486 = vadd.f32 %v2485, %v2471
      %v2487 = vadd.f32 %v2486, %v2472
      %v2488 = vadd.f32 %v2487, %v2473
      %v2489 = vrot.slane %v2488, 4
      %v2490 = vadd.f32 %v2488, %v2489
      %v2491 = vrot.slane %v2490, 2
      %v2492 = vadd.f32 %v2490, %v2491
      %v2493 = vrot.slane %v2492, 1
      %v2494 = vadd.f32 %v2492, %v2493
      %v2495 = vmul.f32 %v2466, %v2466
      %v2496 = vmul.f32 %v2467, %v2467
      %v2497 = vmul.f32 %v2468, %v2468
      %v2498 = vmul.f32 %v2469, %v2469
      %v2499 = vmul.f32 %v2470, %v2470
      %v2500 = vmul.f32 %v2471, %v2471
      %v2501 = vmul.f32 %v2472, %v2472
      %v2502 = vmul.f32 %v2473, %v2473
      %v2503 = vadd.f32 %v2495, %v2496
      %v2504 = vadd.f32 %v2503, %v2497
      %v2505 = vadd.f32 %v2504, %v2498
      %v2506 = vadd.f32 %v2505, %v2499
      %v2507 = vadd.f32 %v2506, %v2500
      %v2508 = vadd.f32 %v2507, %v2501
      %v2509 = vadd.f32 %v2508, %v2502
      %v2510 = vrot.slane %v2509, 4
      %v2511 = vadd.f32 %v2509, %v2510
      %v2512 = vrot.slane %v2511, 2
      %v2513 = vadd.f32 %v2511, %v2512
      %v2514 = vrot.slane %v2513, 1
      %v2515 = vadd.f32 %v2513, %v2514
      %vm2516 = vcmask 1040384
      %v2517 = vsel %vm2516, %v2494, %v2515
      %2518 = vst [vmem:[%s481] sm:$0x3] %v2517
      %s2519 = smul.u32 8, %s25
      %p2520 = scmp.lt.s32.totalorder %s24, 1
      %s2521 = scalar_select %p2520, %s24, 1
      %p2522 = scmp.lt.s32.totalorder %s2519, 7
      %s2523 = scalar_select %p2522, %s2519, 7
      %s2524 = smul.addr %s2521, 8
      %s2525 = sadd.s32 %s2523, %s2524
      %s2526 = smul.addr %s2525, 8
      %s2527 = scalar_lea.vmem %s7, %s2526
      %p2528 = scmp.lt.s32.totalorder %s24, 1
      %s2529 = scalar_select %p2528, %s24, 1
      %p2530 = scmp.lt.s32.totalorder %s25, 0
      %s2531 = scalar_select %p2530, %s25, 0
      %s2532 = sadd.s32 %s2531, %s2529
      %s2533 = smul.addr %s2532, 2
      %s2534 = scalar_lea.vmem %s8, %s2533
      // Predicated region
      $region53: #{down_forward.6} parent=47 // pred_check
        %p2535 = pneg %p236
      $region54: #{down_forward.6} parent=47 // pred_check_branch
        %2537 = sbr.rel (%p2535) target = $region56
      $region55: #{down_forward.6} parent=47 // pred_region
        %s2538 = smul.u32 8, %s25
      $region56: #{down_forward.6} parent=47 // pred_fallthru
        _
      // Predicated region
      $region57: #{down_forward.6} parent=47 // pred_check
        %p2539 = pneg %p264
      $region58: #{down_forward.6} parent=47 // pred_check_branch
        %2541 = sbr.rel (%p2539) target = $region60
      $region59: #{down_forward.6} parent=47 // pred_region
        _
      $region60: #{down_forward.6} parent=47 // pred_fallthru
        _
    $region48: #{down_forward.6} parent=5 // pred_fallthru
      _
    %p2542 = scmp.le.s32.totalorder 2, %s15
    // Predicated region
    $region61: #{down_forward.6} parent=5 // pred_check
      %p2543 = pneg %p2542
    $region62: #{down_forward.6} parent=5 // pred_check_branch
      %2545 = sbr.rel (%p2543) target = $region64
    $region63: #{down_forward.6} parent=5 // pred_region
      %s2546 = ssub.s32 %s15, 2
      // Predicated region
      $region65: #{down_forward.6} parent=63 // pred_check
        %p2547 = pneg %p242
      $region66: #{down_forward.6} parent=63 // pred_check_branch
        %2549 = sbr.rel (%p2547) target = $region68
      $region67: #{down_forward.6} parent=63 // pred_region
        %s2550 = smul.u32 8, %s27
        %p2551 = scmp.lt.s32.totalorder %s26, 1
        %s2552 = scalar_select %p2551, %s26, 1
        %p2553 = scmp.lt.s32.totalorder %s2550, 7
        %s2554 = scalar_select %p2553, %s2550, 7
        %s2555 = smul.addr %s2552, 8
        %s2556 = sadd.s32 %s2554, %s2555
        %s2557 = smul.addr %s2556, 8
        %s2558 = scalar_lea.vmem %s7, %s2557
      $region68: #{down_forward.6} parent=63 // pred_fallthru
        _
      // Predicated region
      $region69: #{down_forward.6} parent=63 // pred_check
        %p2559 = pneg %p270
      $region70: #{down_forward.6} parent=63 // pred_check_branch
        %2561 = sbr.rel (%p2559) target = $region72
      $region71: #{down_forward.6} parent=63 // pred_region
        %p2562 = scmp.lt.s32.totalorder %s26, 1
        %s2563 = scalar_select %p2562, %s26, 1
        %p2564 = scmp.lt.s32.totalorder %s27, 0
        %s2565 = scalar_select %p2564, %s27, 0
        %s2566 = sadd.s32 %s2565, %s2563
        %s2567 = smul.addr %s2566, 2
        %s2568 = scalar_lea.vmem %s8, %s2567
      $region72: #{down_forward.6} parent=63 // pred_fallthru
        _
    $region64: #{down_forward.6} parent=5 // pred_fallthru
      _
  $region6: #{down_forward.6} parent=0 // loop_footer
    %s19 = sadd.s32 1, %s15
  $region7: #{down_forward.6} parent=0 // loop_footer_branch
    %14 = sbr.rel target = $region3
  $region8: #{down_forward.6} parent=0 // loop_exit
    _

</llo_original>
